<compile_context>
chip_gen: v5e
topology: v5e:2x2
jax: 0.10.0
libtpu: 0.0.40
codegen_flags: <defaults>
</compile_context>

<pallas_src>
import functools

import jax
import jax.numpy as jnp
from jax.experimental import pallas as pl
from jax.experimental.pallas import tpu as pltpu

NEG_SLOPE = 0.2  # nn.LeakyReLU(negative_slope=0.2)


def _embed_decoder_kernel(x_ref, w_ref, out_ref):
    # x_ref  : (B, F+1)     bf16 -- input with a trailing ones column (bias fold)
    # w_ref  : (2, F+1, tn) bf16 -- [W1;b1] and [W2;b2] packed column tiles
    # out_ref: (2, B, tn)   f32  -- row 0: Linear1 branch, row 1: ReLU->Linear2 branch
    x = x_ref[...]
    xr = jnp.maximum(x, 0.0)          # ReLU branch; the ones column stays 1

    # Two K=F+1 matmuls against the merged weight slab (bf16 in, f32 accumulate).
    y1 = jnp.dot(x, w_ref[0], preferred_element_type=jnp.float32)
    y2 = jnp.dot(xr, w_ref[1], preferred_element_type=jnp.float32)

    # LeakyReLU(0.2)
    out_ref[0] = jnp.where(y1 > 0, y1, NEG_SLOPE * y1)
    out_ref[1] = jnp.where(y2 > 0, y2, NEG_SLOPE * y2)


def _pick_tn(ntot):
    """Output-tile width.  Single-TC chips (v5e/v6e): one big tile (grid=1, no
    per-step overhead, no pad).  Dual-TC v7x: two parallel tiles so both
    TensorCores split the weight DMA."""
    try:
        kind = jax.devices()[0].device_kind.lower()
    except Exception:
        kind = ""
    if "v7" in kind or "7x" in kind:
        return 1536               # 2944 -> Npad=3072, grid=2 parallel steps
    return ntot                   # grid = 1


def pack_embedding_decoder_params(params, *, dtype=jnp.bfloat16, tn=None):
    """One-time weight packing (call once, NOT per forward).

    params: list of (w1, b1, w2, b2) per block, PyTorch nn.Linear layout
            (w*: (out_i, F), b*: (out_i,)).
    Returns (w_packed, outs, tn) with w_packed: (2, F+1, Npad) in `dtype`."""
    outs = tuple(int(p[0].shape[0]) for p in params)
    ntot = sum(outs)
    if tn is None:
        tn = _pick_tn(ntot)
    npad = -(-ntot // tn) * tn

    w1 = jnp.concatenate([p[0].T for p in params], axis=1)      # (F, Ntot)
    w2 = jnp.concatenate([p[2].T for p in params], axis=1)      # (F, Ntot)
    b1 = jnp.concatenate([p[1] for p in params])[None, :]       # (1, Ntot)
    b2 = jnp.concatenate([p[3] for p in params])[None, :]       # (1, Ntot)
    wb = jnp.stack([jnp.concatenate([w1, b1], axis=0),
                    jnp.concatenate([w2, b2], axis=0)], axis=0)  # (2, F+1, Ntot)
    if npad != ntot:
        wb = jnp.pad(wb, ((0, 0), (0, 0), (0, npad - ntot)))
    return wb.astype(dtype), outs, tn


@functools.partial(jax.jit, static_argnames=("tn",))
def _run_packed(x_aug, w_packed, *, tn):
    B, F1 = x_aug.shape
    _, _, npad = w_packed.shape
    return pl.pallas_call(
        _embed_decoder_kernel,
        out_shape=jax.ShapeDtypeStruct((2, B, npad), jnp.float32),
        grid_spec=pltpu.PrefetchScalarGridSpec(
            num_scalar_prefetch=0,
            grid=(npad // tn,),
            in_specs=[
                # x: constant index_map -> DMA'd once, resident across steps.
                pl.BlockSpec((B, F1), lambda j: (0, 0)),
                # merged weights: the single pipelined DMA stream per step.
                pl.BlockSpec((2, F1, tn), lambda j: (0, 0, j)),
            ],
            out_specs=pl.BlockSpec((2, B, tn), lambda j: (0, 0, j)),
        ),
        compiler_params=pltpu.CompilerParams(
            dimension_semantics=("parallel",)),
    )(x_aug, w_packed)


def embedding_layer_decoder(x, packed):
    """x: (B, F) float32.  packed: output of pack_embedding_decoder_params.
    Returns list of 5 arrays of shape (B, out_i, 2) (torch semantics)."""
    w_packed, outs, tn = packed
    B, F = x.shape
    # Append the ones column (bias fold) and cast to the weight dtype (bf16).
    x_aug = jnp.concatenate([x, jnp.ones((B, 1), x.dtype)],
                            axis=1).astype(w_packed.dtype)
    y = _run_packed(x_aug, w_packed, tn=tn)          # (2, B, Npad) f32

    results = []
    off = 0
    for o in outs:
        blk = y[:, :, off:off + o]                   # (2, B, o)
        results.append(jnp.transpose(blk, (1, 2, 0)))  # (B, o, 2)
        off += o
    return results


def _reference(x, params, qdtype=None):
    """Pure-JAX reference matching the PyTorch forward.  If qdtype is given,
    inputs/weights are quantized to it first (mirrors the kernel's bf16
    storage) so the kernel can be checked with a tight tolerance."""
    def cast(a):
        return a if qdtype is None else a.astype(qdtype).astype(jnp.float32)

    xq = cast(x)
    xr = jnp.maximum(xq, 0.0)
    outs = []
    for (w1, b1, w2, b2) in params:
        w1q, b1q, w2q, b2q = cast(w1), cast(b1), cast(w2), cast(b2)
        y1 = jnp.dot(xq, w1q.T, precision=jax.lax.Precision.HIGHEST) + b1q
        y2 = jnp.dot(xr, w2q.T, precision=jax.lax.Precision.HIGHEST) + b2q
        y = jnp.stack([y1, y2], axis=-1)             # (B, out_i, 2)
        outs.append(jnp.where(y > 0, y, NEG_SLOPE * y))
    return outs


if __name__ == "__main__":
    key = jax.random.PRNGKey(0)
    B, F = 2, 128                                    # mid_features = 128
    out_features = [1024, 1024, 512, 256, 128]       # embed1 .. embed5

    key, kx = jax.random.split(key)
    x = jax.random.normal(kx, (B, F), jnp.float32)

    params = []
    for o in out_features:
        key, k1, k2, k3, k4 = jax.random.split(key, 5)
        w1 = 0.05 * jax.random.normal(k1, (o, F), jnp.float32)
        b1 = 0.05 * jax.random.normal(k2, (o,), jnp.float32)
        w2 = 0.05 * jax.random.normal(k3, (o, F), jnp.float32)
        b2 = 0.05 * jax.random.normal(k4, (o,), jnp.float32)
        params.append((w1, b1, w2, b2))

    # One-time packing (hoisted out of the hot path).
    packed = pack_embedding_decoder_params(params)

    outs = embedding_layer_decoder(x, packed)
    outs = [jax.block_until_ready(o) for o in outs]

    refs_bf16 = _reference(x, params, qdtype=jnp.bfloat16)  # same bf16 quantization
    refs_f32 = _reference(x, params)                         # full-precision semantics

    for o, rq, rf, of in zip(outs, refs_bf16, refs_f32, out_features):
        assert o.shape == (B, of, 2), o.shape
        # Tight check vs the bf16-quantized reference (kernel correctness).
        assert jnp.allclose(o, rq, atol=2e-3, rtol=2e-3), float(
            jnp.max(jnp.abs(o - rq)))
        # Relaxed check vs the f32 reference (bf16 weight-storage error only).
        assert jnp.allclose(o, rf, atol=5e-2, rtol=5e-2), float(
            jnp.max(jnp.abs(o - rf)))

    print("KERNEL_OK")
</pallas_src>

<mosaic_0001>
module attributes {stable_mosaic.version = 11 : i64} {
  func.func @_embed_decoder_kernel(%arg0: i32, %arg1: memref<2x129xbf16, #tpu.memory_space<vmem>>, %arg2: memref<2x129x2944xbf16, #tpu.memory_space<vmem>>, %arg3: memref<2x2x2944xf32, #tpu.memory_space<vmem>>) attributes {dimension_semantics = [#tpu.dimension_semantics<parallel>], iteration_bounds = array<i64: 1>, scalar_prefetch = 0 : i64, scratch_operands = 0 : i64, tpu.core_type = #tpu.core_type<tc>, window_params = [{pipeline_mode = #tpu.pipeline_mode<synchronous>, transform_indices = @transform_0, window_bounds = array<i64: 2, 129>}, {transform_indices = @transform_1, window_bounds = array<i64: 2, 129, 2944>}, {transform_indices = @transform_2, window_bounds = array<i64: 2, 2, 2944>}]} {
    %c0 = arith.constant 0 : index
    %c0_0 = arith.constant 0 : index
    %0 = vector.load %arg1[%c0, %c0_0] : memref<2x129xbf16, #tpu.memory_space<vmem>>, vector<2x129xbf16>
    %cst = arith.constant 0.000000e+00 : bf16
    %1 = vector.broadcast %cst : bf16 to vector<2x129xbf16>
    %2 = arith.maximumf %0, %1 : vector<2x129xbf16>
    %c0_1 = arith.constant 0 : index
    %c0_2 = arith.constant 0 : index
    %c0_3 = arith.constant 0 : index
    %3 = vector.load %arg2[%c0_1, %c0_2, %c0_3] : memref<2x129x2944xbf16, #tpu.memory_space<vmem>>, vector<1x129x2944xbf16>
    %4 = vector.shape_cast %3 : vector<1x129x2944xbf16> to vector<129x2944xbf16>
    %cst_4 = arith.constant dense<0.000000e+00> : vector<2x2944xf32>
    %5 = tpu.matmul %0, %4, %cst_4 {dimension_numbers = #tpu.dot_dimension_numbers<[1], [0], [0], [1], [0, 0, 1, 1], [], []>} : vector<2x129xbf16>, vector<129x2944xbf16>, vector<2x2944xf32> -> vector<2x2944xf32>
    %c1 = arith.constant 1 : index
    %c0_5 = arith.constant 0 : index
    %c0_6 = arith.constant 0 : index
    %6 = vector.load %arg2[%c1, %c0_5, %c0_6] : memref<2x129x2944xbf16, #tpu.memory_space<vmem>>, vector<1x129x2944xbf16>
    %7 = vector.shape_cast %6 : vector<1x129x2944xbf16> to vector<129x2944xbf16>
    %cst_7 = arith.constant dense<0.000000e+00> : vector<2x2944xf32>
    %8 = tpu.matmul %2, %7, %cst_7 {dimension_numbers = #tpu.dot_dimension_numbers<[1], [0], [0], [1], [0, 0, 1, 1], [], []>} : vector<2x129xbf16>, vector<129x2944xbf16>, vector<2x2944xf32> -> vector<2x2944xf32>
    %cst_8 = arith.constant 0.000000e+00 : f32
    %9 = vector.broadcast %cst_8 : f32 to vector<2x2944xf32>
    %10 = arith.cmpf ogt, %5, %9 : vector<2x2944xf32>
    %cst_9 = arith.constant 2.000000e-01 : f32
    %11 = vector.broadcast %cst_9 : f32 to vector<2x2944xf32>
    %12 = arith.mulf %11, %5 : vector<2x2944xf32>
    %13 = arith.select %10, %5, %12 : vector<2x2944xi1>, vector<2x2944xf32>
    %c0_10 = arith.constant 0 : index
    %c0_11 = arith.constant 0 : index
    %c0_12 = arith.constant 0 : index
    %14 = vector.load %arg3[%c0_10, %c0_11, %c0_12] : memref<2x2x2944xf32, #tpu.memory_space<vmem>>, vector<1x2x2944xf32>
    %15 = vector.shape_cast %14 : vector<1x2x2944xf32> to vector<2x2944xf32>
    %16 = vector.shape_cast %13 : vector<2x2944xf32> to vector<1x2x2944xf32>
    tpu.vector_store %arg3[%c0_10, %c0_11, %c0_12], %16 {strides = array<i32>} : memref<2x2x2944xf32, #tpu.memory_space<vmem>>, vector<1x2x2944xf32>,
    %cst_13 = arith.constant 0.000000e+00 : f32
    %17 = vector.broadcast %cst_13 : f32 to vector<2x2944xf32>
    %18 = arith.cmpf ogt, %8, %17 : vector<2x2944xf32>
    %cst_14 = arith.constant 2.000000e-01 : f32
    %19 = vector.broadcast %cst_14 : f32 to vector<2x2944xf32>
    %20 = arith.mulf %19, %8 : vector<2x2944xf32>
    %21 = arith.select %18, %8, %20 : vector<2x2944xi1>, vector<2x2944xf32>
    %c1_15 = arith.constant 1 : index
    %c0_16 = arith.constant 0 : index
    %c0_17 = arith.constant 0 : index
    %22 = vector.load %arg3[%c1_15, %c0_16, %c0_17] : memref<2x2x2944xf32, #tpu.memory_space<vmem>>, vector<1x2x2944xf32>
    %23 = vector.shape_cast %22 : vector<1x2x2944xf32> to vector<2x2944xf32>
    %24 = vector.shape_cast %21 : vector<2x2944xf32> to vector<1x2x2944xf32>
    tpu.vector_store %arg3[%c1_15, %c0_16, %c0_17], %24 {strides = array<i32>} : memref<2x2x2944xf32, #tpu.memory_space<vmem>>, vector<1x2x2944xf32>,
    return
  }
  func.func @transform_0(%arg0: i32) -> (i32, i32) {
    %c0_i32 = arith.constant 0 : i32
    %c0_i32_0 = arith.constant 0 : i32
    %c0_i32_1 = arith.constant 0 : i32
    return %c0_i32, %c0_i32_0 : i32, i32
  }
  func.func @transform_1(%arg0: i32) -> (i32, i32, i32) {
    %c0_i32 = arith.constant 0 : i32
    %c0_i32_0 = arith.constant 0 : i32
    %c0_i32_1 = arith.constant 0 : i32
    return %c0_i32, %c0_i32_0, %arg0 : i32, i32, i32
  }
  func.func @transform_2(%arg0: i32) -> (i32, i32, i32) {
    %c0_i32 = arith.constant 0 : i32
    %c0_i32_0 = arith.constant 0 : i32
    %c0_i32_1 = arith.constant 0 : i32
    return %c0_i32, %c0_i32_0, %arg0 : i32, i32, i32
  }
}

</mosaic_0001>

<llo_original>
// kernel: _run_packed.1
$region0: #{_run_packed.1}
  #allocation0 [shape = 'u32[]', space=smem, size = 0x4, offset = 0x4, fixed_abs, tag = 'smem constant byte address 0x4 - core index']
  #allocation1 [shape = 'u32[72,128]{1,0:T(1,128)}', space=vmem, size = 0x9000, scoped, tag = 'internal scratch']
  %s0 = inlined_call_operand.vmem [shape: bf16[2,129], index: 0, kind: input, shape index: {}]
  %s1 = inlined_call_operand.vmem [shape: bf16[2,129,2944], index: 1, kind: input, shape index: {}]
  %s2 = inlined_call_operand.hbm [shape: f32[2,2,2944], index: 2, kind: output, shape index: {}]
  %s3 = sld [smem:[#allocation0]]
  $region18: #{_run_packed.1} parent=0
    _
  %s5 = ssub.s32 1, %s3
  %s6 = scalar_select 0, %s5, %s3
  $region1: #{_run_packed.1} parent=0
    #allocation2 [shape = 'u8[47104]{0}', space=vmem, size = 0xb800, scoped, tag = 'output window, operand 0, single buffered']
    #allocation3 [shape = 's32[1]{0}', space=sflag, size = 0x4, scoped, tag = 'scoped memory for _run_packed.1']
    %7 = vsyncpa [#allocation3], 0
    // Predicated region
    $region2: #{_run_packed.1} parent=1 // pred_check
      _
    $region3: #{_run_packed.1} parent=1 // pred_check_branch
      %9 = sbr.rel (0) target = $region5
    $region4: #{_run_packed.1} parent=1 // pred_region
      _
    $region5: #{_run_packed.1} parent=1 // pred_fallthru
      _
    // Predicated region
    $region6: #{_run_packed.1} parent=1 // pred_check
      _
    $region7: #{_run_packed.1} parent=1 // pred_check_branch
      %11 = sbr.rel (0) target = $region9
    $region8: #{_run_packed.1} parent=1 // pred_region
      _
    $region9: #{_run_packed.1} parent=1 // pred_fallthru
      _
    %v13 = vld [vmem:[%s0] sm:$0x3]
    %v14 = vunpack.c.l.bf16 %v13
    %v15 = vmax.f32 %v14, 0.0
    %17 = vst [vmem:[#allocation1] ss:$4 sm:$0xff] %v15
    %v18 = vld.sshfl [vmem:[#allocation1] sm:$0xff pattern:$0x73625140]
    %v19 = vld.sshfl [vmem:[#allocation1 + $0x8] sm:$0xff pattern:$0x73625140]
    %v22 = vpack.c.bf16 %v18, %v18
    %v23 = vpack.c.bf16 %v19, %v19
    %v24 = vld [vmem:[%s1] sm:$0xff]
    %v25 = vld [vmem:[%s1 + $0x8] sm:$0xff]
    %v26 = vld [vmem:[%s1 + $0x10] sm:$0xff]
    %v27 = vld [vmem:[%s1 + $0x18] sm:$0xff]
    %v28 = vld [vmem:[%s1 + $0x20] sm:$0xff]
    %v29 = vld [vmem:[%s1 + $0x28] sm:$0xff]
    %v30 = vld [vmem:[%s1 + $0x30] sm:$0xff]
    %v31 = vld [vmem:[%s1 + $0x38] sm:$0xff]
    %v32 = vld [vmem:[%s1 + $0x40] sm:$0xff]
    %v33 = vld [vmem:[%s1 + $0x48] sm:$0xff]
    %v34 = vld [vmem:[%s1 + $0x50] sm:$0xff]
    %v35 = vld [vmem:[%s1 + $0x58] sm:$0xf]
    %v36 = vld [vmem:[%s1 + $0x5c] sm:$0xff]
    %v37 = vld [vmem:[%s1 + $0x64] sm:$0xff]
    %v38 = vld [vmem:[%s1 + $0x6c] sm:$0xff]
    %v39 = vld [vmem:[%s1 + $0x74] sm:$0xff]
    %v40 = vld [vmem:[%s1 + $0x7c] sm:$0xff]
    %v41 = vld [vmem:[%s1 + $0x84] sm:$0xff]
    %v42 = vld [vmem:[%s1 + $0x8c] sm:$0xff]
    %v43 = vld [vmem:[%s1 + $0x94] sm:$0xff]
    %v44 = vld [vmem:[%s1 + $0x9c] sm:$0xff]
    %v45 = vld [vmem:[%s1 + $0xa4] sm:$0xff]
    %v46 = vld [vmem:[%s1 + $0xac] sm:$0xff]
    %v47 = vld [vmem:[%s1 + $0xb4] sm:$0xf]
    %v48 = vld [vmem:[%s1 + $0xb8] sm:$0xff]
    %v49 = vld [vmem:[%s1 + $0xc0] sm:$0xff]
    %v50 = vld [vmem:[%s1 + $0xc8] sm:$0xff]
    %v51 = vld [vmem:[%s1 + $0xd0] sm:$0xff]
    %v52 = vld [vmem:[%s1 + $0xd8] sm:$0xff]
    %v53 = vld [vmem:[%s1 + $0xe0] sm:$0xff]
    %v54 = vld [vmem:[%s1 + $0xe8] sm:$0xff]
    %v55 = vld [vmem:[%s1 + $0xf0] sm:$0xff]
    %v56 = vld [vmem:[%s1 + $0xf8] sm:$0xff]
    %v57 = vld [vmem:[%s1 + $0x100] sm:$0xff]
    %v58 = vld [vmem:[%s1 + $0x108] sm:$0xff]
    %v59 = vld [vmem:[%s1 + $0x110] sm:$0xf]
    %v60 = vld [vmem:[%s1 + $0x114] sm:$0xff]
    %v61 = vld [vmem:[%s1 + $0x11c] sm:$0xff]
    %v62 = vld [vmem:[%s1 + $0x124] sm:$0xff]
    %v63 = vld [vmem:[%s1 + $0x12c] sm:$0xff]
    %v64 = vld [vmem:[%s1 + $0x134] sm:$0xff]
    %v65 = vld [vmem:[%s1 + $0x13c] sm:$0xff]
    %v66 = vld [vmem:[%s1 + $0x144] sm:$0xff]
    %v67 = vld [vmem:[%s1 + $0x14c] sm:$0xff]
    %v68 = vld [vmem:[%s1 + $0x154] sm:$0xff]
    %v69 = vld [vmem:[%s1 + $0x15c] sm:$0xff]
    %v70 = vld [vmem:[%s1 + $0x164] sm:$0xff]
    %v71 = vld [vmem:[%s1 + $0x16c] sm:$0xf]
    %v72 = vld [vmem:[%s1 + $0x170] sm:$0xff]
    %v73 = vld [vmem:[%s1 + $0x178] sm:$0xff]
    %v74 = vld [vmem:[%s1 + $0x180] sm:$0xff]
    %v75 = vld [vmem:[%s1 + $0x188] sm:$0xff]
    %v76 = vld [vmem:[%s1 + $0x190] sm:$0xff]
    %v77 = vld [vmem:[%s1 + $0x198] sm:$0xff]
    %v78 = vld [vmem:[%s1 + $0x1a0] sm:$0xff]
    %v79 = vld [vmem:[%s1 + $0x1a8] sm:$0xff]
    %v80 = vld [vmem:[%s1 + $0x1b0] sm:$0xff]
    %v81 = vld [vmem:[%s1 + $0x1b8] sm:$0xff]
    %v82 = vld [vmem:[%s1 + $0x1c0] sm:$0xff]
    %v83 = vld [vmem:[%s1 + $0x1c8] sm:$0xf]
    %v84 = vld [vmem:[%s1 + $0x1cc] sm:$0xff]
    %v85 = vld [vmem:[%s1 + $0x1d4] sm:$0xff]
    %v86 = vld [vmem:[%s1 + $0x1dc] sm:$0xff]
    %v87 = vld [vmem:[%s1 + $0x1e4] sm:$0xff]
    %v88 = vld [vmem:[%s1 + $0x1ec] sm:$0xff]
    %v89 = vld [vmem:[%s1 + $0x1f4] sm:$0xff]
    %v90 = vld [vmem:[%s1 + $0x1fc] sm:$0xff]
    %v91 = vld [vmem:[%s1 + $0x204] sm:$0xff]
    %v92 = vld [vmem:[%s1 + $0x20c] sm:$0xff]
    %v93 = vld [vmem:[%s1 + $0x214] sm:$0xff]
    %v94 = vld [vmem:[%s1 + $0x21c] sm:$0xff]
    %v95 = vld [vmem:[%s1 + $0x224] sm:$0xf]
    %v96 = vld [vmem:[%s1 + $0x228] sm:$0xff]
    %v97 = vld [vmem:[%s1 + $0x230] sm:$0xff]
    %v98 = vld [vmem:[%s1 + $0x238] sm:$0xff]
    %v99 = vld [vmem:[%s1 + $0x240] sm:$0xff]
    %v100 = vld [vmem:[%s1 + $0x248] sm:$0xff]
    %v101 = vld [vmem:[%s1 + $0x250] sm:$0xff]
    %v102 = vld [vmem:[%s1 + $0x258] sm:$0xff]
    %v103 = vld [vmem:[%s1 + $0x260] sm:$0xff]
    %v104 = vld [vmem:[%s1 + $0x268] sm:$0xff]
    %v105 = vld [vmem:[%s1 + $0x270] sm:$0xff]
    %v106 = vld [vmem:[%s1 + $0x278] sm:$0xff]
    %v107 = vld [vmem:[%s1 + $0x280] sm:$0xf]
    %v108 = vld [vmem:[%s1 + $0x284] sm:$0xff]
    %v109 = vld [vmem:[%s1 + $0x28c] sm:$0xff]
    %v110 = vld [vmem:[%s1 + $0x294] sm:$0xff]
    %v111 = vld [vmem:[%s1 + $0x29c] sm:$0xff]
    %v112 = vld [vmem:[%s1 + $0x2a4] sm:$0xff]
    %v113 = vld [vmem:[%s1 + $0x2ac] sm:$0xff]
    %v114 = vld [vmem:[%s1 + $0x2b4] sm:$0xff]
    %v115 = vld [vmem:[%s1 + $0x2bc] sm:$0xff]
    %v116 = vld [vmem:[%s1 + $0x2c4] sm:$0xff]
    %v117 = vld [vmem:[%s1 + $0x2cc] sm:$0xff]
    %v118 = vld [vmem:[%s1 + $0x2d4] sm:$0xff]
    %v119 = vld [vmem:[%s1 + $0x2dc] sm:$0xf]
    %v120 = vld [vmem:[%s1 + $0x2e0] sm:$0xff]
    %v121 = vld [vmem:[%s1 + $0x2e8] sm:$0xff]
    %v122 = vld [vmem:[%s1 + $0x2f0] sm:$0xff]
    %v123 = vld [vmem:[%s1 + $0x2f8] sm:$0xff]
    %v124 = vld [vmem:[%s1 + $0x300] sm:$0xff]
    %v125 = vld [vmem:[%s1 + $0x308] sm:$0xff]
    %v126 = vld [vmem:[%s1 + $0x310] sm:$0xff]
    %v127 = vld [vmem:[%s1 + $0x318] sm:$0xff]
    %v128 = vld [vmem:[%s1 + $0x320] sm:$0xff]
    %v129 = vld [vmem:[%s1 + $0x328] sm:$0xff]
    %v130 = vld [vmem:[%s1 + $0x330] sm:$0xff]
    %v131 = vld [vmem:[%s1 + $0x338] sm:$0xf]
    %v132 = vld [vmem:[%s1 + $0x33c] sm:$0xff]
    %v133 = vld [vmem:[%s1 + $0x344] sm:$0xff]
    %v134 = vld [vmem:[%s1 + $0x34c] sm:$0xff]
    %v135 = vld [vmem:[%s1 + $0x354] sm:$0xff]
    %v136 = vld [vmem:[%s1 + $0x35c] sm:$0xff]
    %v137 = vld [vmem:[%s1 + $0x364] sm:$0xff]
    %v138 = vld [vmem:[%s1 + $0x36c] sm:$0xff]
    %v139 = vld [vmem:[%s1 + $0x374] sm:$0xff]
    %v140 = vld [vmem:[%s1 + $0x37c] sm:$0xff]
    %v141 = vld [vmem:[%s1 + $0x384] sm:$0xff]
    %v142 = vld [vmem:[%s1 + $0x38c] sm:$0xff]
    %v143 = vld [vmem:[%s1 + $0x394] sm:$0xf]
    %v144 = vld [vmem:[%s1 + $0x398] sm:$0xff]
    %v145 = vld [vmem:[%s1 + $0x3a0] sm:$0xff]
    %v146 = vld [vmem:[%s1 + $0x3a8] sm:$0xff]
    %v147 = vld [vmem:[%s1 + $0x3b0] sm:$0xff]
    %v148 = vld [vmem:[%s1 + $0x3b8] sm:$0xff]
    %v149 = vld [vmem:[%s1 + $0x3c0] sm:$0xff]
    %v150 = vld [vmem:[%s1 + $0x3c8] sm:$0xff]
    %v151 = vld [vmem:[%s1 + $0x3d0] sm:$0xff]
    %v152 = vld [vmem:[%s1 + $0x3d8] sm:$0xff]
    %v153 = vld [vmem:[%s1 + $0x3e0] sm:$0xff]
    %v154 = vld [vmem:[%s1 + $0x3e8] sm:$0xff]
    %v155 = vld [vmem:[%s1 + $0x3f0] sm:$0xf]
    %v156 = vld [vmem:[%s1 + $0x3f4] sm:$0xff]
    %v157 = vld [vmem:[%s1 + $0x3fc] sm:$0xff]
    %v158 = vld [vmem:[%s1 + $0x404] sm:$0xff]
    %v159 = vld [vmem:[%s1 + $0x40c] sm:$0xff]
    %v160 = vld [vmem:[%s1 + $0x414] sm:$0xff]
    %v161 = vld [vmem:[%s1 + $0x41c] sm:$0xff]
    %v162 = vld [vmem:[%s1 + $0x424] sm:$0xff]
    %v163 = vld [vmem:[%s1 + $0x42c] sm:$0xff]
    %v164 = vld [vmem:[%s1 + $0x434] sm:$0xff]
    %v165 = vld [vmem:[%s1 + $0x43c] sm:$0xff]
    %v166 = vld [vmem:[%s1 + $0x444] sm:$0xff]
    %v167 = vld [vmem:[%s1 + $0x44c] sm:$0xf]
    %v168 = vld [vmem:[%s1 + $0x450] sm:$0xff]
    %v169 = vld [vmem:[%s1 + $0x458] sm:$0xff]
    %v170 = vld [vmem:[%s1 + $0x460] sm:$0xff]
    %v171 = vld [vmem:[%s1 + $0x468] sm:$0xff]
    %v172 = vld [vmem:[%s1 + $0x470] sm:$0xff]
    %v173 = vld [vmem:[%s1 + $0x478] sm:$0xff]
    %v174 = vld [vmem:[%s1 + $0x480] sm:$0xff]
    %v175 = vld [vmem:[%s1 + $0x488] sm:$0xff]
    %v176 = vld [vmem:[%s1 + $0x490] sm:$0xff]
    %v177 = vld [vmem:[%s1 + $0x498] sm:$0xff]
    %v178 = vld [vmem:[%s1 + $0x4a0] sm:$0xff]
    %v179 = vld [vmem:[%s1 + $0x4a8] sm:$0xf]
    %v180 = vld [vmem:[%s1 + $0x4ac] sm:$0xff]
    %v181 = vld [vmem:[%s1 + $0x4b4] sm:$0xff]
    %v182 = vld [vmem:[%s1 + $0x4bc] sm:$0xff]
    %v183 = vld [vmem:[%s1 + $0x4c4] sm:$0xff]
    %v184 = vld [vmem:[%s1 + $0x4cc] sm:$0xff]
    %v185 = vld [vmem:[%s1 + $0x4d4] sm:$0xff]
    %v186 = vld [vmem:[%s1 + $0x4dc] sm:$0xff]
    %v187 = vld [vmem:[%s1 + $0x4e4] sm:$0xff]
    %v188 = vld [vmem:[%s1 + $0x4ec] sm:$0xff]
    %v189 = vld [vmem:[%s1 + $0x4f4] sm:$0xff]
    %v190 = vld [vmem:[%s1 + $0x4fc] sm:$0xff]
    %v191 = vld [vmem:[%s1 + $0x504] sm:$0xf]
    %v192 = vld [vmem:[%s1 + $0x508] sm:$0xff]
    %v193 = vld [vmem:[%s1 + $0x510] sm:$0xff]
    %v194 = vld [vmem:[%s1 + $0x518] sm:$0xff]
    %v195 = vld [vmem:[%s1 + $0x520] sm:$0xff]
    %v196 = vld [vmem:[%s1 + $0x528] sm:$0xff]
    %v197 = vld [vmem:[%s1 + $0x530] sm:$0xff]
    %v198 = vld [vmem:[%s1 + $0x538] sm:$0xff]
    %v199 = vld [vmem:[%s1 + $0x540] sm:$0xff]
    %v200 = vld [vmem:[%s1 + $0x548] sm:$0xff]
    %v201 = vld [vmem:[%s1 + $0x550] sm:$0xff]
    %v202 = vld [vmem:[%s1 + $0x558] sm:$0xff]
    %v203 = vld [vmem:[%s1 + $0x560] sm:$0xf]
    %v204 = vld [vmem:[%s1 + $0x564] sm:$0xff]
    %v205 = vld [vmem:[%s1 + $0x56c] sm:$0xff]
    %v206 = vld [vmem:[%s1 + $0x574] sm:$0xff]
    %v207 = vld [vmem:[%s1 + $0x57c] sm:$0xff]
    %v208 = vld [vmem:[%s1 + $0x584] sm:$0xff]
    %v209 = vld [vmem:[%s1 + $0x58c] sm:$0xff]
    %v210 = vld [vmem:[%s1 + $0x594] sm:$0xff]
    %v211 = vld [vmem:[%s1 + $0x59c] sm:$0xff]
    %v212 = vld [vmem:[%s1 + $0x5a4] sm:$0xff]
    %v213 = vld [vmem:[%s1 + $0x5ac] sm:$0xff]
    %v214 = vld [vmem:[%s1 + $0x5b4] sm:$0xff]
    %v215 = vld [vmem:[%s1 + $0x5bc] sm:$0xf]
    %v216 = vld [vmem:[%s1 + $0x5c0] sm:$0x11]
    %v217 = vld [vmem:[%s1 + $0x5c8] sm:$0x11]
    %v218 = vld [vmem:[%s1 + $0x5d0] sm:$0x11]
    %v219 = vld [vmem:[%s1 + $0x5d8] sm:$0x11]
    %v220 = vld [vmem:[%s1 + $0x5e0] sm:$0x11]
    %v221 = vld [vmem:[%s1 + $0x5e8] sm:$0x11]
    %v222 = vld [vmem:[%s1 + $0x5f0] sm:$0x11]
    %v223 = vld [vmem:[%s1 + $0x5f8] sm:$0x11]
    %v224 = vld [vmem:[%s1 + $0x600] sm:$0x11]
    %v225 = vld [vmem:[%s1 + $0x608] sm:$0x11]
    %v226 = vld [vmem:[%s1 + $0x610] sm:$0x11]
    %v227 = vld [vmem:[%s1 + $0x618] sm:$0x1]
    %229 = vst [vmem:[#allocation1] ss:$9 sm:$0xff] %v13
    %v230 = vld [vmem:[#allocation1] sm:$0xff]
    %v231 = vld [vmem:[#allocation1 + $0x9] sm:$0xff]
    %v437 = vunpack.c.l.b16 %v24
    %v438 = vunpack.c.h.b16 %v24
    %v439 = vunpack.c.l.b16 %v25
    %v440 = vunpack.c.h.b16 %v25
    %v441 = vunpack.c.l.b16 %v26
    %v442 = vunpack.c.h.b16 %v26
    %v443 = vunpack.c.l.b16 %v27
    %v444 = vunpack.c.h.b16 %v27
    %v445 = vunpack.c.l.b16 %v28
    %v446 = vunpack.c.h.b16 %v28
    %v447 = vunpack.c.l.b16 %v29
    %v448 = vunpack.c.h.b16 %v29
    %v449 = vunpack.c.l.b16 %v30
    %v450 = vunpack.c.h.b16 %v30
    %v451 = vunpack.c.l.b16 %v31
    %v452 = vunpack.c.h.b16 %v31
    %v453 = vunpack.c.l.b16 %v32
    %v454 = vunpack.c.h.b16 %v32
    %v455 = vunpack.c.l.b16 %v33
    %v456 = vunpack.c.h.b16 %v33
    %v457 = vunpack.c.l.b16 %v34
    %v458 = vunpack.c.h.b16 %v34
    %v459 = vunpack.c.l.b16 %v35
    %v460 = vunpack.c.l.b16 %v36
    %v461 = vunpack.c.h.b16 %v36
    %v462 = vunpack.c.l.b16 %v37
    %v463 = vunpack.c.h.b16 %v37
    %v464 = vunpack.c.l.b16 %v38
    %v465 = vunpack.c.h.b16 %v38
    %v466 = vunpack.c.l.b16 %v39
    %v467 = vunpack.c.h.b16 %v39
    %v468 = vunpack.c.l.b16 %v40
    %v469 = vunpack.c.h.b16 %v40
    %v470 = vunpack.c.l.b16 %v41
    %v471 = vunpack.c.h.b16 %v41
    %v472 = vunpack.c.l.b16 %v42
    %v473 = vunpack.c.h.b16 %v42
    %v474 = vunpack.c.l.b16 %v43
    %v475 = vunpack.c.h.b16 %v43
    %v476 = vunpack.c.l.b16 %v44
    %v477 = vunpack.c.h.b16 %v44
    %v478 = vunpack.c.l.b16 %v45
    %v479 = vunpack.c.h.b16 %v45
    %v480 = vunpack.c.l.b16 %v46
    %v481 = vunpack.c.h.b16 %v46
    %v482 = vunpack.c.l.b16 %v47
    %v483 = vunpack.c.l.b16 %v48
    %v484 = vunpack.c.h.b16 %v48
    %v485 = vunpack.c.l.b16 %v49
    %v486 = vunpack.c.h.b16 %v49
    %v487 = vunpack.c.l.b16 %v50
    %v488 = vunpack.c.h.b16 %v50
    %v489 = vunpack.c.l.b16 %v51
    %v490 = vunpack.c.h.b16 %v51
    %v491 = vunpack.c.l.b16 %v52
    %v492 = vunpack.c.h.b16 %v52
    %v493 = vunpack.c.l.b16 %v53
    %v494 = vunpack.c.h.b16 %v53
    %v495 = vunpack.c.l.b16 %v54
    %v496 = vunpack.c.h.b16 %v54
    %v497 = vunpack.c.l.b16 %v55
    %v498 = vunpack.c.h.b16 %v55
    %v499 = vunpack.c.l.b16 %v56
    %v500 = vunpack.c.h.b16 %v56
    %v501 = vunpack.c.l.b16 %v57
    %v502 = vunpack.c.h.b16 %v57
    %v503 = vunpack.c.l.b16 %v58
    %v504 = vunpack.c.h.b16 %v58
    %v505 = vunpack.c.l.b16 %v59
    %v506 = vunpack.c.l.b16 %v60
    %v507 = vunpack.c.h.b16 %v60
    %v508 = vunpack.c.l.b16 %v61
    %v509 = vunpack.c.h.b16 %v61
    %v510 = vunpack.c.l.b16 %v62
    %v511 = vunpack.c.h.b16 %v62
    %v512 = vunpack.c.l.b16 %v63
    %v513 = vunpack.c.h.b16 %v63
    %v514 = vunpack.c.l.b16 %v64
    %v515 = vunpack.c.h.b16 %v64
    %v516 = vunpack.c.l.b16 %v65
    %v517 = vunpack.c.h.b16 %v65
    %v518 = vunpack.c.l.b16 %v66
    %v519 = vunpack.c.h.b16 %v66
    %v520 = vunpack.c.l.b16 %v67
    %v521 = vunpack.c.h.b16 %v67
    %v522 = vunpack.c.l.b16 %v68
    %v523 = vunpack.c.h.b16 %v68
    %v524 = vunpack.c.l.b16 %v69
    %v525 = vunpack.c.h.b16 %v69
    %v526 = vunpack.c.l.b16 %v70
    %v527 = vunpack.c.h.b16 %v70
    %v528 = vunpack.c.l.b16 %v71
    %v529 = vunpack.c.l.b16 %v72
    %v530 = vunpack.c.h.b16 %v72
    %v531 = vunpack.c.l.b16 %v73
    %v532 = vunpack.c.h.b16 %v73
    %v533 = vunpack.c.l.b16 %v74
    %v534 = vunpack.c.h.b16 %v74
    %v535 = vunpack.c.l.b16 %v75
    %v536 = vunpack.c.h.b16 %v75
    %v537 = vunpack.c.l.b16 %v76
    %v538 = vunpack.c.h.b16 %v76
    %v539 = vunpack.c.l.b16 %v77
    %v540 = vunpack.c.h.b16 %v77
    %v541 = vunpack.c.l.b16 %v78
    %v542 = vunpack.c.h.b16 %v78
    %v543 = vunpack.c.l.b16 %v79
    %v544 = vunpack.c.h.b16 %v79
    %v545 = vunpack.c.l.b16 %v80
    %v546 = vunpack.c.h.b16 %v80
    %v547 = vunpack.c.l.b16 %v81
    %v548 = vunpack.c.h.b16 %v81
    %v549 = vunpack.c.l.b16 %v82
    %v550 = vunpack.c.h.b16 %v82
    %v551 = vunpack.c.l.b16 %v83
    %v552 = vunpack.c.l.b16 %v84
    %v553 = vunpack.c.h.b16 %v84
    %v554 = vunpack.c.l.b16 %v85
    %v555 = vunpack.c.h.b16 %v85
    %v556 = vunpack.c.l.b16 %v86
    %v557 = vunpack.c.h.b16 %v86
    %v558 = vunpack.c.l.b16 %v87
    %v559 = vunpack.c.h.b16 %v87
    %v560 = vunpack.c.l.b16 %v88
    %v561 = vunpack.c.h.b16 %v88
    %v562 = vunpack.c.l.b16 %v89
    %v563 = vunpack.c.h.b16 %v89
    %v564 = vunpack.c.l.b16 %v90
    %v565 = vunpack.c.h.b16 %v90
    %v566 = vunpack.c.l.b16 %v91
    %v567 = vunpack.c.h.b16 %v91
    %v568 = vunpack.c.l.b16 %v92
    %v569 = vunpack.c.h.b16 %v92
    %v570 = vunpack.c.l.b16 %v93
    %v571 = vunpack.c.h.b16 %v93
    %v572 = vunpack.c.l.b16 %v94
    %v573 = vunpack.c.h.b16 %v94
    %v574 = vunpack.c.l.b16 %v95
    %v575 = vunpack.c.l.b16 %v96
    %v576 = vunpack.c.h.b16 %v96
    %v577 = vunpack.c.l.b16 %v97
    %v578 = vunpack.c.h.b16 %v97
    %v579 = vunpack.c.l.b16 %v98
    %v580 = vunpack.c.h.b16 %v98
    %v581 = vunpack.c.l.b16 %v99
    %v582 = vunpack.c.h.b16 %v99
    %v583 = vunpack.c.l.b16 %v100
    %v584 = vunpack.c.h.b16 %v100
    %v585 = vunpack.c.l.b16 %v101
    %v586 = vunpack.c.h.b16 %v101
    %v587 = vunpack.c.l.b16 %v102
    %v588 = vunpack.c.h.b16 %v102
    %v589 = vunpack.c.l.b16 %v103
    %v590 = vunpack.c.h.b16 %v103
    %v591 = vunpack.c.l.b16 %v104
    %v592 = vunpack.c.h.b16 %v104
    %v593 = vunpack.c.l.b16 %v105
    %v594 = vunpack.c.h.b16 %v105
    %v595 = vunpack.c.l.b16 %v106
    %v596 = vunpack.c.h.b16 %v106
    %v597 = vunpack.c.l.b16 %v107
    %v598 = vunpack.c.l.b16 %v108
    %v599 = vunpack.c.h.b16 %v108
    %v600 = vunpack.c.l.b16 %v109
    %v601 = vunpack.c.h.b16 %v109
    %v602 = vunpack.c.l.b16 %v110
    %v603 = vunpack.c.h.b16 %v110
    %v604 = vunpack.c.l.b16 %v111
    %v605 = vunpack.c.h.b16 %v111
    %v606 = vunpack.c.l.b16 %v112
    %v607 = vunpack.c.h.b16 %v112
    %v608 = vunpack.c.l.b16 %v113
    %v609 = vunpack.c.h.b16 %v113
    %v610 = vunpack.c.l.b16 %v114
    %v611 = vunpack.c.h.b16 %v114
    %v612 = vunpack.c.l.b16 %v115
    %v613 = vunpack.c.h.b16 %v115
    %v614 = vunpack.c.l.b16 %v116
    %v615 = vunpack.c.h.b16 %v116
    %v616 = vunpack.c.l.b16 %v117
    %v617 = vunpack.c.h.b16 %v117
    %v618 = vunpack.c.l.b16 %v118
    %v619 = vunpack.c.h.b16 %v118
    %v620 = vunpack.c.l.b16 %v119
    %v621 = vunpack.c.l.b16 %v120
    %v622 = vunpack.c.h.b16 %v120
    %v623 = vunpack.c.l.b16 %v121
    %v624 = vunpack.c.h.b16 %v121
    %v625 = vunpack.c.l.b16 %v122
    %v626 = vunpack.c.h.b16 %v122
    %v627 = vunpack.c.l.b16 %v123
    %v628 = vunpack.c.h.b16 %v123
    %v629 = vunpack.c.l.b16 %v124
    %v630 = vunpack.c.h.b16 %v124
    %v631 = vunpack.c.l.b16 %v125
    %v632 = vunpack.c.h.b16 %v125
    %v633 = vunpack.c.l.b16 %v126
    %v634 = vunpack.c.h.b16 %v126
    %v635 = vunpack.c.l.b16 %v127
    %v636 = vunpack.c.h.b16 %v127
    %v637 = vunpack.c.l.b16 %v128
    %v638 = vunpack.c.h.b16 %v128
    %v639 = vunpack.c.l.b16 %v129
    %v640 = vunpack.c.h.b16 %v129
    %v641 = vunpack.c.l.b16 %v130
    %v642 = vunpack.c.h.b16 %v130
    %v643 = vunpack.c.l.b16 %v131
    %v644 = vunpack.c.l.b16 %v132
    %v645 = vunpack.c.h.b16 %v132
    %v646 = vunpack.c.l.b16 %v133
    %v647 = vunpack.c.h.b16 %v133
    %v648 = vunpack.c.l.b16 %v134
    %v649 = vunpack.c.h.b16 %v134
    %v650 = vunpack.c.l.b16 %v135
    %v651 = vunpack.c.h.b16 %v135
    %v652 = vunpack.c.l.b16 %v136
    %v653 = vunpack.c.h.b16 %v136
    %v654 = vunpack.c.l.b16 %v137
    %v655 = vunpack.c.h.b16 %v137
    %v656 = vunpack.c.l.b16 %v138
    %v657 = vunpack.c.h.b16 %v138
    %v658 = vunpack.c.l.b16 %v139
    %v659 = vunpack.c.h.b16 %v139
    %v660 = vunpack.c.l.b16 %v140
    %v661 = vunpack.c.h.b16 %v140
    %v662 = vunpack.c.l.b16 %v141
    %v663 = vunpack.c.h.b16 %v141
    %v664 = vunpack.c.l.b16 %v142
    %v665 = vunpack.c.h.b16 %v142
    %v666 = vunpack.c.l.b16 %v143
    %v667 = vunpack.c.l.b16 %v144
    %v668 = vunpack.c.h.b16 %v144
    %v669 = vunpack.c.l.b16 %v145
    %v670 = vunpack.c.h.b16 %v145
    %v671 = vunpack.c.l.b16 %v146
    %v672 = vunpack.c.h.b16 %v146
    %v673 = vunpack.c.l.b16 %v147
    %v674 = vunpack.c.h.b16 %v147
    %v675 = vunpack.c.l.b16 %v148
    %v676 = vunpack.c.h.b16 %v148
    %v677 = vunpack.c.l.b16 %v149
    %v678 = vunpack.c.h.b16 %v149
    %v679 = vunpack.c.l.b16 %v150
    %v680 = vunpack.c.h.b16 %v150
    %v681 = vunpack.c.l.b16 %v151
    %v682 = vunpack.c.h.b16 %v151
    %v683 = vunpack.c.l.b16 %v152
    %v684 = vunpack.c.h.b16 %v152
    %v685 = vunpack.c.l.b16 %v153
    %v686 = vunpack.c.h.b16 %v153
    %v687 = vunpack.c.l.b16 %v154
    %v688 = vunpack.c.h.b16 %v154
    %v689 = vunpack.c.l.b16 %v155
    %v690 = vunpack.c.l.b16 %v156
    %v691 = vunpack.c.h.b16 %v156
    %v692 = vunpack.c.l.b16 %v157
    %v693 = vunpack.c.h.b16 %v157
    %v694 = vunpack.c.l.b16 %v158
    %v695 = vunpack.c.h.b16 %v158
    %v696 = vunpack.c.l.b16 %v159
    %v697 = vunpack.c.h.b16 %v159
    %v698 = vunpack.c.l.b16 %v160
    %v699 = vunpack.c.h.b16 %v160
    %v700 = vunpack.c.l.b16 %v161
    %v701 = vunpack.c.h.b16 %v161
    %v702 = vunpack.c.l.b16 %v162
    %v703 = vunpack.c.h.b16 %v162
    %v704 = vunpack.c.l.b16 %v163
    %v705 = vunpack.c.h.b16 %v163
    %v706 = vunpack.c.l.b16 %v164
    %v707 = vunpack.c.h.b16 %v164
    %v708 = vunpack.c.l.b16 %v165
    %v709 = vunpack.c.h.b16 %v165
    %v710 = vunpack.c.l.b16 %v166
    %v711 = vunpack.c.h.b16 %v166
    %v712 = vunpack.c.l.b16 %v167
    %v713 = vunpack.c.l.b16 %v168
    %v714 = vunpack.c.h.b16 %v168
    %v715 = vunpack.c.l.b16 %v169
    %v716 = vunpack.c.h.b16 %v169
    %v717 = vunpack.c.l.b16 %v170
    %v718 = vunpack.c.h.b16 %v170
    %v719 = vunpack.c.l.b16 %v171
    %v720 = vunpack.c.h.b16 %v171
    %v721 = vunpack.c.l.b16 %v172
    %v722 = vunpack.c.h.b16 %v172
    %v723 = vunpack.c.l.b16 %v173
    %v724 = vunpack.c.h.b16 %v173
    %v725 = vunpack.c.l.b16 %v174
    %v726 = vunpack.c.h.b16 %v174
    %v727 = vunpack.c.l.b16 %v175
    %v728 = vunpack.c.h.b16 %v175
    %v729 = vunpack.c.l.b16 %v176
    %v730 = vunpack.c.h.b16 %v176
    %v731 = vunpack.c.l.b16 %v177
    %v732 = vunpack.c.h.b16 %v177
    %v733 = vunpack.c.l.b16 %v178
    %v734 = vunpack.c.h.b16 %v178
    %v735 = vunpack.c.l.b16 %v179
    %v736 = vunpack.c.l.b16 %v180
    %v737 = vunpack.c.h.b16 %v180
    %v738 = vunpack.c.l.b16 %v181
    %v739 = vunpack.c.h.b16 %v181
    %v740 = vunpack.c.l.b16 %v182
    %v741 = vunpack.c.h.b16 %v182
    %v742 = vunpack.c.l.b16 %v183
    %v743 = vunpack.c.h.b16 %v183
    %v744 = vunpack.c.l.b16 %v184
    %v745 = vunpack.c.h.b16 %v184
    %v746 = vunpack.c.l.b16 %v185
    %v747 = vunpack.c.h.b16 %v185
    %v748 = vunpack.c.l.b16 %v186
    %v749 = vunpack.c.h.b16 %v186
    %v750 = vunpack.c.l.b16 %v187
    %v751 = vunpack.c.h.b16 %v187
    %v752 = vunpack.c.l.b16 %v188
    %v753 = vunpack.c.h.b16 %v188
    %v754 = vunpack.c.l.b16 %v189
    %v755 = vunpack.c.h.b16 %v189
    %v756 = vunpack.c.l.b16 %v190
    %v757 = vunpack.c.h.b16 %v190
    %v758 = vunpack.c.l.b16 %v191
    %v759 = vunpack.c.l.b16 %v192
    %v760 = vunpack.c.h.b16 %v192
    %v761 = vunpack.c.l.b16 %v193
    %v762 = vunpack.c.h.b16 %v193
    %v763 = vunpack.c.l.b16 %v194
    %v764 = vunpack.c.h.b16 %v194
    %v765 = vunpack.c.l.b16 %v195
    %v766 = vunpack.c.h.b16 %v195
    %v767 = vunpack.c.l.b16 %v196
    %v768 = vunpack.c.h.b16 %v196
    %v769 = vunpack.c.l.b16 %v197
    %v770 = vunpack.c.h.b16 %v197
    %v771 = vunpack.c.l.b16 %v198
    %v772 = vunpack.c.h.b16 %v198
    %v773 = vunpack.c.l.b16 %v199
    %v774 = vunpack.c.h.b16 %v199
    %v775 = vunpack.c.l.b16 %v200
    %v776 = vunpack.c.h.b16 %v200
    %v777 = vunpack.c.l.b16 %v201
    %v778 = vunpack.c.h.b16 %v201
    %v779 = vunpack.c.l.b16 %v202
    %v780 = vunpack.c.h.b16 %v202
    %v781 = vunpack.c.l.b16 %v203
    %v782 = vunpack.c.l.b16 %v204
    %v783 = vunpack.c.h.b16 %v204
    %v784 = vunpack.c.l.b16 %v205
    %v785 = vunpack.c.h.b16 %v205
    %v786 = vunpack.c.l.b16 %v206
    %v787 = vunpack.c.h.b16 %v206
    %v788 = vunpack.c.l.b16 %v207
    %v789 = vunpack.c.h.b16 %v207
    %v790 = vunpack.c.l.b16 %v208
    %v791 = vunpack.c.h.b16 %v208
    %v792 = vunpack.c.l.b16 %v209
    %v793 = vunpack.c.h.b16 %v209
    %v794 = vunpack.c.l.b16 %v210
    %v795 = vunpack.c.h.b16 %v210
    %v796 = vunpack.c.l.b16 %v211
    %v797 = vunpack.c.h.b16 %v211
    %v798 = vunpack.c.l.b16 %v212
    %v799 = vunpack.c.h.b16 %v212
    %v800 = vunpack.c.l.b16 %v213
    %v801 = vunpack.c.h.b16 %v213
    %v802 = vunpack.c.l.b16 %v214
    %v803 = vunpack.c.h.b16 %v214
    %v804 = vunpack.c.l.b16 %v215
    %v805 = vunpack.c.l.b16 %v216
    %v806 = vunpack.c.h.b16 %v216
    %v807 = vunpack.c.l.b16 %v217
    %v808 = vunpack.c.h.b16 %v217
    %v809 = vunpack.c.l.b16 %v218
    %v810 = vunpack.c.h.b16 %v218
    %v811 = vunpack.c.l.b16 %v219
    %v812 = vunpack.c.h.b16 %v219
    %v813 = vunpack.c.l.b16 %v220
    %v814 = vunpack.c.h.b16 %v220
    %v815 = vunpack.c.l.b16 %v221
    %v816 = vunpack.c.h.b16 %v221
    %v817 = vunpack.c.l.b16 %v222
    %v818 = vunpack.c.h.b16 %v222
    %v819 = vunpack.c.l.b16 %v223
    %v820 = vunpack.c.h.b16 %v223
    %v821 = vunpack.c.l.b16 %v224
    %v822 = vunpack.c.h.b16 %v224
    %v823 = vunpack.c.l.b16 %v225
    %v824 = vunpack.c.h.b16 %v225
    %v825 = vunpack.c.l.b16 %v226
    %v826 = vunpack.c.h.b16 %v226
    %v827 = vunpack.c.l.b16 %v227
    %v828 = vpack.c.b16 %v460, %v437
    %v829 = vpack.c.b16 %v461, %v438
    %v830 = vpack.c.b16 %v462, %v439
    %v831 = vpack.c.b16 %v463, %v440
    %v832 = vpack.c.b16 %v464, %v441
    %v833 = vpack.c.b16 %v465, %v442
    %v834 = vpack.c.b16 %v466, %v443
    %v835 = vpack.c.b16 %v467, %v444
    %v836 = vpack.c.b16 %v468, %v445
    %v837 = vpack.c.b16 %v469, %v446
    %v838 = vpack.c.b16 %v470, %v447
    %v839 = vpack.c.b16 %v471, %v448
    %v840 = vpack.c.b16 %v472, %v449
    %v841 = vpack.c.b16 %v473, %v450
    %v842 = vpack.c.b16 %v474, %v451
    %v843 = vpack.c.b16 %v475, %v452
    %v844 = vpack.c.b16 %v476, %v453
    %v845 = vpack.c.b16 %v477, %v454
    %v846 = vpack.c.b16 %v478, %v455
    %v847 = vpack.c.b16 %v479, %v456
    %v848 = vpack.c.b16 %v480, %v457
    %v849 = vpack.c.b16 %v481, %v458
    %v850 = vpack.c.b16 %v482, %v459
    %v851 = vpack.c.b16 %v506, %v483
    %v852 = vpack.c.b16 %v507, %v484
    %v853 = vpack.c.b16 %v508, %v485
    %v854 = vpack.c.b16 %v509, %v486
    %v855 = vpack.c.b16 %v510, %v487
    %v856 = vpack.c.b16 %v511, %v488
    %v857 = vpack.c.b16 %v512, %v489
    %v858 = vpack.c.b16 %v513, %v490
    %v859 = vpack.c.b16 %v514, %v491
    %v860 = vpack.c.b16 %v515, %v492
    %v861 = vpack.c.b16 %v516, %v493
    %v862 = vpack.c.b16 %v517, %v494
    %v863 = vpack.c.b16 %v518, %v495
    %v864 = vpack.c.b16 %v519, %v496
    %v865 = vpack.c.b16 %v520, %v497
    %v866 = vpack.c.b16 %v521, %v498
    %v867 = vpack.c.b16 %v522, %v499
    %v868 = vpack.c.b16 %v523, %v500
    %v869 = vpack.c.b16 %v524, %v501
    %v870 = vpack.c.b16 %v525, %v502
    %v871 = vpack.c.b16 %v526, %v503
    %v872 = vpack.c.b16 %v527, %v504
    %v873 = vpack.c.b16 %v528, %v505
    %v874 = vpack.c.b16 %v552, %v529
    %v875 = vpack.c.b16 %v553, %v530
    %v876 = vpack.c.b16 %v554, %v531
    %v877 = vpack.c.b16 %v555, %v532
    %v878 = vpack.c.b16 %v556, %v533
    %v879 = vpack.c.b16 %v557, %v534
    %v880 = vpack.c.b16 %v558, %v535
    %v881 = vpack.c.b16 %v559, %v536
    %v882 = vpack.c.b16 %v560, %v537
    %v883 = vpack.c.b16 %v561, %v538
    %v884 = vpack.c.b16 %v562, %v539
    %v885 = vpack.c.b16 %v563, %v540
    %v886 = vpack.c.b16 %v564, %v541
    %v887 = vpack.c.b16 %v565, %v542
    %v888 = vpack.c.b16 %v566, %v543
    %v889 = vpack.c.b16 %v567, %v544
    %v890 = vpack.c.b16 %v568, %v545
    %v891 = vpack.c.b16 %v569, %v546
    %v892 = vpack.c.b16 %v570, %v547
    %v893 = vpack.c.b16 %v571, %v548
    %v894 = vpack.c.b16 %v572, %v549
    %v895 = vpack.c.b16 %v573, %v550
    %v896 = vpack.c.b16 %v574, %v551
    %v897 = vpack.c.b16 %v598, %v575
    %v898 = vpack.c.b16 %v599, %v576
    %v899 = vpack.c.b16 %v600, %v577
    %v900 = vpack.c.b16 %v601, %v578
    %v901 = vpack.c.b16 %v602, %v579
    %v902 = vpack.c.b16 %v603, %v580
    %v903 = vpack.c.b16 %v604, %v581
    %v904 = vpack.c.b16 %v605, %v582
    %v905 = vpack.c.b16 %v606, %v583
    %v906 = vpack.c.b16 %v607, %v584
    %v907 = vpack.c.b16 %v608, %v585
    %v908 = vpack.c.b16 %v609, %v586
    %v909 = vpack.c.b16 %v610, %v587
    %v910 = vpack.c.b16 %v611, %v588
    %v911 = vpack.c.b16 %v612, %v589
    %v912 = vpack.c.b16 %v613, %v590
    %v913 = vpack.c.b16 %v614, %v591
    %v914 = vpack.c.b16 %v615, %v592
    %v915 = vpack.c.b16 %v616, %v593
    %v916 = vpack.c.b16 %v617, %v594
    %v917 = vpack.c.b16 %v618, %v595
    %v918 = vpack.c.b16 %v619, %v596
    %v919 = vpack.c.b16 %v620, %v597
    %v920 = vpack.c.b16 %v644, %v621
    %v921 = vpack.c.b16 %v645, %v622
    %v922 = vpack.c.b16 %v646, %v623
    %v923 = vpack.c.b16 %v647, %v624
    %v924 = vpack.c.b16 %v648, %v625
    %v925 = vpack.c.b16 %v649, %v626
    %v926 = vpack.c.b16 %v650, %v627
    %v927 = vpack.c.b16 %v651, %v628
    %v928 = vpack.c.b16 %v652, %v629
    %v929 = vpack.c.b16 %v653, %v630
    %v930 = vpack.c.b16 %v654, %v631
    %v931 = vpack.c.b16 %v655, %v632
    %v932 = vpack.c.b16 %v656, %v633
    %v933 = vpack.c.b16 %v657, %v634
    %v934 = vpack.c.b16 %v658, %v635
    %v935 = vpack.c.b16 %v659, %v636
    %v936 = vpack.c.b16 %v660, %v637
    %v937 = vpack.c.b16 %v661, %v638
    %v938 = vpack.c.b16 %v662, %v639
    %v939 = vpack.c.b16 %v663, %v640
    %v940 = vpack.c.b16 %v664, %v641
    %v941 = vpack.c.b16 %v665, %v642
    %v942 = vpack.c.b16 %v666, %v643
    %v943 = vpack.c.b16 %v690, %v667
    %v944 = vpack.c.b16 %v691, %v668
    %v945 = vpack.c.b16 %v692, %v669
    %v946 = vpack.c.b16 %v693, %v670
    %v947 = vpack.c.b16 %v694, %v671
    %v948 = vpack.c.b16 %v695, %v672
    %v949 = vpack.c.b16 %v696, %v673
    %v950 = vpack.c.b16 %v697, %v674
    %v951 = vpack.c.b16 %v698, %v675
    %v952 = vpack.c.b16 %v699, %v676
    %v953 = vpack.c.b16 %v700, %v677
    %v954 = vpack.c.b16 %v701, %v678
    %v955 = vpack.c.b16 %v702, %v679
    %v956 = vpack.c.b16 %v703, %v680
    %v957 = vpack.c.b16 %v704, %v681
    %v958 = vpack.c.b16 %v705, %v682
    %v959 = vpack.c.b16 %v706, %v683
    %v960 = vpack.c.b16 %v707, %v684
    %v961 = vpack.c.b16 %v708, %v685
    %v962 = vpack.c.b16 %v709, %v686
    %v963 = vpack.c.b16 %v710, %v687
    %v964 = vpack.c.b16 %v711, %v688
    %v965 = vpack.c.b16 %v712, %v689
    %v966 = vpack.c.b16 %v736, %v713
    %v967 = vpack.c.b16 %v737, %v714
    %v968 = vpack.c.b16 %v738, %v715
    %v969 = vpack.c.b16 %v739, %v716
    %v970 = vpack.c.b16 %v740, %v717
    %v971 = vpack.c.b16 %v741, %v718
    %v972 = vpack.c.b16 %v742, %v719
    %v973 = vpack.c.b16 %v743, %v720
    %v974 = vpack.c.b16 %v744, %v721
    %v975 = vpack.c.b16 %v745, %v722
    %v976 = vpack.c.b16 %v746, %v723
    %v977 = vpack.c.b16 %v747, %v724
    %v978 = vpack.c.b16 %v748, %v725
    %v979 = vpack.c.b16 %v749, %v726
    %v980 = vpack.c.b16 %v750, %v727
    %v981 = vpack.c.b16 %v751, %v728
    %v982 = vpack.c.b16 %v752, %v729
    %v983 = vpack.c.b16 %v753, %v730
    %v984 = vpack.c.b16 %v754, %v731
    %v985 = vpack.c.b16 %v755, %v732
    %v986 = vpack.c.b16 %v756, %v733
    %v987 = vpack.c.b16 %v757, %v734
    %v988 = vpack.c.b16 %v758, %v735
    %v989 = vpack.c.b16 %v782, %v759
    %v990 = vpack.c.b16 %v783, %v760
    %v991 = vpack.c.b16 %v784, %v761
    %v992 = vpack.c.b16 %v785, %v762
    %v993 = vpack.c.b16 %v786, %v763
    %v994 = vpack.c.b16 %v787, %v764
    %v995 = vpack.c.b16 %v788, %v765
    %v996 = vpack.c.b16 %v789, %v766
    %v997 = vpack.c.b16 %v790, %v767
    %v998 = vpack.c.b16 %v791, %v768
    %v999 = vpack.c.b16 %v792, %v769
    %v1000 = vpack.c.b16 %v793, %v770
    %v1001 = vpack.c.b16 %v794, %v771
    %v1002 = vpack.c.b16 %v795, %v772
    %v1003 = vpack.c.b16 %v796, %v773
    %v1004 = vpack.c.b16 %v797, %v774
    %v1005 = vpack.c.b16 %v798, %v775
    %v1006 = vpack.c.b16 %v799, %v776
    %v1007 = vpack.c.b16 %v800, %v777
    %v1008 = vpack.c.b16 %v801, %v778
    %v1009 = vpack.c.b16 %v802, %v779
    %v1010 = vpack.c.b16 %v803, %v780
    %v1011 = vpack.c.b16 %v804, %v781
    %v1012 = vpack.c.b16 %v805, %v805
    %v1013 = vpack.c.b16 %v806, %v806
    %v1014 = vpack.c.b16 %v807, %v807
    %v1015 = vpack.c.b16 %v808, %v808
    %v1016 = vpack.c.b16 %v809, %v809
    %v1017 = vpack.c.b16 %v810, %v810
    %v1018 = vpack.c.b16 %v811, %v811
    %v1019 = vpack.c.b16 %v812, %v812
    %v1020 = vpack.c.b16 %v813, %v813
    %v1021 = vpack.c.b16 %v814, %v814
    %v1022 = vpack.c.b16 %v815, %v815
    %v1023 = vpack.c.b16 %v816, %v816
    %v1024 = vpack.c.b16 %v817, %v817
    %v1025 = vpack.c.b16 %v818, %v818
    %v1026 = vpack.c.b16 %v819, %v819
    %v1027 = vpack.c.b16 %v820, %v820
    %v1028 = vpack.c.b16 %v821, %v821
    %v1029 = vpack.c.b16 %v822, %v822
    %v1030 = vpack.c.b16 %v823, %v823
    %v1031 = vpack.c.b16 %v824, %v824
    %v1032 = vpack.c.b16 %v825, %v825
    %v1033 = vpack.c.b16 %v826, %v826
    %v1034 = vpack.c.b16 %v827, %v827
    %vm1219 = vcmask 7168
    %v1220 = vsel %vm1219, %v231, 0
    %vm1222 = vcmask 1040384
    %v1223 = vsel 0, 4294967295, 65535
    %v1224 = vsel %vm1222, %v1223, 0
    %v1226 = vand.u32 %v1012, %v1224
    %v1229 = vand.u32 %v1013, %v1224
    %v1232 = vand.u32 %v1014, %v1224
    %v1235 = vand.u32 %v1015, %v1224
    %v1238 = vand.u32 %v1016, %v1224
    %v1241 = vand.u32 %v1017, %v1224
    %v1244 = vand.u32 %v1018, %v1224
    %v1247 = vand.u32 %v1019, %v1224
    %v1250 = vand.u32 %v1020, %v1224
    %v1253 = vand.u32 %v1021, %v1224
    %v1256 = vand.u32 %v1022, %v1224
    %v1259 = vand.u32 %v1023, %v1224
    %v1262 = vand.u32 %v1024, %v1224
    %v1265 = vand.u32 %v1025, %v1224
    %v1268 = vand.u32 %v1026, %v1224
    %v1271 = vand.u32 %v1027, %v1224
    %v1274 = vand.u32 %v1028, %v1224
    %v1277 = vand.u32 %v1029, %v1224
    %v1280 = vand.u32 %v1030, %v1224
    %v1283 = vand.u32 %v1031, %v1224
    %v1286 = vand.u32 %v1032, %v1224
    %v1289 = vand.u32 %v1033, %v1224
    %v1292 = vand.u32 %v1034, %v1224
    %1294 = vmatpush.bf16.msra.mxu0 %v989
    %1295 = vmatpush.bf16.msra.mxu0 %v966
    %1296 = vmatpush.bf16.msra.mxu0 %v943
    %1297 = vmatpush.bf16.msra.mxu0 %v920
    %1298 = vmatpush.bf16.msra.mxu0 %v897
    %1299 = vmatpush.bf16.msra.mxu0 %v874
    %1300 = vmatpush.bf16.msra.mxu0 %v851
    %1301 = vmatpush.bf16.msra.mxu0 %v828
    %1302 = vmatmul.bf16.gmra.mxu0 %v230
    %v1303 = vpop.f32.mrf.mxu0
    %v1304 = vadd.f32 0.0, %v1303
    %v1305 = vpop.f32.mrf.mxu0
    %1306 = vdwg.mxu0
    %1307 = vmatpush.bf16.msra.mxu0 0
    %1308 = vmatpush.bf16.msra.mxu0 0
    %1309 = vmatpush.bf16.msra.mxu0 0
    %1310 = vmatpush.bf16.msra.mxu0 0
    %1311 = vmatpush.bf16.msra.mxu0 0
    %1312 = vmatpush.bf16.msra.mxu0 0
    %1313 = vmatpush.bf16.msra.mxu0 0
    %1314 = vmatpush.bf16.msra.mxu0 %v1226
    %1315 = vmatmul.bf16.gmra.mxu0 %v1220
    %v1316 = vpop.f32.mrf.mxu0
    %v1317 = vadd.f32 %v1304, %v1316
    %v1318 = vpop.f32.mrf.mxu0
    %1319 = vdwg.mxu0
    %1320 = vmatpush.bf16.msra.mxu0 %v990
    %1321 = vmatpush.bf16.msra.mxu0 %v967
    %1322 = vmatpush.bf16.msra.mxu0 %v944
    %1323 = vmatpush.bf16.msra.mxu0 %v921
    %1324 = vmatpush.bf16.msra.mxu0 %v898
    %1325 = vmatpush.bf16.msra.mxu0 %v875
    %1326 = vmatpush.bf16.msra.mxu0 %v852
    %1327 = vmatpush.bf16.msra.mxu0 %v829
    %1328 = vmatmul.bf16.gmra.mxu0 %v230
    %v1329 = vpop.f32.mrf.mxu0
    %v1330 = vadd.f32 0.0, %v1329
    %v1331 = vpop.f32.mrf.mxu0
    %1332 = vdwg.mxu0
    %1333 = vmatpush.bf16.msra.mxu0 0
    %1334 = vmatpush.bf16.msra.mxu0 0
    %1335 = vmatpush.bf16.msra.mxu0 0
    %1336 = vmatpush.bf16.msra.mxu0 0
    %1337 = vmatpush.bf16.msra.mxu0 0
    %1338 = vmatpush.bf16.msra.mxu0 0
    %1339 = vmatpush.bf16.msra.mxu0 0
    %1340 = vmatpush.bf16.msra.mxu0 %v1229
    %1341 = vmatmul.bf16.gmra.mxu0 %v1220
    %v1342 = vpop.f32.mrf.mxu0
    %v1343 = vadd.f32 %v1330, %v1342
    %v1344 = vpop.f32.mrf.mxu0
    %1345 = vdwg.mxu0
    %1346 = vmatpush.bf16.msra.mxu0 %v991
    %1347 = vmatpush.bf16.msra.mxu0 %v968
    %1348 = vmatpush.bf16.msra.mxu0 %v945
    %1349 = vmatpush.bf16.msra.mxu0 %v922
    %1350 = vmatpush.bf16.msra.mxu0 %v899
    %1351 = vmatpush.bf16.msra.mxu0 %v876
    %1352 = vmatpush.bf16.msra.mxu0 %v853
    %1353 = vmatpush.bf16.msra.mxu0 %v830
    %1354 = vmatmul.bf16.gmra.mxu0 %v230
    %v1355 = vpop.f32.mrf.mxu0
    %v1356 = vadd.f32 0.0, %v1355
    %v1357 = vpop.f32.mrf.mxu0
    %1358 = vdwg.mxu0
    %1359 = vmatpush.bf16.msra.mxu0 0
    %1360 = vmatpush.bf16.msra.mxu0 0
    %1361 = vmatpush.bf16.msra.mxu0 0
    %1362 = vmatpush.bf16.msra.mxu0 0
    %1363 = vmatpush.bf16.msra.mxu0 0
    %1364 = vmatpush.bf16.msra.mxu0 0
    %1365 = vmatpush.bf16.msra.mxu0 0
    %1366 = vmatpush.bf16.msra.mxu0 %v1232
    %1367 = vmatmul.bf16.gmra.mxu0 %v1220
    %v1368 = vpop.f32.mrf.mxu0
    %v1369 = vadd.f32 %v1356, %v1368
    %v1370 = vpop.f32.mrf.mxu0
    %1371 = vdwg.mxu0
    %1372 = vmatpush.bf16.msra.mxu0 %v992
    %1373 = vmatpush.bf16.msra.mxu0 %v969
    %1374 = vmatpush.bf16.msra.mxu0 %v946
    %1375 = vmatpush.bf16.msra.mxu0 %v923
    %1376 = vmatpush.bf16.msra.mxu0 %v900
    %1377 = vmatpush.bf16.msra.mxu0 %v877
    %1378 = vmatpush.bf16.msra.mxu0 %v854
    %1379 = vmatpush.bf16.msra.mxu0 %v831
    %1380 = vmatmul.bf16.gmra.mxu0 %v230
    %v1381 = vpop.f32.mrf.mxu0
    %v1382 = vadd.f32 0.0, %v1381
    %v1383 = vpop.f32.mrf.mxu0
    %1384 = vdwg.mxu0
    %1385 = vmatpush.bf16.msra.mxu0 0
    %1386 = vmatpush.bf16.msra.mxu0 0
    %1387 = vmatpush.bf16.msra.mxu0 0
    %1388 = vmatpush.bf16.msra.mxu0 0
    %1389 = vmatpush.bf16.msra.mxu0 0
    %1390 = vmatpush.bf16.msra.mxu0 0
    %1391 = vmatpush.bf16.msra.mxu0 0
    %1392 = vmatpush.bf16.msra.mxu0 %v1235
    %1393 = vmatmul.bf16.gmra.mxu0 %v1220
    %v1394 = vpop.f32.mrf.mxu0
    %v1395 = vadd.f32 %v1382, %v1394
    %v1396 = vpop.f32.mrf.mxu0
    %1397 = vdwg.mxu0
    %1398 = vmatpush.bf16.msra.mxu0 %v993
    %1399 = vmatpush.bf16.msra.mxu0 %v970
    %1400 = vmatpush.bf16.msra.mxu0 %v947
    %1401 = vmatpush.bf16.msra.mxu0 %v924
    %1402 = vmatpush.bf16.msra.mxu0 %v901
    %1403 = vmatpush.bf16.msra.mxu0 %v878
    %1404 = vmatpush.bf16.msra.mxu0 %v855
    %1405 = vmatpush.bf16.msra.mxu0 %v832
    %1406 = vmatmul.bf16.gmra.mxu0 %v230
    %v1407 = vpop.f32.mrf.mxu0
    %v1408 = vadd.f32 0.0, %v1407
    %v1409 = vpop.f32.mrf.mxu0
    %1410 = vdwg.mxu0
    %1411 = vmatpush.bf16.msra.mxu0 0
    %1412 = vmatpush.bf16.msra.mxu0 0
    %1413 = vmatpush.bf16.msra.mxu0 0
    %1414 = vmatpush.bf16.msra.mxu0 0
    %1415 = vmatpush.bf16.msra.mxu0 0
    %1416 = vmatpush.bf16.msra.mxu0 0
    %1417 = vmatpush.bf16.msra.mxu0 0
    %1418 = vmatpush.bf16.msra.mxu0 %v1238
    %1419 = vmatmul.bf16.gmra.mxu0 %v1220
    %v1420 = vpop.f32.mrf.mxu0
    %v1421 = vadd.f32 %v1408, %v1420
    %v1422 = vpop.f32.mrf.mxu0
    %1423 = vdwg.mxu0
    %1424 = vmatpush.bf16.msra.mxu0 %v994
    %1425 = vmatpush.bf16.msra.mxu0 %v971
    %1426 = vmatpush.bf16.msra.mxu0 %v948
    %1427 = vmatpush.bf16.msra.mxu0 %v925
    %1428 = vmatpush.bf16.msra.mxu0 %v902
    %1429 = vmatpush.bf16.msra.mxu0 %v879
    %1430 = vmatpush.bf16.msra.mxu0 %v856
    %1431 = vmatpush.bf16.msra.mxu0 %v833
    %1432 = vmatmul.bf16.gmra.mxu0 %v230
    %v1433 = vpop.f32.mrf.mxu0
    %v1434 = vadd.f32 0.0, %v1433
    %v1435 = vpop.f32.mrf.mxu0
    %1436 = vdwg.mxu0
    %1437 = vmatpush.bf16.msra.mxu0 0
    %1438 = vmatpush.bf16.msra.mxu0 0
    %1439 = vmatpush.bf16.msra.mxu0 0
    %1440 = vmatpush.bf16.msra.mxu0 0
    %1441 = vmatpush.bf16.msra.mxu0 0
    %1442 = vmatpush.bf16.msra.mxu0 0
    %1443 = vmatpush.bf16.msra.mxu0 0
    %1444 = vmatpush.bf16.msra.mxu0 %v1241
    %1445 = vmatmul.bf16.gmra.mxu0 %v1220
    %v1446 = vpop.f32.mrf.mxu0
    %v1447 = vadd.f32 %v1434, %v1446
    %v1448 = vpop.f32.mrf.mxu0
    %1449 = vdwg.mxu0
    %1450 = vmatpush.bf16.msra.mxu0 %v995
    %1451 = vmatpush.bf16.msra.mxu0 %v972
    %1452 = vmatpush.bf16.msra.mxu0 %v949
    %1453 = vmatpush.bf16.msra.mxu0 %v926
    %1454 = vmatpush.bf16.msra.mxu0 %v903
    %1455 = vmatpush.bf16.msra.mxu0 %v880
    %1456 = vmatpush.bf16.msra.mxu0 %v857
    %1457 = vmatpush.bf16.msra.mxu0 %v834
    %1458 = vmatmul.bf16.gmra.mxu0 %v230
    %v1459 = vpop.f32.mrf.mxu0
    %v1460 = vadd.f32 0.0, %v1459
    %v1461 = vpop.f32.mrf.mxu0
    %1462 = vdwg.mxu0
    %1463 = vmatpush.bf16.msra.mxu0 0
    %1464 = vmatpush.bf16.msra.mxu0 0
    %1465 = vmatpush.bf16.msra.mxu0 0
    %1466 = vmatpush.bf16.msra.mxu0 0
    %1467 = vmatpush.bf16.msra.mxu0 0
    %1468 = vmatpush.bf16.msra.mxu0 0
    %1469 = vmatpush.bf16.msra.mxu0 0
    %1470 = vmatpush.bf16.msra.mxu0 %v1244
    %1471 = vmatmul.bf16.gmra.mxu0 %v1220
    %v1472 = vpop.f32.mrf.mxu0
    %v1473 = vadd.f32 %v1460, %v1472
    %v1474 = vpop.f32.mrf.mxu0
    %1475 = vdwg.mxu0
    %1476 = vmatpush.bf16.msra.mxu0 %v996
    %1477 = vmatpush.bf16.msra.mxu0 %v973
    %1478 = vmatpush.bf16.msra.mxu0 %v950
    %1479 = vmatpush.bf16.msra.mxu0 %v927
    %1480 = vmatpush.bf16.msra.mxu0 %v904
    %1481 = vmatpush.bf16.msra.mxu0 %v881
    %1482 = vmatpush.bf16.msra.mxu0 %v858
    %1483 = vmatpush.bf16.msra.mxu0 %v835
    %1484 = vmatmul.bf16.gmra.mxu0 %v230
    %v1485 = vpop.f32.mrf.mxu0
    %v1486 = vadd.f32 0.0, %v1485
    %v1487 = vpop.f32.mrf.mxu0
    %1488 = vdwg.mxu0
    %1489 = vmatpush.bf16.msra.mxu0 0
    %1490 = vmatpush.bf16.msra.mxu0 0
    %1491 = vmatpush.bf16.msra.mxu0 0
    %1492 = vmatpush.bf16.msra.mxu0 0
    %1493 = vmatpush.bf16.msra.mxu0 0
    %1494 = vmatpush.bf16.msra.mxu0 0
    %1495 = vmatpush.bf16.msra.mxu0 0
    %1496 = vmatpush.bf16.msra.mxu0 %v1247
    %1497 = vmatmul.bf16.gmra.mxu0 %v1220
    %v1498 = vpop.f32.mrf.mxu0
    %v1499 = vadd.f32 %v1486, %v1498
    %v1500 = vpop.f32.mrf.mxu0
    %1501 = vdwg.mxu0
    %1502 = vmatpush.bf16.msra.mxu0 %v997
    %1503 = vmatpush.bf16.msra.mxu0 %v974
    %1504 = vmatpush.bf16.msra.mxu0 %v951
    %1505 = vmatpush.bf16.msra.mxu0 %v928
    %1506 = vmatpush.bf16.msra.mxu0 %v905
    %1507 = vmatpush.bf16.msra.mxu0 %v882
    %1508 = vmatpush.bf16.msra.mxu0 %v859
    %1509 = vmatpush.bf16.msra.mxu0 %v836
    %1510 = vmatmul.bf16.gmra.mxu0 %v230
    %v1511 = vpop.f32.mrf.mxu0
    %v1512 = vadd.f32 0.0, %v1511
    %v1513 = vpop.f32.mrf.mxu0
    %1514 = vdwg.mxu0
    %1515 = vmatpush.bf16.msra.mxu0 0
    %1516 = vmatpush.bf16.msra.mxu0 0
    %1517 = vmatpush.bf16.msra.mxu0 0
    %1518 = vmatpush.bf16.msra.mxu0 0
    %1519 = vmatpush.bf16.msra.mxu0 0
    %1520 = vmatpush.bf16.msra.mxu0 0
    %1521 = vmatpush.bf16.msra.mxu0 0
    %1522 = vmatpush.bf16.msra.mxu0 %v1250
    %1523 = vmatmul.bf16.gmra.mxu0 %v1220
    %v1524 = vpop.f32.mrf.mxu0
    %v1525 = vadd.f32 %v1512, %v1524
    %v1526 = vpop.f32.mrf.mxu0
    %1527 = vdwg.mxu0
    %1528 = vmatpush.bf16.msra.mxu0 %v998
    %1529 = vmatpush.bf16.msra.mxu0 %v975
    %1530 = vmatpush.bf16.msra.mxu0 %v952
    %1531 = vmatpush.bf16.msra.mxu0 %v929
    %1532 = vmatpush.bf16.msra.mxu0 %v906
    %1533 = vmatpush.bf16.msra.mxu0 %v883
    %1534 = vmatpush.bf16.msra.mxu0 %v860
    %1535 = vmatpush.bf16.msra.mxu0 %v837
    %1536 = vmatmul.bf16.gmra.mxu0 %v230
    %v1537 = vpop.f32.mrf.mxu0
    %v1538 = vadd.f32 0.0, %v1537
    %v1539 = vpop.f32.mrf.mxu0
    %1540 = vdwg.mxu0
    %1541 = vmatpush.bf16.msra.mxu0 0
    %1542 = vmatpush.bf16.msra.mxu0 0
    %1543 = vmatpush.bf16.msra.mxu0 0
    %1544 = vmatpush.bf16.msra.mxu0 0
    %1545 = vmatpush.bf16.msra.mxu0 0
    %1546 = vmatpush.bf16.msra.mxu0 0
    %1547 = vmatpush.bf16.msra.mxu0 0
    %1548 = vmatpush.bf16.msra.mxu0 %v1253
    %1549 = vmatmul.bf16.gmra.mxu0 %v1220
    %v1550 = vpop.f32.mrf.mxu0
    %v1551 = vadd.f32 %v1538, %v1550
    %v1552 = vpop.f32.mrf.mxu0
    %1553 = vdwg.mxu0
    %1554 = vmatpush.bf16.msra.mxu0 %v999
    %1555 = vmatpush.bf16.msra.mxu0 %v976
    %1556 = vmatpush.bf16.msra.mxu0 %v953
    %1557 = vmatpush.bf16.msra.mxu0 %v930
    %1558 = vmatpush.bf16.msra.mxu0 %v907
    %1559 = vmatpush.bf16.msra.mxu0 %v884
    %1560 = vmatpush.bf16.msra.mxu0 %v861
    %1561 = vmatpush.bf16.msra.mxu0 %v838
    %1562 = vmatmul.bf16.gmra.mxu0 %v230
    %v1563 = vpop.f32.mrf.mxu0
    %v1564 = vadd.f32 0.0, %v1563
    %v1565 = vpop.f32.mrf.mxu0
    %1566 = vdwg.mxu0
    %1567 = vmatpush.bf16.msra.mxu0 0
    %1568 = vmatpush.bf16.msra.mxu0 0
    %1569 = vmatpush.bf16.msra.mxu0 0
    %1570 = vmatpush.bf16.msra.mxu0 0
    %1571 = vmatpush.bf16.msra.mxu0 0
    %1572 = vmatpush.bf16.msra.mxu0 0
    %1573 = vmatpush.bf16.msra.mxu0 0
    %1574 = vmatpush.bf16.msra.mxu0 %v1256
    %1575 = vmatmul.bf16.gmra.mxu0 %v1220
    %v1576 = vpop.f32.mrf.mxu0
    %v1577 = vadd.f32 %v1564, %v1576
    %v1578 = vpop.f32.mrf.mxu0
    %1579 = vdwg.mxu0
    %1580 = vmatpush.bf16.msra.mxu0 %v1000
    %1581 = vmatpush.bf16.msra.mxu0 %v977
    %1582 = vmatpush.bf16.msra.mxu0 %v954
    %1583 = vmatpush.bf16.msra.mxu0 %v931
    %1584 = vmatpush.bf16.msra.mxu0 %v908
    %1585 = vmatpush.bf16.msra.mxu0 %v885
    %1586 = vmatpush.bf16.msra.mxu0 %v862
    %1587 = vmatpush.bf16.msra.mxu0 %v839
    %1588 = vmatmul.bf16.gmra.mxu0 %v230
    %v1589 = vpop.f32.mrf.mxu0
    %v1590 = vadd.f32 0.0, %v1589
    %v1591 = vpop.f32.mrf.mxu0
    %1592 = vdwg.mxu0
    %1593 = vmatpush.bf16.msra.mxu0 0
    %1594 = vmatpush.bf16.msra.mxu0 0
    %1595 = vmatpush.bf16.msra.mxu0 0
    %1596 = vmatpush.bf16.msra.mxu0 0
    %1597 = vmatpush.bf16.msra.mxu0 0
    %1598 = vmatpush.bf16.msra.mxu0 0
    %1599 = vmatpush.bf16.msra.mxu0 0
    %1600 = vmatpush.bf16.msra.mxu0 %v1259
    %1601 = vmatmul.bf16.gmra.mxu0 %v1220
    %v1602 = vpop.f32.mrf.mxu0
    %v1603 = vadd.f32 %v1590, %v1602
    %v1604 = vpop.f32.mrf.mxu0
    %1605 = vdwg.mxu0
    %1606 = vmatpush.bf16.msra.mxu0 %v1001
    %1607 = vmatpush.bf16.msra.mxu0 %v978
    %1608 = vmatpush.bf16.msra.mxu0 %v955
    %1609 = vmatpush.bf16.msra.mxu0 %v932
    %1610 = vmatpush.bf16.msra.mxu0 %v909
    %1611 = vmatpush.bf16.msra.mxu0 %v886
    %1612 = vmatpush.bf16.msra.mxu0 %v863
    %1613 = vmatpush.bf16.msra.mxu0 %v840
    %1614 = vmatmul.bf16.gmra.mxu0 %v230
    %v1615 = vpop.f32.mrf.mxu0
    %v1616 = vadd.f32 0.0, %v1615
    %v1617 = vpop.f32.mrf.mxu0
    %1618 = vdwg.mxu0
    %1619 = vmatpush.bf16.msra.mxu0 0
    %1620 = vmatpush.bf16.msra.mxu0 0
    %1621 = vmatpush.bf16.msra.mxu0 0
    %1622 = vmatpush.bf16.msra.mxu0 0
    %1623 = vmatpush.bf16.msra.mxu0 0
    %1624 = vmatpush.bf16.msra.mxu0 0
    %1625 = vmatpush.bf16.msra.mxu0 0
    %1626 = vmatpush.bf16.msra.mxu0 %v1262
    %1627 = vmatmul.bf16.gmra.mxu0 %v1220
    %v1628 = vpop.f32.mrf.mxu0
    %v1629 = vadd.f32 %v1616, %v1628
    %v1630 = vpop.f32.mrf.mxu0
    %1631 = vdwg.mxu0
    %1632 = vmatpush.bf16.msra.mxu0 %v1002
    %1633 = vmatpush.bf16.msra.mxu0 %v979
    %1634 = vmatpush.bf16.msra.mxu0 %v956
    %1635 = vmatpush.bf16.msra.mxu0 %v933
    %1636 = vmatpush.bf16.msra.mxu0 %v910
    %1637 = vmatpush.bf16.msra.mxu0 %v887
    %1638 = vmatpush.bf16.msra.mxu0 %v864
    %1639 = vmatpush.bf16.msra.mxu0 %v841
    %1640 = vmatmul.bf16.gmra.mxu0 %v230
    %v1641 = vpop.f32.mrf.mxu0
    %v1642 = vadd.f32 0.0, %v1641
    %v1643 = vpop.f32.mrf.mxu0
    %1644 = vdwg.mxu0
    %1645 = vmatpush.bf16.msra.mxu0 0
    %1646 = vmatpush.bf16.msra.mxu0 0
    %1647 = vmatpush.bf16.msra.mxu0 0
    %1648 = vmatpush.bf16.msra.mxu0 0
    %1649 = vmatpush.bf16.msra.mxu0 0
    %1650 = vmatpush.bf16.msra.mxu0 0
    %1651 = vmatpush.bf16.msra.mxu0 0
    %1652 = vmatpush.bf16.msra.mxu0 %v1265
    %1653 = vmatmul.bf16.gmra.mxu0 %v1220
    %v1654 = vpop.f32.mrf.mxu0
    %v1655 = vadd.f32 %v1642, %v1654
    %v1656 = vpop.f32.mrf.mxu0
    %1657 = vdwg.mxu0
    %1658 = vmatpush.bf16.msra.mxu0 %v1003
    %1659 = vmatpush.bf16.msra.mxu0 %v980
    %1660 = vmatpush.bf16.msra.mxu0 %v957
    %1661 = vmatpush.bf16.msra.mxu0 %v934
    %1662 = vmatpush.bf16.msra.mxu0 %v911
    %1663 = vmatpush.bf16.msra.mxu0 %v888
    %1664 = vmatpush.bf16.msra.mxu0 %v865
    %1665 = vmatpush.bf16.msra.mxu0 %v842
    %1666 = vmatmul.bf16.gmra.mxu0 %v230
    %v1667 = vpop.f32.mrf.mxu0
    %v1668 = vadd.f32 0.0, %v1667
    %v1669 = vpop.f32.mrf.mxu0
    %1670 = vdwg.mxu0
    %1671 = vmatpush.bf16.msra.mxu0 0
    %1672 = vmatpush.bf16.msra.mxu0 0
    %1673 = vmatpush.bf16.msra.mxu0 0
    %1674 = vmatpush.bf16.msra.mxu0 0
    %1675 = vmatpush.bf16.msra.mxu0 0
    %1676 = vmatpush.bf16.msra.mxu0 0
    %1677 = vmatpush.bf16.msra.mxu0 0
    %1678 = vmatpush.bf16.msra.mxu0 %v1268
    %1679 = vmatmul.bf16.gmra.mxu0 %v1220
    %v1680 = vpop.f32.mrf.mxu0
    %v1681 = vadd.f32 %v1668, %v1680
    %v1682 = vpop.f32.mrf.mxu0
    %1683 = vdwg.mxu0
    %1684 = vmatpush.bf16.msra.mxu0 %v1004
    %1685 = vmatpush.bf16.msra.mxu0 %v981
    %1686 = vmatpush.bf16.msra.mxu0 %v958
    %1687 = vmatpush.bf16.msra.mxu0 %v935
    %1688 = vmatpush.bf16.msra.mxu0 %v912
    %1689 = vmatpush.bf16.msra.mxu0 %v889
    %1690 = vmatpush.bf16.msra.mxu0 %v866
    %1691 = vmatpush.bf16.msra.mxu0 %v843
    %1692 = vmatmul.bf16.gmra.mxu0 %v230
    %v1693 = vpop.f32.mrf.mxu0
    %v1694 = vadd.f32 0.0, %v1693
    %v1695 = vpop.f32.mrf.mxu0
    %1696 = vdwg.mxu0
    %1697 = vmatpush.bf16.msra.mxu0 0
    %1698 = vmatpush.bf16.msra.mxu0 0
    %1699 = vmatpush.bf16.msra.mxu0 0
    %1700 = vmatpush.bf16.msra.mxu0 0
    %1701 = vmatpush.bf16.msra.mxu0 0
    %1702 = vmatpush.bf16.msra.mxu0 0
    %1703 = vmatpush.bf16.msra.mxu0 0
    %1704 = vmatpush.bf16.msra.mxu0 %v1271
    %1705 = vmatmul.bf16.gmra.mxu0 %v1220
    %v1706 = vpop.f32.mrf.mxu0
    %v1707 = vadd.f32 %v1694, %v1706
    %v1708 = vpop.f32.mrf.mxu0
    %1709 = vdwg.mxu0
    %1710 = vmatpush.bf16.msra.mxu0 %v1005
    %1711 = vmatpush.bf16.msra.mxu0 %v982
    %1712 = vmatpush.bf16.msra.mxu0 %v959
    %1713 = vmatpush.bf16.msra.mxu0 %v936
    %1714 = vmatpush.bf16.msra.mxu0 %v913
    %1715 = vmatpush.bf16.msra.mxu0 %v890
    %1716 = vmatpush.bf16.msra.mxu0 %v867
    %1717 = vmatpush.bf16.msra.mxu0 %v844
    %1718 = vmatmul.bf16.gmra.mxu0 %v230
    %v1719 = vpop.f32.mrf.mxu0
    %v1720 = vadd.f32 0.0, %v1719
    %v1721 = vpop.f32.mrf.mxu0
    %1722 = vdwg.mxu0
    %1723 = vmatpush.bf16.msra.mxu0 0
    %1724 = vmatpush.bf16.msra.mxu0 0
    %1725 = vmatpush.bf16.msra.mxu0 0
    %1726 = vmatpush.bf16.msra.mxu0 0
    %1727 = vmatpush.bf16.msra.mxu0 0
    %1728 = vmatpush.bf16.msra.mxu0 0
    %1729 = vmatpush.bf16.msra.mxu0 0
    %1730 = vmatpush.bf16.msra.mxu0 %v1274
    %1731 = vmatmul.bf16.gmra.mxu0 %v1220
    %v1732 = vpop.f32.mrf.mxu0
    %v1733 = vadd.f32 %v1720, %v1732
    %v1734 = vpop.f32.mrf.mxu0
    %1735 = vdwg.mxu0
    %1736 = vmatpush.bf16.msra.mxu0 %v1006
    %1737 = vmatpush.bf16.msra.mxu0 %v983
    %1738 = vmatpush.bf16.msra.mxu0 %v960
    %1739 = vmatpush.bf16.msra.mxu0 %v937
    %1740 = vmatpush.bf16.msra.mxu0 %v914
    %1741 = vmatpush.bf16.msra.mxu0 %v891
    %1742 = vmatpush.bf16.msra.mxu0 %v868
    %1743 = vmatpush.bf16.msra.mxu0 %v845
    %1744 = vmatmul.bf16.gmra.mxu0 %v230
    %v1745 = vpop.f32.mrf.mxu0
    %v1746 = vadd.f32 0.0, %v1745
    %v1747 = vpop.f32.mrf.mxu0
    %1748 = vdwg.mxu0
    %1749 = vmatpush.bf16.msra.mxu0 0
    %1750 = vmatpush.bf16.msra.mxu0 0
    %1751 = vmatpush.bf16.msra.mxu0 0
    %1752 = vmatpush.bf16.msra.mxu0 0
    %1753 = vmatpush.bf16.msra.mxu0 0
    %1754 = vmatpush.bf16.msra.mxu0 0
    %1755 = vmatpush.bf16.msra.mxu0 0
    %1756 = vmatpush.bf16.msra.mxu0 %v1277
    %1757 = vmatmul.bf16.gmra.mxu0 %v1220
    %v1758 = vpop.f32.mrf.mxu0
    %v1759 = vadd.f32 %v1746, %v1758
    %v1760 = vpop.f32.mrf.mxu0
    %1761 = vdwg.mxu0
    %1762 = vmatpush.bf16.msra.mxu0 %v1007
    %1763 = vmatpush.bf16.msra.mxu0 %v984
    %1764 = vmatpush.bf16.msra.mxu0 %v961
    %1765 = vmatpush.bf16.msra.mxu0 %v938
    %1766 = vmatpush.bf16.msra.mxu0 %v915
    %1767 = vmatpush.bf16.msra.mxu0 %v892
    %1768 = vmatpush.bf16.msra.mxu0 %v869
    %1769 = vmatpush.bf16.msra.mxu0 %v846
    %1770 = vmatmul.bf16.gmra.mxu0 %v230
    %v1771 = vpop.f32.mrf.mxu0
    %v1772 = vadd.f32 0.0, %v1771
    %v1773 = vpop.f32.mrf.mxu0
    %1774 = vdwg.mxu0
    %1775 = vmatpush.bf16.msra.mxu0 0
    %1776 = vmatpush.bf16.msra.mxu0 0
    %1777 = vmatpush.bf16.msra.mxu0 0
    %1778 = vmatpush.bf16.msra.mxu0 0
    %1779 = vmatpush.bf16.msra.mxu0 0
    %1780 = vmatpush.bf16.msra.mxu0 0
    %1781 = vmatpush.bf16.msra.mxu0 0
    %1782 = vmatpush.bf16.msra.mxu0 %v1280
    %1783 = vmatmul.bf16.gmra.mxu0 %v1220
    %v1784 = vpop.f32.mrf.mxu0
    %v1785 = vadd.f32 %v1772, %v1784
    %v1786 = vpop.f32.mrf.mxu0
    %1787 = vdwg.mxu0
    %1788 = vmatpush.bf16.msra.mxu0 %v1008
    %1789 = vmatpush.bf16.msra.mxu0 %v985
    %1790 = vmatpush.bf16.msra.mxu0 %v962
    %1791 = vmatpush.bf16.msra.mxu0 %v939
    %1792 = vmatpush.bf16.msra.mxu0 %v916
    %1793 = vmatpush.bf16.msra.mxu0 %v893
    %1794 = vmatpush.bf16.msra.mxu0 %v870
    %1795 = vmatpush.bf16.msra.mxu0 %v847
    %1796 = vmatmul.bf16.gmra.mxu0 %v230
    %v1797 = vpop.f32.mrf.mxu0
    %v1798 = vadd.f32 0.0, %v1797
    %v1799 = vpop.f32.mrf.mxu0
    %1800 = vdwg.mxu0
    %1801 = vmatpush.bf16.msra.mxu0 0
    %1802 = vmatpush.bf16.msra.mxu0 0
    %1803 = vmatpush.bf16.msra.mxu0 0
    %1804 = vmatpush.bf16.msra.mxu0 0
    %1805 = vmatpush.bf16.msra.mxu0 0
    %1806 = vmatpush.bf16.msra.mxu0 0
    %1807 = vmatpush.bf16.msra.mxu0 0
    %1808 = vmatpush.bf16.msra.mxu0 %v1283
    %1809 = vmatmul.bf16.gmra.mxu0 %v1220
    %v1810 = vpop.f32.mrf.mxu0
    %v1811 = vadd.f32 %v1798, %v1810
    %v1812 = vpop.f32.mrf.mxu0
    %1813 = vdwg.mxu0
    %1814 = vmatpush.bf16.msra.mxu0 %v1009
    %1815 = vmatpush.bf16.msra.mxu0 %v986
    %1816 = vmatpush.bf16.msra.mxu0 %v963
    %1817 = vmatpush.bf16.msra.mxu0 %v940
    %1818 = vmatpush.bf16.msra.mxu0 %v917
    %1819 = vmatpush.bf16.msra.mxu0 %v894
    %1820 = vmatpush.bf16.msra.mxu0 %v871
    %1821 = vmatpush.bf16.msra.mxu0 %v848
    %1822 = vmatmul.bf16.gmra.mxu0 %v230
    %v1823 = vpop.f32.mrf.mxu0
    %v1824 = vadd.f32 0.0, %v1823
    %v1825 = vpop.f32.mrf.mxu0
    %1826 = vdwg.mxu0
    %1827 = vmatpush.bf16.msra.mxu0 0
    %1828 = vmatpush.bf16.msra.mxu0 0
    %1829 = vmatpush.bf16.msra.mxu0 0
    %1830 = vmatpush.bf16.msra.mxu0 0
    %1831 = vmatpush.bf16.msra.mxu0 0
    %1832 = vmatpush.bf16.msra.mxu0 0
    %1833 = vmatpush.bf16.msra.mxu0 0
    %1834 = vmatpush.bf16.msra.mxu0 %v1286
    %1835 = vmatmul.bf16.gmra.mxu0 %v1220
    %v1836 = vpop.f32.mrf.mxu0
    %v1837 = vadd.f32 %v1824, %v1836
    %v1838 = vpop.f32.mrf.mxu0
    %1839 = vdwg.mxu0
    %1840 = vmatpush.bf16.msra.mxu0 %v1010
    %1841 = vmatpush.bf16.msra.mxu0 %v987
    %1842 = vmatpush.bf16.msra.mxu0 %v964
    %1843 = vmatpush.bf16.msra.mxu0 %v941
    %1844 = vmatpush.bf16.msra.mxu0 %v918
    %1845 = vmatpush.bf16.msra.mxu0 %v895
    %1846 = vmatpush.bf16.msra.mxu0 %v872
    %1847 = vmatpush.bf16.msra.mxu0 %v849
    %1848 = vmatmul.bf16.gmra.mxu0 %v230
    %v1849 = vpop.f32.mrf.mxu0
    %v1850 = vadd.f32 0.0, %v1849
    %v1851 = vpop.f32.mrf.mxu0
    %1852 = vdwg.mxu0
    %1853 = vmatpush.bf16.msra.mxu0 0
    %1854 = vmatpush.bf16.msra.mxu0 0
    %1855 = vmatpush.bf16.msra.mxu0 0
    %1856 = vmatpush.bf16.msra.mxu0 0
    %1857 = vmatpush.bf16.msra.mxu0 0
    %1858 = vmatpush.bf16.msra.mxu0 0
    %1859 = vmatpush.bf16.msra.mxu0 0
    %1860 = vmatpush.bf16.msra.mxu0 %v1289
    %1861 = vmatmul.bf16.gmra.mxu0 %v1220
    %v1862 = vpop.f32.mrf.mxu0
    %v1863 = vadd.f32 %v1850, %v1862
    %v1864 = vpop.f32.mrf.mxu0
    %1865 = vdwg.mxu0
    %1866 = vmatpush.bf16.msra.mxu0 %v1011
    %1867 = vmatpush.bf16.msra.mxu0 %v988
    %1868 = vmatpush.bf16.msra.mxu0 %v965
    %1869 = vmatpush.bf16.msra.mxu0 %v942
    %1870 = vmatpush.bf16.msra.mxu0 %v919
    %1871 = vmatpush.bf16.msra.mxu0 %v896
    %1872 = vmatpush.bf16.msra.mxu0 %v873
    %1873 = vmatpush.bf16.msra.mxu0 %v850
    %1874 = vmatmul.bf16.gmra.mxu0 %v230
    %v1875 = vpop.f32.mrf.mxu0
    %v1876 = vadd.f32 0.0, %v1875
    %v1877 = vpop.f32.mrf.mxu0
    %1878 = vdwg.mxu0
    %1879 = vmatpush.bf16.msra.mxu0 0
    %1880 = vmatpush.bf16.msra.mxu0 0
    %1881 = vmatpush.bf16.msra.mxu0 0
    %1882 = vmatpush.bf16.msra.mxu0 0
    %1883 = vmatpush.bf16.msra.mxu0 0
    %1884 = vmatpush.bf16.msra.mxu0 0
    %1885 = vmatpush.bf16.msra.mxu0 0
    %1886 = vmatpush.bf16.msra.mxu0 %v1292
    %1887 = vmatmul.bf16.gmra.mxu0 %v1220
    %v1888 = vpop.f32.mrf.mxu0
    %v1889 = vadd.f32 %v1876, %v1888
    %v1890 = vpop.f32.mrf.mxu0
    %1891 = vdwg.mxu0
    %s1892 = scalar_lea.vmem %s1, 1564
    %v1893 = vld [vmem:[%s1892] sm:$0xff]
    %v1894 = vld [vmem:[%s1892 + $0x8] sm:$0xff]
    %v1895 = vld [vmem:[%s1892 + $0x10] sm:$0xff]
    %v1896 = vld [vmem:[%s1892 + $0x18] sm:$0xff]
    %v1897 = vld [vmem:[%s1892 + $0x20] sm:$0xff]
    %v1898 = vld [vmem:[%s1892 + $0x28] sm:$0xff]
    %v1899 = vld [vmem:[%s1892 + $0x30] sm:$0xff]
    %v1900 = vld [vmem:[%s1892 + $0x38] sm:$0xff]
    %v1901 = vld [vmem:[%s1892 + $0x40] sm:$0xff]
    %v1902 = vld [vmem:[%s1892 + $0x48] sm:$0xff]
    %v1903 = vld [vmem:[%s1892 + $0x50] sm:$0xff]
    %v1904 = vld [vmem:[%s1892 + $0x58] sm:$0xf]
    %v1905 = vld [vmem:[%s1892 + $0x5c] sm:$0xff]
    %v1906 = vld [vmem:[%s1892 + $0x64] sm:$0xff]
    %v1907 = vld [vmem:[%s1892 + $0x6c] sm:$0xff]
    %v1908 = vld [vmem:[%s1892 + $0x74] sm:$0xff]
    %v1909 = vld [vmem:[%s1892 + $0x7c] sm:$0xff]
    %v1910 = vld [vmem:[%s1892 + $0x84] sm:$0xff]
    %v1911 = vld [vmem:[%s1892 + $0x8c] sm:$0xff]
    %v1912 = vld [vmem:[%s1892 + $0x94] sm:$0xff]
    %v1913 = vld [vmem:[%s1892 + $0x9c] sm:$0xff]
    %v1914 = vld [vmem:[%s1892 + $0xa4] sm:$0xff]
    %v1915 = vld [vmem:[%s1892 + $0xac] sm:$0xff]
    %v1916 = vld [vmem:[%s1892 + $0xb4] sm:$0xf]
    %v1917 = vld [vmem:[%s1892 + $0xb8] sm:$0xff]
    %v1918 = vld [vmem:[%s1892 + $0xc0] sm:$0xff]
    %v1919 = vld [vmem:[%s1892 + $0xc8] sm:$0xff]
    %v1920 = vld [vmem:[%s1892 + $0xd0] sm:$0xff]
    %v1921 = vld [vmem:[%s1892 + $0xd8] sm:$0xff]
    %v1922 = vld [vmem:[%s1892 + $0xe0] sm:$0xff]
    %v1923 = vld [vmem:[%s1892 + $0xe8] sm:$0xff]
    %v1924 = vld [vmem:[%s1892 + $0xf0] sm:$0xff]
    %v1925 = vld [vmem:[%s1892 + $0xf8] sm:$0xff]
    %v1926 = vld [vmem:[%s1892 + $0x100] sm:$0xff]
    %v1927 = vld [vmem:[%s1892 + $0x108] sm:$0xff]
    %v1928 = vld [vmem:[%s1892 + $0x110] sm:$0xf]
    %v1929 = vld [vmem:[%s1892 + $0x114] sm:$0xff]
    %v1930 = vld [vmem:[%s1892 + $0x11c] sm:$0xff]
    %v1931 = vld [vmem:[%s1892 + $0x124] sm:$0xff]
    %v1932 = vld [vmem:[%s1892 + $0x12c] sm:$0xff]
    %v1933 = vld [vmem:[%s1892 + $0x134] sm:$0xff]
    %v1934 = vld [vmem:[%s1892 + $0x13c] sm:$0xff]
    %v1935 = vld [vmem:[%s1892 + $0x144] sm:$0xff]
    %v1936 = vld [vmem:[%s1892 + $0x14c] sm:$0xff]
    %v1937 = vld [vmem:[%s1892 + $0x154] sm:$0xff]
    %v1938 = vld [vmem:[%s1892 + $0x15c] sm:$0xff]
    %v1939 = vld [vmem:[%s1892 + $0x164] sm:$0xff]
    %v1940 = vld [vmem:[%s1892 + $0x16c] sm:$0xf]
    %v1941 = vld [vmem:[%s1892 + $0x170] sm:$0xff]
    %v1942 = vld [vmem:[%s1892 + $0x178] sm:$0xff]
    %v1943 = vld [vmem:[%s1892 + $0x180] sm:$0xff]
    %v1944 = vld [vmem:[%s1892 + $0x188] sm:$0xff]
    %v1945 = vld [vmem:[%s1892 + $0x190] sm:$0xff]
    %v1946 = vld [vmem:[%s1892 + $0x198] sm:$0xff]
    %v1947 = vld [vmem:[%s1892 + $0x1a0] sm:$0xff]
    %v1948 = vld [vmem:[%s1892 + $0x1a8] sm:$0xff]
    %v1949 = vld [vmem:[%s1892 + $0x1b0] sm:$0xff]
    %v1950 = vld [vmem:[%s1892 + $0x1b8] sm:$0xff]
    %v1951 = vld [vmem:[%s1892 + $0x1c0] sm:$0xff]
    %v1952 = vld [vmem:[%s1892 + $0x1c8] sm:$0xf]
    %v1953 = vld [vmem:[%s1892 + $0x1cc] sm:$0xff]
    %v1954 = vld [vmem:[%s1892 + $0x1d4] sm:$0xff]
    %v1955 = vld [vmem:[%s1892 + $0x1dc] sm:$0xff]
    %v1956 = vld [vmem:[%s1892 + $0x1e4] sm:$0xff]
    %v1957 = vld [vmem:[%s1892 + $0x1ec] sm:$0xff]
    %v1958 = vld [vmem:[%s1892 + $0x1f4] sm:$0xff]
    %v1959 = vld [vmem:[%s1892 + $0x1fc] sm:$0xff]
    %v1960 = vld [vmem:[%s1892 + $0x204] sm:$0xff]
    %v1961 = vld [vmem:[%s1892 + $0x20c] sm:$0xff]
    %v1962 = vld [vmem:[%s1892 + $0x214] sm:$0xff]
    %v1963 = vld [vmem:[%s1892 + $0x21c] sm:$0xff]
    %v1964 = vld [vmem:[%s1892 + $0x224] sm:$0xf]
    %v1965 = vld [vmem:[%s1892 + $0x228] sm:$0xff]
    %v1966 = vld [vmem:[%s1892 + $0x230] sm:$0xff]
    %v1967 = vld [vmem:[%s1892 + $0x238] sm:$0xff]
    %v1968 = vld [vmem:[%s1892 + $0x240] sm:$0xff]
    %v1969 = vld [vmem:[%s1892 + $0x248] sm:$0xff]
    %v1970 = vld [vmem:[%s1892 + $0x250] sm:$0xff]
    %v1971 = vld [vmem:[%s1892 + $0x258] sm:$0xff]
    %v1972 = vld [vmem:[%s1892 + $0x260] sm:$0xff]
    %v1973 = vld [vmem:[%s1892 + $0x268] sm:$0xff]
    %v1974 = vld [vmem:[%s1892 + $0x270] sm:$0xff]
    %v1975 = vld [vmem:[%s1892 + $0x278] sm:$0xff]
    %v1976 = vld [vmem:[%s1892 + $0x280] sm:$0xf]
    %v1977 = vld [vmem:[%s1892 + $0x284] sm:$0xff]
    %v1978 = vld [vmem:[%s1892 + $0x28c] sm:$0xff]
    %v1979 = vld [vmem:[%s1892 + $0x294] sm:$0xff]
    %v1980 = vld [vmem:[%s1892 + $0x29c] sm:$0xff]
    %v1981 = vld [vmem:[%s1892 + $0x2a4] sm:$0xff]
    %v1982 = vld [vmem:[%s1892 + $0x2ac] sm:$0xff]
    %v1983 = vld [vmem:[%s1892 + $0x2b4] sm:$0xff]
    %v1984 = vld [vmem:[%s1892 + $0x2bc] sm:$0xff]
    %v1985 = vld [vmem:[%s1892 + $0x2c4] sm:$0xff]
    %v1986 = vld [vmem:[%s1892 + $0x2cc] sm:$0xff]
    %v1987 = vld [vmem:[%s1892 + $0x2d4] sm:$0xff]
    %v1988 = vld [vmem:[%s1892 + $0x2dc] sm:$0xf]
    %v1989 = vld [vmem:[%s1892 + $0x2e0] sm:$0xff]
    %v1990 = vld [vmem:[%s1892 + $0x2e8] sm:$0xff]
    %v1991 = vld [vmem:[%s1892 + $0x2f0] sm:$0xff]
    %v1992 = vld [vmem:[%s1892 + $0x2f8] sm:$0xff]
    %v1993 = vld [vmem:[%s1892 + $0x300] sm:$0xff]
    %v1994 = vld [vmem:[%s1892 + $0x308] sm:$0xff]
    %v1995 = vld [vmem:[%s1892 + $0x310] sm:$0xff]
    %v1996 = vld [vmem:[%s1892 + $0x318] sm:$0xff]
    %v1997 = vld [vmem:[%s1892 + $0x320] sm:$0xff]
    %v1998 = vld [vmem:[%s1892 + $0x328] sm:$0xff]
    %v1999 = vld [vmem:[%s1892 + $0x330] sm:$0xff]
    %v2000 = vld [vmem:[%s1892 + $0x338] sm:$0xf]
    %v2001 = vld [vmem:[%s1892 + $0x33c] sm:$0xff]
    %v2002 = vld [vmem:[%s1892 + $0x344] sm:$0xff]
    %v2003 = vld [vmem:[%s1892 + $0x34c] sm:$0xff]
    %v2004 = vld [vmem:[%s1892 + $0x354] sm:$0xff]
    %v2005 = vld [vmem:[%s1892 + $0x35c] sm:$0xff]
    %v2006 = vld [vmem:[%s1892 + $0x364] sm:$0xff]
    %v2007 = vld [vmem:[%s1892 + $0x36c] sm:$0xff]
    %v2008 = vld [vmem:[%s1892 + $0x374] sm:$0xff]
    %v2009 = vld [vmem:[%s1892 + $0x37c] sm:$0xff]
    %v2010 = vld [vmem:[%s1892 + $0x384] sm:$0xff]
    %v2011 = vld [vmem:[%s1892 + $0x38c] sm:$0xff]
    %v2012 = vld [vmem:[%s1892 + $0x394] sm:$0xf]
    %v2013 = vld [vmem:[%s1892 + $0x398] sm:$0xff]
    %v2014 = vld [vmem:[%s1892 + $0x3a0] sm:$0xff]
    %v2015 = vld [vmem:[%s1892 + $0x3a8] sm:$0xff]
    %v2016 = vld [vmem:[%s1892 + $0x3b0] sm:$0xff]
    %v2017 = vld [vmem:[%s1892 + $0x3b8] sm:$0xff]
    %v2018 = vld [vmem:[%s1892 + $0x3c0] sm:$0xff]
    %v2019 = vld [vmem:[%s1892 + $0x3c8] sm:$0xff]
    %v2020 = vld [vmem:[%s1892 + $0x3d0] sm:$0xff]
    %v2021 = vld [vmem:[%s1892 + $0x3d8] sm:$0xff]
    %v2022 = vld [vmem:[%s1892 + $0x3e0] sm:$0xff]
    %v2023 = vld [vmem:[%s1892 + $0x3e8] sm:$0xff]
    %v2024 = vld [vmem:[%s1892 + $0x3f0] sm:$0xf]
    %v2025 = vld [vmem:[%s1892 + $0x3f4] sm:$0xff]
    %v2026 = vld [vmem:[%s1892 + $0x3fc] sm:$0xff]
    %v2027 = vld [vmem:[%s1892 + $0x404] sm:$0xff]
    %v2028 = vld [vmem:[%s1892 + $0x40c] sm:$0xff]
    %v2029 = vld [vmem:[%s1892 + $0x414] sm:$0xff]
    %v2030 = vld [vmem:[%s1892 + $0x41c] sm:$0xff]
    %v2031 = vld [vmem:[%s1892 + $0x424] sm:$0xff]
    %v2032 = vld [vmem:[%s1892 + $0x42c] sm:$0xff]
    %v2033 = vld [vmem:[%s1892 + $0x434] sm:$0xff]
    %v2034 = vld [vmem:[%s1892 + $0x43c] sm:$0xff]
    %v2035 = vld [vmem:[%s1892 + $0x444] sm:$0xff]
    %v2036 = vld [vmem:[%s1892 + $0x44c] sm:$0xf]
    %v2037 = vld [vmem:[%s1892 + $0x450] sm:$0xff]
    %v2038 = vld [vmem:[%s1892 + $0x458] sm:$0xff]
    %v2039 = vld [vmem:[%s1892 + $0x460] sm:$0xff]
    %v2040 = vld [vmem:[%s1892 + $0x468] sm:$0xff]
    %v2041 = vld [vmem:[%s1892 + $0x470] sm:$0xff]
    %v2042 = vld [vmem:[%s1892 + $0x478] sm:$0xff]
    %v2043 = vld [vmem:[%s1892 + $0x480] sm:$0xff]
    %v2044 = vld [vmem:[%s1892 + $0x488] sm:$0xff]
    %v2045 = vld [vmem:[%s1892 + $0x490] sm:$0xff]
    %v2046 = vld [vmem:[%s1892 + $0x498] sm:$0xff]
    %v2047 = vld [vmem:[%s1892 + $0x4a0] sm:$0xff]
    %v2048 = vld [vmem:[%s1892 + $0x4a8] sm:$0xf]
    %v2049 = vld [vmem:[%s1892 + $0x4ac] sm:$0xff]
    %v2050 = vld [vmem:[%s1892 + $0x4b4] sm:$0xff]
    %v2051 = vld [vmem:[%s1892 + $0x4bc] sm:$0xff]
    %v2052 = vld [vmem:[%s1892 + $0x4c4] sm:$0xff]
    %v2053 = vld [vmem:[%s1892 + $0x4cc] sm:$0xff]
    %v2054 = vld [vmem:[%s1892 + $0x4d4] sm:$0xff]
    %v2055 = vld [vmem:[%s1892 + $0x4dc] sm:$0xff]
    %v2056 = vld [vmem:[%s1892 + $0x4e4] sm:$0xff]
    %v2057 = vld [vmem:[%s1892 + $0x4ec] sm:$0xff]
    %v2058 = vld [vmem:[%s1892 + $0x4f4] sm:$0xff]
    %v2059 = vld [vmem:[%s1892 + $0x4fc] sm:$0xff]
    %v2060 = vld [vmem:[%s1892 + $0x504] sm:$0xf]
    %v2061 = vld [vmem:[%s1892 + $0x508] sm:$0xff]
    %v2062 = vld [vmem:[%s1892 + $0x510] sm:$0xff]
    %v2063 = vld [vmem:[%s1892 + $0x518] sm:$0xff]
    %v2064 = vld [vmem:[%s1892 + $0x520] sm:$0xff]
    %v2065 = vld [vmem:[%s1892 + $0x528] sm:$0xff]
    %v2066 = vld [vmem:[%s1892 + $0x530] sm:$0xff]
    %v2067 = vld [vmem:[%s1892 + $0x538] sm:$0xff]
    %v2068 = vld [vmem:[%s1892 + $0x540] sm:$0xff]
    %v2069 = vld [vmem:[%s1892 + $0x548] sm:$0xff]
    %v2070 = vld [vmem:[%s1892 + $0x550] sm:$0xff]
    %v2071 = vld [vmem:[%s1892 + $0x558] sm:$0xff]
    %v2072 = vld [vmem:[%s1892 + $0x560] sm:$0xf]
    %v2073 = vld [vmem:[%s1892 + $0x564] sm:$0xff]
    %v2074 = vld [vmem:[%s1892 + $0x56c] sm:$0xff]
    %v2075 = vld [vmem:[%s1892 + $0x574] sm:$0xff]
    %v2076 = vld [vmem:[%s1892 + $0x57c] sm:$0xff]
    %v2077 = vld [vmem:[%s1892 + $0x584] sm:$0xff]
    %v2078 = vld [vmem:[%s1892 + $0x58c] sm:$0xff]
    %v2079 = vld [vmem:[%s1892 + $0x594] sm:$0xff]
    %v2080 = vld [vmem:[%s1892 + $0x59c] sm:$0xff]
    %v2081 = vld [vmem:[%s1892 + $0x5a4] sm:$0xff]
    %v2082 = vld [vmem:[%s1892 + $0x5ac] sm:$0xff]
    %v2083 = vld [vmem:[%s1892 + $0x5b4] sm:$0xff]
    %v2084 = vld [vmem:[%s1892 + $0x5bc] sm:$0xf]
    %v2085 = vld [vmem:[%s1892 + $0x5c0] sm:$0x11]
    %v2086 = vld [vmem:[%s1892 + $0x5c8] sm:$0x11]
    %v2087 = vld [vmem:[%s1892 + $0x5d0] sm:$0x11]
    %v2088 = vld [vmem:[%s1892 + $0x5d8] sm:$0x11]
    %v2089 = vld [vmem:[%s1892 + $0x5e0] sm:$0x11]
    %v2090 = vld [vmem:[%s1892 + $0x5e8] sm:$0x11]
    %v2091 = vld [vmem:[%s1892 + $0x5f0] sm:$0x11]
    %v2092 = vld [vmem:[%s1892 + $0x5f8] sm:$0x11]
    %v2093 = vld [vmem:[%s1892 + $0x600] sm:$0x11]
    %v2094 = vld [vmem:[%s1892 + $0x608] sm:$0x11]
    %v2095 = vld [vmem:[%s1892 + $0x610] sm:$0x11]
    %v2096 = vld [vmem:[%s1892 + $0x618] sm:$0x1]
    %v2301 = vunpack.c.l.b16 %v1893
    %v2302 = vunpack.c.h.b16 %v1893
    %v2303 = vunpack.c.l.b16 %v1894
    %v2304 = vunpack.c.h.b16 %v1894
    %v2305 = vunpack.c.l.b16 %v1895
    %v2306 = vunpack.c.h.b16 %v1895
    %v2307 = vunpack.c.l.b16 %v1896
    %v2308 = vunpack.c.h.b16 %v1896
    %v2309 = vunpack.c.l.b16 %v1897
    %v2310 = vunpack.c.h.b16 %v1897
    %v2311 = vunpack.c.l.b16 %v1898
    %v2312 = vunpack.c.h.b16 %v1898
    %v2313 = vunpack.c.l.b16 %v1899
    %v2314 = vunpack.c.h.b16 %v1899
    %v2315 = vunpack.c.l.b16 %v1900
    %v2316 = vunpack.c.h.b16 %v1900
    %v2317 = vunpack.c.l.b16 %v1901
    %v2318 = vunpack.c.h.b16 %v1901
    %v2319 = vunpack.c.l.b16 %v1902
    %v2320 = vunpack.c.h.b16 %v1902
    %v2321 = vunpack.c.l.b16 %v1903
    %v2322 = vunpack.c.h.b16 %v1903
    %v2323 = vunpack.c.l.b16 %v1904
    %v2324 = vunpack.c.l.b16 %v1905
    %v2325 = vunpack.c.h.b16 %v1905
    %v2326 = vunpack.c.l.b16 %v1906
    %v2327 = vunpack.c.h.b16 %v1906
    %v2328 = vunpack.c.l.b16 %v1907
    %v2329 = vunpack.c.h.b16 %v1907
    %v2330 = vunpack.c.l.b16 %v1908
    %v2331 = vunpack.c.h.b16 %v1908
    %v2332 = vunpack.c.l.b16 %v1909
    %v2333 = vunpack.c.h.b16 %v1909
    %v2334 = vunpack.c.l.b16 %v1910
    %v2335 = vunpack.c.h.b16 %v1910
    %v2336 = vunpack.c.l.b16 %v1911
    %v2337 = vunpack.c.h.b16 %v1911
    %v2338 = vunpack.c.l.b16 %v1912
    %v2339 = vunpack.c.h.b16 %v1912
    %v2340 = vunpack.c.l.b16 %v1913
    %v2341 = vunpack.c.h.b16 %v1913
    %v2342 = vunpack.c.l.b16 %v1914
    %v2343 = vunpack.c.h.b16 %v1914
    %v2344 = vunpack.c.l.b16 %v1915
    %v2345 = vunpack.c.h.b16 %v1915
    %v2346 = vunpack.c.l.b16 %v1916
    %v2347 = vunpack.c.l.b16 %v1917
    %v2348 = vunpack.c.h.b16 %v1917
    %v2349 = vunpack.c.l.b16 %v1918
    %v2350 = vunpack.c.h.b16 %v1918
    %v2351 = vunpack.c.l.b16 %v1919
    %v2352 = vunpack.c.h.b16 %v1919
    %v2353 = vunpack.c.l.b16 %v1920
    %v2354 = vunpack.c.h.b16 %v1920
    %v2355 = vunpack.c.l.b16 %v1921
    %v2356 = vunpack.c.h.b16 %v1921
    %v2357 = vunpack.c.l.b16 %v1922
    %v2358 = vunpack.c.h.b16 %v1922
    %v2359 = vunpack.c.l.b16 %v1923
    %v2360 = vunpack.c.h.b16 %v1923
    %v2361 = vunpack.c.l.b16 %v1924
    %v2362 = vunpack.c.h.b16 %v1924
    %v2363 = vunpack.c.l.b16 %v1925
    %v2364 = vunpack.c.h.b16 %v1925
    %v2365 = vunpack.c.l.b16 %v1926
    %v2366 = vunpack.c.h.b16 %v1926
    %v2367 = vunpack.c.l.b16 %v1927
    %v2368 = vunpack.c.h.b16 %v1927
    %v2369 = vunpack.c.l.b16 %v1928
    %v2370 = vunpack.c.l.b16 %v1929
    %v2371 = vunpack.c.h.b16 %v1929
    %v2372 = vunpack.c.l.b16 %v1930
    %v2373 = vunpack.c.h.b16 %v1930
    %v2374 = vunpack.c.l.b16 %v1931
    %v2375 = vunpack.c.h.b16 %v1931
    %v2376 = vunpack.c.l.b16 %v1932
    %v2377 = vunpack.c.h.b16 %v1932
    %v2378 = vunpack.c.l.b16 %v1933
    %v2379 = vunpack.c.h.b16 %v1933
    %v2380 = vunpack.c.l.b16 %v1934
    %v2381 = vunpack.c.h.b16 %v1934
    %v2382 = vunpack.c.l.b16 %v1935
    %v2383 = vunpack.c.h.b16 %v1935
    %v2384 = vunpack.c.l.b16 %v1936
    %v2385 = vunpack.c.h.b16 %v1936
    %v2386 = vunpack.c.l.b16 %v1937
    %v2387 = vunpack.c.h.b16 %v1937
    %v2388 = vunpack.c.l.b16 %v1938
    %v2389 = vunpack.c.h.b16 %v1938
    %v2390 = vunpack.c.l.b16 %v1939
    %v2391 = vunpack.c.h.b16 %v1939
    %v2392 = vunpack.c.l.b16 %v1940
    %v2393 = vunpack.c.l.b16 %v1941
    %v2394 = vunpack.c.h.b16 %v1941
    %v2395 = vunpack.c.l.b16 %v1942
    %v2396 = vunpack.c.h.b16 %v1942
    %v2397 = vunpack.c.l.b16 %v1943
    %v2398 = vunpack.c.h.b16 %v1943
    %v2399 = vunpack.c.l.b16 %v1944
    %v2400 = vunpack.c.h.b16 %v1944
    %v2401 = vunpack.c.l.b16 %v1945
    %v2402 = vunpack.c.h.b16 %v1945
    %v2403 = vunpack.c.l.b16 %v1946
    %v2404 = vunpack.c.h.b16 %v1946
    %v2405 = vunpack.c.l.b16 %v1947
    %v2406 = vunpack.c.h.b16 %v1947
    %v2407 = vunpack.c.l.b16 %v1948
    %v2408 = vunpack.c.h.b16 %v1948
    %v2409 = vunpack.c.l.b16 %v1949
    %v2410 = vunpack.c.h.b16 %v1949
    %v2411 = vunpack.c.l.b16 %v1950
    %v2412 = vunpack.c.h.b16 %v1950
    %v2413 = vunpack.c.l.b16 %v1951
    %v2414 = vunpack.c.h.b16 %v1951
    %v2415 = vunpack.c.l.b16 %v1952
    %v2416 = vunpack.c.l.b16 %v1953
    %v2417 = vunpack.c.h.b16 %v1953
    %v2418 = vunpack.c.l.b16 %v1954
    %v2419 = vunpack.c.h.b16 %v1954
    %v2420 = vunpack.c.l.b16 %v1955
    %v2421 = vunpack.c.h.b16 %v1955
    %v2422 = vunpack.c.l.b16 %v1956
    %v2423 = vunpack.c.h.b16 %v1956
    %v2424 = vunpack.c.l.b16 %v1957
    %v2425 = vunpack.c.h.b16 %v1957
    %v2426 = vunpack.c.l.b16 %v1958
    %v2427 = vunpack.c.h.b16 %v1958
    %v2428 = vunpack.c.l.b16 %v1959
    %v2429 = vunpack.c.h.b16 %v1959
    %v2430 = vunpack.c.l.b16 %v1960
    %v2431 = vunpack.c.h.b16 %v1960
    %v2432 = vunpack.c.l.b16 %v1961
    %v2433 = vunpack.c.h.b16 %v1961
    %v2434 = vunpack.c.l.b16 %v1962
    %v2435 = vunpack.c.h.b16 %v1962
    %v2436 = vunpack.c.l.b16 %v1963
    %v2437 = vunpack.c.h.b16 %v1963
    %v2438 = vunpack.c.l.b16 %v1964
    %v2439 = vunpack.c.l.b16 %v1965
    %v2440 = vunpack.c.h.b16 %v1965
    %v2441 = vunpack.c.l.b16 %v1966
    %v2442 = vunpack.c.h.b16 %v1966
    %v2443 = vunpack.c.l.b16 %v1967
    %v2444 = vunpack.c.h.b16 %v1967
    %v2445 = vunpack.c.l.b16 %v1968
    %v2446 = vunpack.c.h.b16 %v1968
    %v2447 = vunpack.c.l.b16 %v1969
    %v2448 = vunpack.c.h.b16 %v1969
    %v2449 = vunpack.c.l.b16 %v1970
    %v2450 = vunpack.c.h.b16 %v1970
    %v2451 = vunpack.c.l.b16 %v1971
    %v2452 = vunpack.c.h.b16 %v1971
    %v2453 = vunpack.c.l.b16 %v1972
    %v2454 = vunpack.c.h.b16 %v1972
    %v2455 = vunpack.c.l.b16 %v1973
    %v2456 = vunpack.c.h.b16 %v1973
    %v2457 = vunpack.c.l.b16 %v1974
    %v2458 = vunpack.c.h.b16 %v1974
    %v2459 = vunpack.c.l.b16 %v1975
    %v2460 = vunpack.c.h.b16 %v1975
    %v2461 = vunpack.c.l.b16 %v1976
    %v2462 = vunpack.c.l.b16 %v1977
    %v2463 = vunpack.c.h.b16 %v1977
    %v2464 = vunpack.c.l.b16 %v1978
    %v2465 = vunpack.c.h.b16 %v1978
    %v2466 = vunpack.c.l.b16 %v1979
    %v2467 = vunpack.c.h.b16 %v1979
    %v2468 = vunpack.c.l.b16 %v1980
    %v2469 = vunpack.c.h.b16 %v1980
    %v2470 = vunpack.c.l.b16 %v1981
    %v2471 = vunpack.c.h.b16 %v1981
    %v2472 = vunpack.c.l.b16 %v1982
    %v2473 = vunpack.c.h.b16 %v1982
    %v2474 = vunpack.c.l.b16 %v1983
    %v2475 = vunpack.c.h.b16 %v1983
    %v2476 = vunpack.c.l.b16 %v1984
    %v2477 = vunpack.c.h.b16 %v1984
    %v2478 = vunpack.c.l.b16 %v1985
    %v2479 = vunpack.c.h.b16 %v1985
    %v2480 = vunpack.c.l.b16 %v1986
    %v2481 = vunpack.c.h.b16 %v1986
    %v2482 = vunpack.c.l.b16 %v1987
    %v2483 = vunpack.c.h.b16 %v1987
    %v2484 = vunpack.c.l.b16 %v1988
    %v2485 = vunpack.c.l.b16 %v1989
    %v2486 = vunpack.c.h.b16 %v1989
    %v2487 = vunpack.c.l.b16 %v1990
    %v2488 = vunpack.c.h.b16 %v1990
    %v2489 = vunpack.c.l.b16 %v1991
    %v2490 = vunpack.c.h.b16 %v1991
    %v2491 = vunpack.c.l.b16 %v1992
    %v2492 = vunpack.c.h.b16 %v1992
    %v2493 = vunpack.c.l.b16 %v1993
    %v2494 = vunpack.c.h.b16 %v1993
    %v2495 = vunpack.c.l.b16 %v1994
    %v2496 = vunpack.c.h.b16 %v1994
    %v2497 = vunpack.c.l.b16 %v1995
    %v2498 = vunpack.c.h.b16 %v1995
    %v2499 = vunpack.c.l.b16 %v1996
    %v2500 = vunpack.c.h.b16 %v1996
    %v2501 = vunpack.c.l.b16 %v1997
    %v2502 = vunpack.c.h.b16 %v1997
    %v2503 = vunpack.c.l.b16 %v1998
    %v2504 = vunpack.c.h.b16 %v1998
    %v2505 = vunpack.c.l.b16 %v1999
    %v2506 = vunpack.c.h.b16 %v1999
    %v2507 = vunpack.c.l.b16 %v2000
    %v2508 = vunpack.c.l.b16 %v2001
    %v2509 = vunpack.c.h.b16 %v2001
    %v2510 = vunpack.c.l.b16 %v2002
    %v2511 = vunpack.c.h.b16 %v2002
    %v2512 = vunpack.c.l.b16 %v2003
    %v2513 = vunpack.c.h.b16 %v2003
    %v2514 = vunpack.c.l.b16 %v2004
    %v2515 = vunpack.c.h.b16 %v2004
    %v2516 = vunpack.c.l.b16 %v2005
    %v2517 = vunpack.c.h.b16 %v2005
    %v2518 = vunpack.c.l.b16 %v2006
    %v2519 = vunpack.c.h.b16 %v2006
    %v2520 = vunpack.c.l.b16 %v2007
    %v2521 = vunpack.c.h.b16 %v2007
    %v2522 = vunpack.c.l.b16 %v2008
    %v2523 = vunpack.c.h.b16 %v2008
    %v2524 = vunpack.c.l.b16 %v2009
    %v2525 = vunpack.c.h.b16 %v2009
    %v2526 = vunpack.c.l.b16 %v2010
    %v2527 = vunpack.c.h.b16 %v2010
    %v2528 = vunpack.c.l.b16 %v2011
    %v2529 = vunpack.c.h.b16 %v2011
    %v2530 = vunpack.c.l.b16 %v2012
    %v2531 = vunpack.c.l.b16 %v2013
    %v2532 = vunpack.c.h.b16 %v2013
    %v2533 = vunpack.c.l.b16 %v2014
    %v2534 = vunpack.c.h.b16 %v2014
    %v2535 = vunpack.c.l.b16 %v2015
    %v2536 = vunpack.c.h.b16 %v2015
    %v2537 = vunpack.c.l.b16 %v2016
    %v2538 = vunpack.c.h.b16 %v2016
    %v2539 = vunpack.c.l.b16 %v2017
    %v2540 = vunpack.c.h.b16 %v2017
    %v2541 = vunpack.c.l.b16 %v2018
    %v2542 = vunpack.c.h.b16 %v2018
    %v2543 = vunpack.c.l.b16 %v2019
    %v2544 = vunpack.c.h.b16 %v2019
    %v2545 = vunpack.c.l.b16 %v2020
    %v2546 = vunpack.c.h.b16 %v2020
    %v2547 = vunpack.c.l.b16 %v2021
    %v2548 = vunpack.c.h.b16 %v2021
    %v2549 = vunpack.c.l.b16 %v2022
    %v2550 = vunpack.c.h.b16 %v2022
    %v2551 = vunpack.c.l.b16 %v2023
    %v2552 = vunpack.c.h.b16 %v2023
    %v2553 = vunpack.c.l.b16 %v2024
    %v2554 = vunpack.c.l.b16 %v2025
    %v2555 = vunpack.c.h.b16 %v2025
    %v2556 = vunpack.c.l.b16 %v2026
    %v2557 = vunpack.c.h.b16 %v2026
    %v2558 = vunpack.c.l.b16 %v2027
    %v2559 = vunpack.c.h.b16 %v2027
    %v2560 = vunpack.c.l.b16 %v2028
    %v2561 = vunpack.c.h.b16 %v2028
    %v2562 = vunpack.c.l.b16 %v2029
    %v2563 = vunpack.c.h.b16 %v2029
    %v2564 = vunpack.c.l.b16 %v2030
    %v2565 = vunpack.c.h.b16 %v2030
    %v2566 = vunpack.c.l.b16 %v2031
    %v2567 = vunpack.c.h.b16 %v2031
    %v2568 = vunpack.c.l.b16 %v2032
    %v2569 = vunpack.c.h.b16 %v2032
    %v2570 = vunpack.c.l.b16 %v2033
    %v2571 = vunpack.c.h.b16 %v2033
    %v2572 = vunpack.c.l.b16 %v2034
    %v2573 = vunpack.c.h.b16 %v2034
    %v2574 = vunpack.c.l.b16 %v2035
    %v2575 = vunpack.c.h.b16 %v2035
    %v2576 = vunpack.c.l.b16 %v2036
    %v2577 = vunpack.c.l.b16 %v2037
    %v2578 = vunpack.c.h.b16 %v2037
    %v2579 = vunpack.c.l.b16 %v2038
    %v2580 = vunpack.c.h.b16 %v2038
    %v2581 = vunpack.c.l.b16 %v2039
    %v2582 = vunpack.c.h.b16 %v2039
    %v2583 = vunpack.c.l.b16 %v2040
    %v2584 = vunpack.c.h.b16 %v2040
    %v2585 = vunpack.c.l.b16 %v2041
    %v2586 = vunpack.c.h.b16 %v2041
    %v2587 = vunpack.c.l.b16 %v2042
    %v2588 = vunpack.c.h.b16 %v2042
    %v2589 = vunpack.c.l.b16 %v2043
    %v2590 = vunpack.c.h.b16 %v2043
    %v2591 = vunpack.c.l.b16 %v2044
    %v2592 = vunpack.c.h.b16 %v2044
    %v2593 = vunpack.c.l.b16 %v2045
    %v2594 = vunpack.c.h.b16 %v2045
    %v2595 = vunpack.c.l.b16 %v2046
    %v2596 = vunpack.c.h.b16 %v2046
    %v2597 = vunpack.c.l.b16 %v2047
    %v2598 = vunpack.c.h.b16 %v2047
    %v2599 = vunpack.c.l.b16 %v2048
    %v2600 = vunpack.c.l.b16 %v2049
    %v2601 = vunpack.c.h.b16 %v2049
    %v2602 = vunpack.c.l.b16 %v2050
    %v2603 = vunpack.c.h.b16 %v2050
    %v2604 = vunpack.c.l.b16 %v2051
    %v2605 = vunpack.c.h.b16 %v2051
    %v2606 = vunpack.c.l.b16 %v2052
    %v2607 = vunpack.c.h.b16 %v2052
    %v2608 = vunpack.c.l.b16 %v2053
    %v2609 = vunpack.c.h.b16 %v2053
    %v2610 = vunpack.c.l.b16 %v2054
    %v2611 = vunpack.c.h.b16 %v2054
    %v2612 = vunpack.c.l.b16 %v2055
    %v2613 = vunpack.c.h.b16 %v2055
    %v2614 = vunpack.c.l.b16 %v2056
    %v2615 = vunpack.c.h.b16 %v2056
    %v2616 = vunpack.c.l.b16 %v2057
    %v2617 = vunpack.c.h.b16 %v2057
    %v2618 = vunpack.c.l.b16 %v2058
    %v2619 = vunpack.c.h.b16 %v2058
    %v2620 = vunpack.c.l.b16 %v2059
    %v2621 = vunpack.c.h.b16 %v2059
    %v2622 = vunpack.c.l.b16 %v2060
    %v2623 = vunpack.c.l.b16 %v2061
    %v2624 = vunpack.c.h.b16 %v2061
    %v2625 = vunpack.c.l.b16 %v2062
    %v2626 = vunpack.c.h.b16 %v2062
    %v2627 = vunpack.c.l.b16 %v2063
    %v2628 = vunpack.c.h.b16 %v2063
    %v2629 = vunpack.c.l.b16 %v2064
    %v2630 = vunpack.c.h.b16 %v2064
    %v2631 = vunpack.c.l.b16 %v2065
    %v2632 = vunpack.c.h.b16 %v2065
    %v2633 = vunpack.c.l.b16 %v2066
    %v2634 = vunpack.c.h.b16 %v2066
    %v2635 = vunpack.c.l.b16 %v2067
    %v2636 = vunpack.c.h.b16 %v2067
    %v2637 = vunpack.c.l.b16 %v2068
    %v2638 = vunpack.c.h.b16 %v2068
    %v2639 = vunpack.c.l.b16 %v2069
    %v2640 = vunpack.c.h.b16 %v2069
    %v2641 = vunpack.c.l.b16 %v2070
    %v2642 = vunpack.c.h.b16 %v2070
    %v2643 = vunpack.c.l.b16 %v2071
    %v2644 = vunpack.c.h.b16 %v2071
    %v2645 = vunpack.c.l.b16 %v2072
    %v2646 = vunpack.c.l.b16 %v2073
    %v2647 = vunpack.c.h.b16 %v2073
    %v2648 = vunpack.c.l.b16 %v2074
    %v2649 = vunpack.c.h.b16 %v2074
    %v2650 = vunpack.c.l.b16 %v2075
    %v2651 = vunpack.c.h.b16 %v2075
    %v2652 = vunpack.c.l.b16 %v2076
    %v2653 = vunpack.c.h.b16 %v2076
    %v2654 = vunpack.c.l.b16 %v2077
    %v2655 = vunpack.c.h.b16 %v2077
    %v2656 = vunpack.c.l.b16 %v2078
    %v2657 = vunpack.c.h.b16 %v2078
    %v2658 = vunpack.c.l.b16 %v2079
    %v2659 = vunpack.c.h.b16 %v2079
    %v2660 = vunpack.c.l.b16 %v2080
    %v2661 = vunpack.c.h.b16 %v2080
    %v2662 = vunpack.c.l.b16 %v2081
    %v2663 = vunpack.c.h.b16 %v2081
    %v2664 = vunpack.c.l.b16 %v2082
    %v2665 = vunpack.c.h.b16 %v2082
    %v2666 = vunpack.c.l.b16 %v2083
    %v2667 = vunpack.c.h.b16 %v2083
    %v2668 = vunpack.c.l.b16 %v2084
    %v2669 = vunpack.c.l.b16 %v2085
    %v2670 = vunpack.c.h.b16 %v2085
    %v2671 = vunpack.c.l.b16 %v2086
    %v2672 = vunpack.c.h.b16 %v2086
    %v2673 = vunpack.c.l.b16 %v2087
    %v2674 = vunpack.c.h.b16 %v2087
    %v2675 = vunpack.c.l.b16 %v2088
    %v2676 = vunpack.c.h.b16 %v2088
    %v2677 = vunpack.c.l.b16 %v2089
    %v2678 = vunpack.c.h.b16 %v2089
    %v2679 = vunpack.c.l.b16 %v2090
    %v2680 = vunpack.c.h.b16 %v2090
    %v2681 = vunpack.c.l.b16 %v2091
    %v2682 = vunpack.c.h.b16 %v2091
    %v2683 = vunpack.c.l.b16 %v2092
    %v2684 = vunpack.c.h.b16 %v2092
    %v2685 = vunpack.c.l.b16 %v2093
    %v2686 = vunpack.c.h.b16 %v2093
    %v2687 = vunpack.c.l.b16 %v2094
    %v2688 = vunpack.c.h.b16 %v2094
    %v2689 = vunpack.c.l.b16 %v2095
    %v2690 = vunpack.c.h.b16 %v2095
    %v2691 = vunpack.c.l.b16 %v2096
    %v2692 = vpack.c.b16 %v2324, %v2301
    %v2693 = vpack.c.b16 %v2325, %v2302
    %v2694 = vpack.c.b16 %v2326, %v2303
    %v2695 = vpack.c.b16 %v2327, %v2304
    %v2696 = vpack.c.b16 %v2328, %v2305
    %v2697 = vpack.c.b16 %v2329, %v2306
    %v2698 = vpack.c.b16 %v2330, %v2307
    %v2699 = vpack.c.b16 %v2331, %v2308
    %v2700 = vpack.c.b16 %v2332, %v2309
    %v2701 = vpack.c.b16 %v2333, %v2310
    %v2702 = vpack.c.b16 %v2334, %v2311
    %v2703 = vpack.c.b16 %v2335, %v2312
    %v2704 = vpack.c.b16 %v2336, %v2313
    %v2705 = vpack.c.b16 %v2337, %v2314
    %v2706 = vpack.c.b16 %v2338, %v2315
    %v2707 = vpack.c.b16 %v2339, %v2316
    %v2708 = vpack.c.b16 %v2340, %v2317
    %v2709 = vpack.c.b16 %v2341, %v2318
    %v2710 = vpack.c.b16 %v2342, %v2319
    %v2711 = vpack.c.b16 %v2343, %v2320
    %v2712 = vpack.c.b16 %v2344, %v2321
    %v2713 = vpack.c.b16 %v2345, %v2322
    %v2714 = vpack.c.b16 %v2346, %v2323
    %v2715 = vpack.c.b16 %v2370, %v2347
    %v2716 = vpack.c.b16 %v2371, %v2348
    %v2717 = vpack.c.b16 %v2372, %v2349
    %v2718 = vpack.c.b16 %v2373, %v2350
    %v2719 = vpack.c.b16 %v2374, %v2351
    %v2720 = vpack.c.b16 %v2375, %v2352
    %v2721 = vpack.c.b16 %v2376, %v2353
    %v2722 = vpack.c.b16 %v2377, %v2354
    %v2723 = vpack.c.b16 %v2378, %v2355
    %v2724 = vpack.c.b16 %v2379, %v2356
    %v2725 = vpack.c.b16 %v2380, %v2357
    %v2726 = vpack.c.b16 %v2381, %v2358
    %v2727 = vpack.c.b16 %v2382, %v2359
    %v2728 = vpack.c.b16 %v2383, %v2360
    %v2729 = vpack.c.b16 %v2384, %v2361
    %v2730 = vpack.c.b16 %v2385, %v2362
    %v2731 = vpack.c.b16 %v2386, %v2363
    %v2732 = vpack.c.b16 %v2387, %v2364
    %v2733 = vpack.c.b16 %v2388, %v2365
    %v2734 = vpack.c.b16 %v2389, %v2366
    %v2735 = vpack.c.b16 %v2390, %v2367
    %v2736 = vpack.c.b16 %v2391, %v2368
    %v2737 = vpack.c.b16 %v2392, %v2369
    %v2738 = vpack.c.b16 %v2416, %v2393
    %v2739 = vpack.c.b16 %v2417, %v2394
    %v2740 = vpack.c.b16 %v2418, %v2395
    %v2741 = vpack.c.b16 %v2419, %v2396
    %v2742 = vpack.c.b16 %v2420, %v2397
    %v2743 = vpack.c.b16 %v2421, %v2398
    %v2744 = vpack.c.b16 %v2422, %v2399
    %v2745 = vpack.c.b16 %v2423, %v2400
    %v2746 = vpack.c.b16 %v2424, %v2401
    %v2747 = vpack.c.b16 %v2425, %v2402
    %v2748 = vpack.c.b16 %v2426, %v2403
    %v2749 = vpack.c.b16 %v2427, %v2404
    %v2750 = vpack.c.b16 %v2428, %v2405
    %v2751 = vpack.c.b16 %v2429, %v2406
    %v2752 = vpack.c.b16 %v2430, %v2407
    %v2753 = vpack.c.b16 %v2431, %v2408
    %v2754 = vpack.c.b16 %v2432, %v2409
    %v2755 = vpack.c.b16 %v2433, %v2410
    %v2756 = vpack.c.b16 %v2434, %v2411
    %v2757 = vpack.c.b16 %v2435, %v2412
    %v2758 = vpack.c.b16 %v2436, %v2413
    %v2759 = vpack.c.b16 %v2437, %v2414
    %v2760 = vpack.c.b16 %v2438, %v2415
    %v2761 = vpack.c.b16 %v2462, %v2439
    %v2762 = vpack.c.b16 %v2463, %v2440
    %v2763 = vpack.c.b16 %v2464, %v2441
    %v2764 = vpack.c.b16 %v2465, %v2442
    %v2765 = vpack.c.b16 %v2466, %v2443
    %v2766 = vpack.c.b16 %v2467, %v2444
    %v2767 = vpack.c.b16 %v2468, %v2445
    %v2768 = vpack.c.b16 %v2469, %v2446
    %v2769 = vpack.c.b16 %v2470, %v2447
    %v2770 = vpack.c.b16 %v2471, %v2448
    %v2771 = vpack.c.b16 %v2472, %v2449
    %v2772 = vpack.c.b16 %v2473, %v2450
    %v2773 = vpack.c.b16 %v2474, %v2451
    %v2774 = vpack.c.b16 %v2475, %v2452
    %v2775 = vpack.c.b16 %v2476, %v2453
    %v2776 = vpack.c.b16 %v2477, %v2454
    %v2777 = vpack.c.b16 %v2478, %v2455
    %v2778 = vpack.c.b16 %v2479, %v2456
    %v2779 = vpack.c.b16 %v2480, %v2457
    %v2780 = vpack.c.b16 %v2481, %v2458
    %v2781 = vpack.c.b16 %v2482, %v2459
    %v2782 = vpack.c.b16 %v2483, %v2460
    %v2783 = vpack.c.b16 %v2484, %v2461
    %v2784 = vpack.c.b16 %v2508, %v2485
    %v2785 = vpack.c.b16 %v2509, %v2486
    %v2786 = vpack.c.b16 %v2510, %v2487
    %v2787 = vpack.c.b16 %v2511, %v2488
    %v2788 = vpack.c.b16 %v2512, %v2489
    %v2789 = vpack.c.b16 %v2513, %v2490
    %v2790 = vpack.c.b16 %v2514, %v2491
    %v2791 = vpack.c.b16 %v2515, %v2492
    %v2792 = vpack.c.b16 %v2516, %v2493
    %v2793 = vpack.c.b16 %v2517, %v2494
    %v2794 = vpack.c.b16 %v2518, %v2495
    %v2795 = vpack.c.b16 %v2519, %v2496
    %v2796 = vpack.c.b16 %v2520, %v2497
    %v2797 = vpack.c.b16 %v2521, %v2498
    %v2798 = vpack.c.b16 %v2522, %v2499
    %v2799 = vpack.c.b16 %v2523, %v2500
    %v2800 = vpack.c.b16 %v2524, %v2501
    %v2801 = vpack.c.b16 %v2525, %v2502
    %v2802 = vpack.c.b16 %v2526, %v2503
    %v2803 = vpack.c.b16 %v2527, %v2504
    %v2804 = vpack.c.b16 %v2528, %v2505
    %v2805 = vpack.c.b16 %v2529, %v2506
    %v2806 = vpack.c.b16 %v2530, %v2507
    %v2807 = vpack.c.b16 %v2554, %v2531
    %v2808 = vpack.c.b16 %v2555, %v2532
    %v2809 = vpack.c.b16 %v2556, %v2533
    %v2810 = vpack.c.b16 %v2557, %v2534
    %v2811 = vpack.c.b16 %v2558, %v2535
    %v2812 = vpack.c.b16 %v2559, %v2536
    %v2813 = vpack.c.b16 %v2560, %v2537
    %v2814 = vpack.c.b16 %v2561, %v2538
    %v2815 = vpack.c.b16 %v2562, %v2539
    %v2816 = vpack.c.b16 %v2563, %v2540
    %v2817 = vpack.c.b16 %v2564, %v2541
    %v2818 = vpack.c.b16 %v2565, %v2542
    %v2819 = vpack.c.b16 %v2566, %v2543
    %v2820 = vpack.c.b16 %v2567, %v2544
    %v2821 = vpack.c.b16 %v2568, %v2545
    %v2822 = vpack.c.b16 %v2569, %v2546
    %v2823 = vpack.c.b16 %v2570, %v2547
    %v2824 = vpack.c.b16 %v2571, %v2548
    %v2825 = vpack.c.b16 %v2572, %v2549
    %v2826 = vpack.c.b16 %v2573, %v2550
    %v2827 = vpack.c.b16 %v2574, %v2551
    %v2828 = vpack.c.b16 %v2575, %v2552
    %v2829 = vpack.c.b16 %v2576, %v2553
    %v2830 = vpack.c.b16 %v2600, %v2577
    %v2831 = vpack.c.b16 %v2601, %v2578
    %v2832 = vpack.c.b16 %v2602, %v2579
    %v2833 = vpack.c.b16 %v2603, %v2580
    %v2834 = vpack.c.b16 %v2604, %v2581
    %v2835 = vpack.c.b16 %v2605, %v2582
    %v2836 = vpack.c.b16 %v2606, %v2583
    %v2837 = vpack.c.b16 %v2607, %v2584
    %v2838 = vpack.c.b16 %v2608, %v2585
    %v2839 = vpack.c.b16 %v2609, %v2586
    %v2840 = vpack.c.b16 %v2610, %v2587
    %v2841 = vpack.c.b16 %v2611, %v2588
    %v2842 = vpack.c.b16 %v2612, %v2589
    %v2843 = vpack.c.b16 %v2613, %v2590
    %v2844 = vpack.c.b16 %v2614, %v2591
    %v2845 = vpack.c.b16 %v2615, %v2592
    %v2846 = vpack.c.b16 %v2616, %v2593
    %v2847 = vpack.c.b16 %v2617, %v2594
    %v2848 = vpack.c.b16 %v2618, %v2595
    %v2849 = vpack.c.b16 %v2619, %v2596
    %v2850 = vpack.c.b16 %v2620, %v2597
    %v2851 = vpack.c.b16 %v2621, %v2598
    %v2852 = vpack.c.b16 %v2622, %v2599
    %v2853 = vpack.c.b16 %v2646, %v2623
    %v2854 = vpack.c.b16 %v2647, %v2624
    %v2855 = vpack.c.b16 %v2648, %v2625
    %v2856 = vpack.c.b16 %v2649, %v2626
    %v2857 = vpack.c.b16 %v2650, %v2627
    %v2858 = vpack.c.b16 %v2651, %v2628
    %v2859 = vpack.c.b16 %v2652, %v2629
    %v2860 = vpack.c.b16 %v2653, %v2630
    %v2861 = vpack.c.b16 %v2654, %v2631
    %v2862 = vpack.c.b16 %v2655, %v2632
    %v2863 = vpack.c.b16 %v2656, %v2633
    %v2864 = vpack.c.b16 %v2657, %v2634
    %v2865 = vpack.c.b16 %v2658, %v2635
    %v2866 = vpack.c.b16 %v2659, %v2636
    %v2867 = vpack.c.b16 %v2660, %v2637
    %v2868 = vpack.c.b16 %v2661, %v2638
    %v2869 = vpack.c.b16 %v2662, %v2639
    %v2870 = vpack.c.b16 %v2663, %v2640
    %v2871 = vpack.c.b16 %v2664, %v2641
    %v2872 = vpack.c.b16 %v2665, %v2642
    %v2873 = vpack.c.b16 %v2666, %v2643
    %v2874 = vpack.c.b16 %v2667, %v2644
    %v2875 = vpack.c.b16 %v2668, %v2645
    %v2876 = vpack.c.b16 %v2669, %v2669
    %v2877 = vpack.c.b16 %v2670, %v2670
    %v2878 = vpack.c.b16 %v2671, %v2671
    %v2879 = vpack.c.b16 %v2672, %v2672
    %v2880 = vpack.c.b16 %v2673, %v2673
    %v2881 = vpack.c.b16 %v2674, %v2674
    %v2882 = vpack.c.b16 %v2675, %v2675
    %v2883 = vpack.c.b16 %v2676, %v2676
    %v2884 = vpack.c.b16 %v2677, %v2677
    %v2885 = vpack.c.b16 %v2678, %v2678
    %v2886 = vpack.c.b16 %v2679, %v2679
    %v2887 = vpack.c.b16 %v2680, %v2680
    %v2888 = vpack.c.b16 %v2681, %v2681
    %v2889 = vpack.c.b16 %v2682, %v2682
    %v2890 = vpack.c.b16 %v2683, %v2683
    %v2891 = vpack.c.b16 %v2684, %v2684
    %v2892 = vpack.c.b16 %v2685, %v2685
    %v2893 = vpack.c.b16 %v2686, %v2686
    %v2894 = vpack.c.b16 %v2687, %v2687
    %v2895 = vpack.c.b16 %v2688, %v2688
    %v2896 = vpack.c.b16 %v2689, %v2689
    %v2897 = vpack.c.b16 %v2690, %v2690
    %v2898 = vpack.c.b16 %v2691, %v2691
    %v3084 = vsel %vm1219, %v23, 0
    %v3087 = vand.u32 %v2876, %v1224
    %v3090 = vand.u32 %v2877, %v1224
    %v3093 = vand.u32 %v2878, %v1224
    %v3096 = vand.u32 %v2879, %v1224
    %v3099 = vand.u32 %v2880, %v1224
    %v3102 = vand.u32 %v2881, %v1224
    %v3105 = vand.u32 %v2882, %v1224
    %v3108 = vand.u32 %v2883, %v1224
    %v3111 = vand.u32 %v2884, %v1224
    %v3114 = vand.u32 %v2885, %v1224
    %v3117 = vand.u32 %v2886, %v1224
    %v3120 = vand.u32 %v2887, %v1224
    %v3123 = vand.u32 %v2888, %v1224
    %v3126 = vand.u32 %v2889, %v1224
    %v3129 = vand.u32 %v2890, %v1224
    %v3132 = vand.u32 %v2891, %v1224
    %v3135 = vand.u32 %v2892, %v1224
    %v3138 = vand.u32 %v2893, %v1224
    %v3141 = vand.u32 %v2894, %v1224
    %v3144 = vand.u32 %v2895, %v1224
    %v3147 = vand.u32 %v2896, %v1224
    %v3150 = vand.u32 %v2897, %v1224
    %v3153 = vand.u32 %v2898, %v1224
    %3155 = vmatpush.bf16.msra.mxu0 %v2853
    %3156 = vmatpush.bf16.msra.mxu0 %v2830
    %3157 = vmatpush.bf16.msra.mxu0 %v2807
    %3158 = vmatpush.bf16.msra.mxu0 %v2784
    %3159 = vmatpush.bf16.msra.mxu0 %v2761
    %3160 = vmatpush.bf16.msra.mxu0 %v2738
    %3161 = vmatpush.bf16.msra.mxu0 %v2715
    %3162 = vmatpush.bf16.msra.mxu0 %v2692
    %3163 = vmatmul.bf16.gmra.mxu0 %v22
    %v3164 = vpop.f32.mrf.mxu0
    %v3165 = vadd.f32 0.0, %v3164
    %v3166 = vpop.f32.mrf.mxu0
    %3167 = vdwg.mxu0
    %3168 = vmatpush.bf16.msra.mxu0 0
    %3169 = vmatpush.bf16.msra.mxu0 0
    %3170 = vmatpush.bf16.msra.mxu0 0
    %3171 = vmatpush.bf16.msra.mxu0 0
    %3172 = vmatpush.bf16.msra.mxu0 0
    %3173 = vmatpush.bf16.msra.mxu0 0
    %3174 = vmatpush.bf16.msra.mxu0 0
    %3175 = vmatpush.bf16.msra.mxu0 %v3087
    %3176 = vmatmul.bf16.gmra.mxu0 %v3084
    %v3177 = vpop.f32.mrf.mxu0
    %v3178 = vadd.f32 %v3165, %v3177
    %v3179 = vpop.f32.mrf.mxu0
    %3180 = vdwg.mxu0
    %3181 = vmatpush.bf16.msra.mxu0 %v2854
    %3182 = vmatpush.bf16.msra.mxu0 %v2831
    %3183 = vmatpush.bf16.msra.mxu0 %v2808
    %3184 = vmatpush.bf16.msra.mxu0 %v2785
    %3185 = vmatpush.bf16.msra.mxu0 %v2762
    %3186 = vmatpush.bf16.msra.mxu0 %v2739
    %3187 = vmatpush.bf16.msra.mxu0 %v2716
    %3188 = vmatpush.bf16.msra.mxu0 %v2693
    %3189 = vmatmul.bf16.gmra.mxu0 %v22
    %v3190 = vpop.f32.mrf.mxu0
    %v3191 = vadd.f32 0.0, %v3190
    %v3192 = vpop.f32.mrf.mxu0
    %3193 = vdwg.mxu0
    %3194 = vmatpush.bf16.msra.mxu0 0
    %3195 = vmatpush.bf16.msra.mxu0 0
    %3196 = vmatpush.bf16.msra.mxu0 0
    %3197 = vmatpush.bf16.msra.mxu0 0
    %3198 = vmatpush.bf16.msra.mxu0 0
    %3199 = vmatpush.bf16.msra.mxu0 0
    %3200 = vmatpush.bf16.msra.mxu0 0
    %3201 = vmatpush.bf16.msra.mxu0 %v3090
    %3202 = vmatmul.bf16.gmra.mxu0 %v3084
    %v3203 = vpop.f32.mrf.mxu0
    %v3204 = vadd.f32 %v3191, %v3203
    %v3205 = vpop.f32.mrf.mxu0
    %3206 = vdwg.mxu0
    %3207 = vmatpush.bf16.msra.mxu0 %v2855
    %3208 = vmatpush.bf16.msra.mxu0 %v2832
    %3209 = vmatpush.bf16.msra.mxu0 %v2809
    %3210 = vmatpush.bf16.msra.mxu0 %v2786
    %3211 = vmatpush.bf16.msra.mxu0 %v2763
    %3212 = vmatpush.bf16.msra.mxu0 %v2740
    %3213 = vmatpush.bf16.msra.mxu0 %v2717
    %3214 = vmatpush.bf16.msra.mxu0 %v2694
    %3215 = vmatmul.bf16.gmra.mxu0 %v22
    %v3216 = vpop.f32.mrf.mxu0
    %v3217 = vadd.f32 0.0, %v3216
    %v3218 = vpop.f32.mrf.mxu0
    %3219 = vdwg.mxu0
    %3220 = vmatpush.bf16.msra.mxu0 0
    %3221 = vmatpush.bf16.msra.mxu0 0
    %3222 = vmatpush.bf16.msra.mxu0 0
    %3223 = vmatpush.bf16.msra.mxu0 0
    %3224 = vmatpush.bf16.msra.mxu0 0
    %3225 = vmatpush.bf16.msra.mxu0 0
    %3226 = vmatpush.bf16.msra.mxu0 0
    %3227 = vmatpush.bf16.msra.mxu0 %v3093
    %3228 = vmatmul.bf16.gmra.mxu0 %v3084
    %v3229 = vpop.f32.mrf.mxu0
    %v3230 = vadd.f32 %v3217, %v3229
    %v3231 = vpop.f32.mrf.mxu0
    %3232 = vdwg.mxu0
    %3233 = vmatpush.bf16.msra.mxu0 %v2856
    %3234 = vmatpush.bf16.msra.mxu0 %v2833
    %3235 = vmatpush.bf16.msra.mxu0 %v2810
    %3236 = vmatpush.bf16.msra.mxu0 %v2787
    %3237 = vmatpush.bf16.msra.mxu0 %v2764
    %3238 = vmatpush.bf16.msra.mxu0 %v2741
    %3239 = vmatpush.bf16.msra.mxu0 %v2718
    %3240 = vmatpush.bf16.msra.mxu0 %v2695
    %3241 = vmatmul.bf16.gmra.mxu0 %v22
    %v3242 = vpop.f32.mrf.mxu0
    %v3243 = vadd.f32 0.0, %v3242
    %v3244 = vpop.f32.mrf.mxu0
    %3245 = vdwg.mxu0
    %3246 = vmatpush.bf16.msra.mxu0 0
    %3247 = vmatpush.bf16.msra.mxu0 0
    %3248 = vmatpush.bf16.msra.mxu0 0
    %3249 = vmatpush.bf16.msra.mxu0 0
    %3250 = vmatpush.bf16.msra.mxu0 0
    %3251 = vmatpush.bf16.msra.mxu0 0
    %3252 = vmatpush.bf16.msra.mxu0 0
    %3253 = vmatpush.bf16.msra.mxu0 %v3096
    %3254 = vmatmul.bf16.gmra.mxu0 %v3084
    %v3255 = vpop.f32.mrf.mxu0
    %v3256 = vadd.f32 %v3243, %v3255
    %v3257 = vpop.f32.mrf.mxu0
    %3258 = vdwg.mxu0
    %3259 = vmatpush.bf16.msra.mxu0 %v2857
    %3260 = vmatpush.bf16.msra.mxu0 %v2834
    %3261 = vmatpush.bf16.msra.mxu0 %v2811
    %3262 = vmatpush.bf16.msra.mxu0 %v2788
    %3263 = vmatpush.bf16.msra.mxu0 %v2765
    %3264 = vmatpush.bf16.msra.mxu0 %v2742
    %3265 = vmatpush.bf16.msra.mxu0 %v2719
    %3266 = vmatpush.bf16.msra.mxu0 %v2696
    %3267 = vmatmul.bf16.gmra.mxu0 %v22
    %v3268 = vpop.f32.mrf.mxu0
    %v3269 = vadd.f32 0.0, %v3268
    %v3270 = vpop.f32.mrf.mxu0
    %3271 = vdwg.mxu0
    %3272 = vmatpush.bf16.msra.mxu0 0
    %3273 = vmatpush.bf16.msra.mxu0 0
    %3274 = vmatpush.bf16.msra.mxu0 0
    %3275 = vmatpush.bf16.msra.mxu0 0
    %3276 = vmatpush.bf16.msra.mxu0 0
    %3277 = vmatpush.bf16.msra.mxu0 0
    %3278 = vmatpush.bf16.msra.mxu0 0
    %3279 = vmatpush.bf16.msra.mxu0 %v3099
    %3280 = vmatmul.bf16.gmra.mxu0 %v3084
    %v3281 = vpop.f32.mrf.mxu0
    %v3282 = vadd.f32 %v3269, %v3281
    %v3283 = vpop.f32.mrf.mxu0
    %3284 = vdwg.mxu0
    %3285 = vmatpush.bf16.msra.mxu0 %v2858
    %3286 = vmatpush.bf16.msra.mxu0 %v2835
    %3287 = vmatpush.bf16.msra.mxu0 %v2812
    %3288 = vmatpush.bf16.msra.mxu0 %v2789
    %3289 = vmatpush.bf16.msra.mxu0 %v2766
    %3290 = vmatpush.bf16.msra.mxu0 %v2743
    %3291 = vmatpush.bf16.msra.mxu0 %v2720
    %3292 = vmatpush.bf16.msra.mxu0 %v2697
    %3293 = vmatmul.bf16.gmra.mxu0 %v22
    %v3294 = vpop.f32.mrf.mxu0
    %v3295 = vadd.f32 0.0, %v3294
    %v3296 = vpop.f32.mrf.mxu0
    %3297 = vdwg.mxu0
    %3298 = vmatpush.bf16.msra.mxu0 0
    %3299 = vmatpush.bf16.msra.mxu0 0
    %3300 = vmatpush.bf16.msra.mxu0 0
    %3301 = vmatpush.bf16.msra.mxu0 0
    %3302 = vmatpush.bf16.msra.mxu0 0
    %3303 = vmatpush.bf16.msra.mxu0 0
    %3304 = vmatpush.bf16.msra.mxu0 0
    %3305 = vmatpush.bf16.msra.mxu0 %v3102
    %3306 = vmatmul.bf16.gmra.mxu0 %v3084
    %v3307 = vpop.f32.mrf.mxu0
    %v3308 = vadd.f32 %v3295, %v3307
    %v3309 = vpop.f32.mrf.mxu0
    %3310 = vdwg.mxu0
    %3311 = vmatpush.bf16.msra.mxu0 %v2859
    %3312 = vmatpush.bf16.msra.mxu0 %v2836
    %3313 = vmatpush.bf16.msra.mxu0 %v2813
    %3314 = vmatpush.bf16.msra.mxu0 %v2790
    %3315 = vmatpush.bf16.msra.mxu0 %v2767
    %3316 = vmatpush.bf16.msra.mxu0 %v2744
    %3317 = vmatpush.bf16.msra.mxu0 %v2721
    %3318 = vmatpush.bf16.msra.mxu0 %v2698
    %3319 = vmatmul.bf16.gmra.mxu0 %v22
    %v3320 = vpop.f32.mrf.mxu0
    %v3321 = vadd.f32 0.0, %v3320
    %v3322 = vpop.f32.mrf.mxu0
    %3323 = vdwg.mxu0
    %3324 = vmatpush.bf16.msra.mxu0 0
    %3325 = vmatpush.bf16.msra.mxu0 0
    %3326 = vmatpush.bf16.msra.mxu0 0
    %3327 = vmatpush.bf16.msra.mxu0 0
    %3328 = vmatpush.bf16.msra.mxu0 0
    %3329 = vmatpush.bf16.msra.mxu0 0
    %3330 = vmatpush.bf16.msra.mxu0 0
    %3331 = vmatpush.bf16.msra.mxu0 %v3105
    %3332 = vmatmul.bf16.gmra.mxu0 %v3084
    %v3333 = vpop.f32.mrf.mxu0
    %v3334 = vadd.f32 %v3321, %v3333
    %v3335 = vpop.f32.mrf.mxu0
    %3336 = vdwg.mxu0
    %3337 = vmatpush.bf16.msra.mxu0 %v2860
    %3338 = vmatpush.bf16.msra.mxu0 %v2837
    %3339 = vmatpush.bf16.msra.mxu0 %v2814
    %3340 = vmatpush.bf16.msra.mxu0 %v2791
    %3341 = vmatpush.bf16.msra.mxu0 %v2768
    %3342 = vmatpush.bf16.msra.mxu0 %v2745
    %3343 = vmatpush.bf16.msra.mxu0 %v2722
    %3344 = vmatpush.bf16.msra.mxu0 %v2699
    %3345 = vmatmul.bf16.gmra.mxu0 %v22
    %v3346 = vpop.f32.mrf.mxu0
    %v3347 = vadd.f32 0.0, %v3346
    %v3348 = vpop.f32.mrf.mxu0
    %3349 = vdwg.mxu0
    %3350 = vmatpush.bf16.msra.mxu0 0
    %3351 = vmatpush.bf16.msra.mxu0 0
    %3352 = vmatpush.bf16.msra.mxu0 0
    %3353 = vmatpush.bf16.msra.mxu0 0
    %3354 = vmatpush.bf16.msra.mxu0 0
    %3355 = vmatpush.bf16.msra.mxu0 0
    %3356 = vmatpush.bf16.msra.mxu0 0
    %3357 = vmatpush.bf16.msra.mxu0 %v3108
    %3358 = vmatmul.bf16.gmra.mxu0 %v3084
    %v3359 = vpop.f32.mrf.mxu0
    %v3360 = vadd.f32 %v3347, %v3359
    %v3361 = vpop.f32.mrf.mxu0
    %3362 = vdwg.mxu0
    %3363 = vmatpush.bf16.msra.mxu0 %v2861
    %3364 = vmatpush.bf16.msra.mxu0 %v2838
    %3365 = vmatpush.bf16.msra.mxu0 %v2815
    %3366 = vmatpush.bf16.msra.mxu0 %v2792
    %3367 = vmatpush.bf16.msra.mxu0 %v2769
    %3368 = vmatpush.bf16.msra.mxu0 %v2746
    %3369 = vmatpush.bf16.msra.mxu0 %v2723
    %3370 = vmatpush.bf16.msra.mxu0 %v2700
    %3371 = vmatmul.bf16.gmra.mxu0 %v22
    %v3372 = vpop.f32.mrf.mxu0
    %v3373 = vadd.f32 0.0, %v3372
    %v3374 = vpop.f32.mrf.mxu0
    %3375 = vdwg.mxu0
    %3376 = vmatpush.bf16.msra.mxu0 0
    %3377 = vmatpush.bf16.msra.mxu0 0
    %3378 = vmatpush.bf16.msra.mxu0 0
    %3379 = vmatpush.bf16.msra.mxu0 0
    %3380 = vmatpush.bf16.msra.mxu0 0
    %3381 = vmatpush.bf16.msra.mxu0 0
    %3382 = vmatpush.bf16.msra.mxu0 0
    %3383 = vmatpush.bf16.msra.mxu0 %v3111
    %3384 = vmatmul.bf16.gmra.mxu0 %v3084
    %v3385 = vpop.f32.mrf.mxu0
    %v3386 = vadd.f32 %v3373, %v3385
    %v3387 = vpop.f32.mrf.mxu0
    %3388 = vdwg.mxu0
    %3389 = vmatpush.bf16.msra.mxu0 %v2862
    %3390 = vmatpush.bf16.msra.mxu0 %v2839
    %3391 = vmatpush.bf16.msra.mxu0 %v2816
    %3392 = vmatpush.bf16.msra.mxu0 %v2793
    %3393 = vmatpush.bf16.msra.mxu0 %v2770
    %3394 = vmatpush.bf16.msra.mxu0 %v2747
    %3395 = vmatpush.bf16.msra.mxu0 %v2724
    %3396 = vmatpush.bf16.msra.mxu0 %v2701
    %3397 = vmatmul.bf16.gmra.mxu0 %v22
    %v3398 = vpop.f32.mrf.mxu0
    %v3399 = vadd.f32 0.0, %v3398
    %v3400 = vpop.f32.mrf.mxu0
    %3401 = vdwg.mxu0
    %3402 = vmatpush.bf16.msra.mxu0 0
    %3403 = vmatpush.bf16.msra.mxu0 0
    %3404 = vmatpush.bf16.msra.mxu0 0
    %3405 = vmatpush.bf16.msra.mxu0 0
    %3406 = vmatpush.bf16.msra.mxu0 0
    %3407 = vmatpush.bf16.msra.mxu0 0
    %3408 = vmatpush.bf16.msra.mxu0 0
    %3409 = vmatpush.bf16.msra.mxu0 %v3114
    %3410 = vmatmul.bf16.gmra.mxu0 %v3084
    %v3411 = vpop.f32.mrf.mxu0
    %v3412 = vadd.f32 %v3399, %v3411
    %v3413 = vpop.f32.mrf.mxu0
    %3414 = vdwg.mxu0
    %3415 = vmatpush.bf16.msra.mxu0 %v2863
    %3416 = vmatpush.bf16.msra.mxu0 %v2840
    %3417 = vmatpush.bf16.msra.mxu0 %v2817
    %3418 = vmatpush.bf16.msra.mxu0 %v2794
    %3419 = vmatpush.bf16.msra.mxu0 %v2771
    %3420 = vmatpush.bf16.msra.mxu0 %v2748
    %3421 = vmatpush.bf16.msra.mxu0 %v2725
    %3422 = vmatpush.bf16.msra.mxu0 %v2702
    %3423 = vmatmul.bf16.gmra.mxu0 %v22
    %v3424 = vpop.f32.mrf.mxu0
    %v3425 = vadd.f32 0.0, %v3424
    %v3426 = vpop.f32.mrf.mxu0
    %3427 = vdwg.mxu0
    %3428 = vmatpush.bf16.msra.mxu0 0
    %3429 = vmatpush.bf16.msra.mxu0 0
    %3430 = vmatpush.bf16.msra.mxu0 0
    %3431 = vmatpush.bf16.msra.mxu0 0
    %3432 = vmatpush.bf16.msra.mxu0 0
    %3433 = vmatpush.bf16.msra.mxu0 0
    %3434 = vmatpush.bf16.msra.mxu0 0
    %3435 = vmatpush.bf16.msra.mxu0 %v3117
    %3436 = vmatmul.bf16.gmra.mxu0 %v3084
    %v3437 = vpop.f32.mrf.mxu0
    %v3438 = vadd.f32 %v3425, %v3437
    %v3439 = vpop.f32.mrf.mxu0
    %3440 = vdwg.mxu0
    %3441 = vmatpush.bf16.msra.mxu0 %v2864
    %3442 = vmatpush.bf16.msra.mxu0 %v2841
    %3443 = vmatpush.bf16.msra.mxu0 %v2818
    %3444 = vmatpush.bf16.msra.mxu0 %v2795
    %3445 = vmatpush.bf16.msra.mxu0 %v2772
    %3446 = vmatpush.bf16.msra.mxu0 %v2749
    %3447 = vmatpush.bf16.msra.mxu0 %v2726
    %3448 = vmatpush.bf16.msra.mxu0 %v2703
    %3449 = vmatmul.bf16.gmra.mxu0 %v22
    %v3450 = vpop.f32.mrf.mxu0
    %v3451 = vadd.f32 0.0, %v3450
    %v3452 = vpop.f32.mrf.mxu0
    %3453 = vdwg.mxu0
    %3454 = vmatpush.bf16.msra.mxu0 0
    %3455 = vmatpush.bf16.msra.mxu0 0
    %3456 = vmatpush.bf16.msra.mxu0 0
    %3457 = vmatpush.bf16.msra.mxu0 0
    %3458 = vmatpush.bf16.msra.mxu0 0
    %3459 = vmatpush.bf16.msra.mxu0 0
    %3460 = vmatpush.bf16.msra.mxu0 0
    %3461 = vmatpush.bf16.msra.mxu0 %v3120
    %3462 = vmatmul.bf16.gmra.mxu0 %v3084
    %v3463 = vpop.f32.mrf.mxu0
    %v3464 = vadd.f32 %v3451, %v3463
    %v3465 = vpop.f32.mrf.mxu0
    %3466 = vdwg.mxu0
    %3467 = vmatpush.bf16.msra.mxu0 %v2865
    %3468 = vmatpush.bf16.msra.mxu0 %v2842
    %3469 = vmatpush.bf16.msra.mxu0 %v2819
    %3470 = vmatpush.bf16.msra.mxu0 %v2796
    %3471 = vmatpush.bf16.msra.mxu0 %v2773
    %3472 = vmatpush.bf16.msra.mxu0 %v2750
    %3473 = vmatpush.bf16.msra.mxu0 %v2727
    %3474 = vmatpush.bf16.msra.mxu0 %v2704
    %3475 = vmatmul.bf16.gmra.mxu0 %v22
    %v3476 = vpop.f32.mrf.mxu0
    %v3477 = vadd.f32 0.0, %v3476
    %v3478 = vpop.f32.mrf.mxu0
    %3479 = vdwg.mxu0
    %3480 = vmatpush.bf16.msra.mxu0 0
    %3481 = vmatpush.bf16.msra.mxu0 0
    %3482 = vmatpush.bf16.msra.mxu0 0
    %3483 = vmatpush.bf16.msra.mxu0 0
    %3484 = vmatpush.bf16.msra.mxu0 0
    %3485 = vmatpush.bf16.msra.mxu0 0
    %3486 = vmatpush.bf16.msra.mxu0 0
    %3487 = vmatpush.bf16.msra.mxu0 %v3123
    %3488 = vmatmul.bf16.gmra.mxu0 %v3084
    %v3489 = vpop.f32.mrf.mxu0
    %v3490 = vadd.f32 %v3477, %v3489
    %v3491 = vpop.f32.mrf.mxu0
    %3492 = vdwg.mxu0
    %3493 = vmatpush.bf16.msra.mxu0 %v2866
    %3494 = vmatpush.bf16.msra.mxu0 %v2843
    %3495 = vmatpush.bf16.msra.mxu0 %v2820
    %3496 = vmatpush.bf16.msra.mxu0 %v2797
    %3497 = vmatpush.bf16.msra.mxu0 %v2774
    %3498 = vmatpush.bf16.msra.mxu0 %v2751
    %3499 = vmatpush.bf16.msra.mxu0 %v2728
    %3500 = vmatpush.bf16.msra.mxu0 %v2705
    %3501 = vmatmul.bf16.gmra.mxu0 %v22
    %v3502 = vpop.f32.mrf.mxu0
    %v3503 = vadd.f32 0.0, %v3502
    %v3504 = vpop.f32.mrf.mxu0
    %3505 = vdwg.mxu0
    %3506 = vmatpush.bf16.msra.mxu0 0
    %3507 = vmatpush.bf16.msra.mxu0 0
    %3508 = vmatpush.bf16.msra.mxu0 0
    %3509 = vmatpush.bf16.msra.mxu0 0
    %3510 = vmatpush.bf16.msra.mxu0 0
    %3511 = vmatpush.bf16.msra.mxu0 0
    %3512 = vmatpush.bf16.msra.mxu0 0
    %3513 = vmatpush.bf16.msra.mxu0 %v3126
    %3514 = vmatmul.bf16.gmra.mxu0 %v3084
    %v3515 = vpop.f32.mrf.mxu0
    %v3516 = vadd.f32 %v3503, %v3515
    %v3517 = vpop.f32.mrf.mxu0
    %3518 = vdwg.mxu0
    %3519 = vmatpush.bf16.msra.mxu0 %v2867
    %3520 = vmatpush.bf16.msra.mxu0 %v2844
    %3521 = vmatpush.bf16.msra.mxu0 %v2821
    %3522 = vmatpush.bf16.msra.mxu0 %v2798
    %3523 = vmatpush.bf16.msra.mxu0 %v2775
    %3524 = vmatpush.bf16.msra.mxu0 %v2752
    %3525 = vmatpush.bf16.msra.mxu0 %v2729
    %3526 = vmatpush.bf16.msra.mxu0 %v2706
    %3527 = vmatmul.bf16.gmra.mxu0 %v22
    %v3528 = vpop.f32.mrf.mxu0
    %v3529 = vadd.f32 0.0, %v3528
    %v3530 = vpop.f32.mrf.mxu0
    %3531 = vdwg.mxu0
    %3532 = vmatpush.bf16.msra.mxu0 0
    %3533 = vmatpush.bf16.msra.mxu0 0
    %3534 = vmatpush.bf16.msra.mxu0 0
    %3535 = vmatpush.bf16.msra.mxu0 0
    %3536 = vmatpush.bf16.msra.mxu0 0
    %3537 = vmatpush.bf16.msra.mxu0 0
    %3538 = vmatpush.bf16.msra.mxu0 0
    %3539 = vmatpush.bf16.msra.mxu0 %v3129
    %3540 = vmatmul.bf16.gmra.mxu0 %v3084
    %v3541 = vpop.f32.mrf.mxu0
    %v3542 = vadd.f32 %v3529, %v3541
    %v3543 = vpop.f32.mrf.mxu0
    %3544 = vdwg.mxu0
    %3545 = vmatpush.bf16.msra.mxu0 %v2868
    %3546 = vmatpush.bf16.msra.mxu0 %v2845
    %3547 = vmatpush.bf16.msra.mxu0 %v2822
    %3548 = vmatpush.bf16.msra.mxu0 %v2799
    %3549 = vmatpush.bf16.msra.mxu0 %v2776
    %3550 = vmatpush.bf16.msra.mxu0 %v2753
    %3551 = vmatpush.bf16.msra.mxu0 %v2730
    %3552 = vmatpush.bf16.msra.mxu0 %v2707
    %3553 = vmatmul.bf16.gmra.mxu0 %v22
    %v3554 = vpop.f32.mrf.mxu0
    %v3555 = vadd.f32 0.0, %v3554
    %v3556 = vpop.f32.mrf.mxu0
    %3557 = vdwg.mxu0
    %3558 = vmatpush.bf16.msra.mxu0 0
    %3559 = vmatpush.bf16.msra.mxu0 0
    %3560 = vmatpush.bf16.msra.mxu0 0
    %3561 = vmatpush.bf16.msra.mxu0 0
    %3562 = vmatpush.bf16.msra.mxu0 0
    %3563 = vmatpush.bf16.msra.mxu0 0
    %3564 = vmatpush.bf16.msra.mxu0 0
    %3565 = vmatpush.bf16.msra.mxu0 %v3132
    %3566 = vmatmul.bf16.gmra.mxu0 %v3084
    %v3567 = vpop.f32.mrf.mxu0
    %v3568 = vadd.f32 %v3555, %v3567
    %v3569 = vpop.f32.mrf.mxu0
    %3570 = vdwg.mxu0
    %3571 = vmatpush.bf16.msra.mxu0 %v2869
    %3572 = vmatpush.bf16.msra.mxu0 %v2846
    %3573 = vmatpush.bf16.msra.mxu0 %v2823
    %3574 = vmatpush.bf16.msra.mxu0 %v2800
    %3575 = vmatpush.bf16.msra.mxu0 %v2777
    %3576 = vmatpush.bf16.msra.mxu0 %v2754
    %3577 = vmatpush.bf16.msra.mxu0 %v2731
    %3578 = vmatpush.bf16.msra.mxu0 %v2708
    %3579 = vmatmul.bf16.gmra.mxu0 %v22
    %v3580 = vpop.f32.mrf.mxu0
    %v3581 = vadd.f32 0.0, %v3580
    %v3582 = vpop.f32.mrf.mxu0
    %3583 = vdwg.mxu0
    %3584 = vmatpush.bf16.msra.mxu0 0
    %3585 = vmatpush.bf16.msra.mxu0 0
    %3586 = vmatpush.bf16.msra.mxu0 0
    %3587 = vmatpush.bf16.msra.mxu0 0
    %3588 = vmatpush.bf16.msra.mxu0 0
    %3589 = vmatpush.bf16.msra.mxu0 0
    %3590 = vmatpush.bf16.msra.mxu0 0
    %3591 = vmatpush.bf16.msra.mxu0 %v3135
    %3592 = vmatmul.bf16.gmra.mxu0 %v3084
    %v3593 = vpop.f32.mrf.mxu0
    %v3594 = vadd.f32 %v3581, %v3593
    %v3595 = vpop.f32.mrf.mxu0
    %3596 = vdwg.mxu0
    %3597 = vmatpush.bf16.msra.mxu0 %v2870
    %3598 = vmatpush.bf16.msra.mxu0 %v2847
    %3599 = vmatpush.bf16.msra.mxu0 %v2824
    %3600 = vmatpush.bf16.msra.mxu0 %v2801
    %3601 = vmatpush.bf16.msra.mxu0 %v2778
    %3602 = vmatpush.bf16.msra.mxu0 %v2755
    %3603 = vmatpush.bf16.msra.mxu0 %v2732
    %3604 = vmatpush.bf16.msra.mxu0 %v2709
    %3605 = vmatmul.bf16.gmra.mxu0 %v22
    %v3606 = vpop.f32.mrf.mxu0
    %v3607 = vadd.f32 0.0, %v3606
    %v3608 = vpop.f32.mrf.mxu0
    %3609 = vdwg.mxu0
    %3610 = vmatpush.bf16.msra.mxu0 0
    %3611 = vmatpush.bf16.msra.mxu0 0
    %3612 = vmatpush.bf16.msra.mxu0 0
    %3613 = vmatpush.bf16.msra.mxu0 0
    %3614 = vmatpush.bf16.msra.mxu0 0
    %3615 = vmatpush.bf16.msra.mxu0 0
    %3616 = vmatpush.bf16.msra.mxu0 0
    %3617 = vmatpush.bf16.msra.mxu0 %v3138
    %3618 = vmatmul.bf16.gmra.mxu0 %v3084
    %v3619 = vpop.f32.mrf.mxu0
    %v3620 = vadd.f32 %v3607, %v3619
    %v3621 = vpop.f32.mrf.mxu0
    %3622 = vdwg.mxu0
    %3623 = vmatpush.bf16.msra.mxu0 %v2871
    %3624 = vmatpush.bf16.msra.mxu0 %v2848
    %3625 = vmatpush.bf16.msra.mxu0 %v2825
    %3626 = vmatpush.bf16.msra.mxu0 %v2802
    %3627 = vmatpush.bf16.msra.mxu0 %v2779
    %3628 = vmatpush.bf16.msra.mxu0 %v2756
    %3629 = vmatpush.bf16.msra.mxu0 %v2733
    %3630 = vmatpush.bf16.msra.mxu0 %v2710
    %3631 = vmatmul.bf16.gmra.mxu0 %v22
    %v3632 = vpop.f32.mrf.mxu0
    %v3633 = vadd.f32 0.0, %v3632
    %v3634 = vpop.f32.mrf.mxu0
    %3635 = vdwg.mxu0
    %3636 = vmatpush.bf16.msra.mxu0 0
    %3637 = vmatpush.bf16.msra.mxu0 0
    %3638 = vmatpush.bf16.msra.mxu0 0
    %3639 = vmatpush.bf16.msra.mxu0 0
    %3640 = vmatpush.bf16.msra.mxu0 0
    %3641 = vmatpush.bf16.msra.mxu0 0
    %3642 = vmatpush.bf16.msra.mxu0 0
    %3643 = vmatpush.bf16.msra.mxu0 %v3141
    %3644 = vmatmul.bf16.gmra.mxu0 %v3084
    %v3645 = vpop.f32.mrf.mxu0
    %v3646 = vadd.f32 %v3633, %v3645
    %v3647 = vpop.f32.mrf.mxu0
    %3648 = vdwg.mxu0
    %3649 = vmatpush.bf16.msra.mxu0 %v2872
    %3650 = vmatpush.bf16.msra.mxu0 %v2849
    %3651 = vmatpush.bf16.msra.mxu0 %v2826
    %3652 = vmatpush.bf16.msra.mxu0 %v2803
    %3653 = vmatpush.bf16.msra.mxu0 %v2780
    %3654 = vmatpush.bf16.msra.mxu0 %v2757
    %3655 = vmatpush.bf16.msra.mxu0 %v2734
    %3656 = vmatpush.bf16.msra.mxu0 %v2711
    %3657 = vmatmul.bf16.gmra.mxu0 %v22
    %v3658 = vpop.f32.mrf.mxu0
    %v3659 = vadd.f32 0.0, %v3658
    %v3660 = vpop.f32.mrf.mxu0
    %3661 = vdwg.mxu0
    %3662 = vmatpush.bf16.msra.mxu0 0
    %3663 = vmatpush.bf16.msra.mxu0 0
    %3664 = vmatpush.bf16.msra.mxu0 0
    %3665 = vmatpush.bf16.msra.mxu0 0
    %3666 = vmatpush.bf16.msra.mxu0 0
    %3667 = vmatpush.bf16.msra.mxu0 0
    %3668 = vmatpush.bf16.msra.mxu0 0
    %3669 = vmatpush.bf16.msra.mxu0 %v3144
    %3670 = vmatmul.bf16.gmra.mxu0 %v3084
    %v3671 = vpop.f32.mrf.mxu0
    %v3672 = vadd.f32 %v3659, %v3671
    %v3673 = vpop.f32.mrf.mxu0
    %3674 = vdwg.mxu0
    %3675 = vmatpush.bf16.msra.mxu0 %v2873
    %3676 = vmatpush.bf16.msra.mxu0 %v2850
    %3677 = vmatpush.bf16.msra.mxu0 %v2827
    %3678 = vmatpush.bf16.msra.mxu0 %v2804
    %3679 = vmatpush.bf16.msra.mxu0 %v2781
    %3680 = vmatpush.bf16.msra.mxu0 %v2758
    %3681 = vmatpush.bf16.msra.mxu0 %v2735
    %3682 = vmatpush.bf16.msra.mxu0 %v2712
    %3683 = vmatmul.bf16.gmra.mxu0 %v22
    %v3684 = vpop.f32.mrf.mxu0
    %v3685 = vadd.f32 0.0, %v3684
    %v3686 = vpop.f32.mrf.mxu0
    %3687 = vdwg.mxu0
    %3688 = vmatpush.bf16.msra.mxu0 0
    %3689 = vmatpush.bf16.msra.mxu0 0
    %3690 = vmatpush.bf16.msra.mxu0 0
    %3691 = vmatpush.bf16.msra.mxu0 0
    %3692 = vmatpush.bf16.msra.mxu0 0
    %3693 = vmatpush.bf16.msra.mxu0 0
    %3694 = vmatpush.bf16.msra.mxu0 0
    %3695 = vmatpush.bf16.msra.mxu0 %v3147
    %3696 = vmatmul.bf16.gmra.mxu0 %v3084
    %v3697 = vpop.f32.mrf.mxu0
    %v3698 = vadd.f32 %v3685, %v3697
    %v3699 = vpop.f32.mrf.mxu0
    %3700 = vdwg.mxu0
    %3701 = vmatpush.bf16.msra.mxu0 %v2874
    %3702 = vmatpush.bf16.msra.mxu0 %v2851
    %3703 = vmatpush.bf16.msra.mxu0 %v2828
    %3704 = vmatpush.bf16.msra.mxu0 %v2805
    %3705 = vmatpush.bf16.msra.mxu0 %v2782
    %3706 = vmatpush.bf16.msra.mxu0 %v2759
    %3707 = vmatpush.bf16.msra.mxu0 %v2736
    %3708 = vmatpush.bf16.msra.mxu0 %v2713
    %3709 = vmatmul.bf16.gmra.mxu0 %v22
    %v3710 = vpop.f32.mrf.mxu0
    %v3711 = vadd.f32 0.0, %v3710
    %v3712 = vpop.f32.mrf.mxu0
    %3713 = vdwg.mxu0
    %3714 = vmatpush.bf16.msra.mxu0 0
    %3715 = vmatpush.bf16.msra.mxu0 0
    %3716 = vmatpush.bf16.msra.mxu0 0
    %3717 = vmatpush.bf16.msra.mxu0 0
    %3718 = vmatpush.bf16.msra.mxu0 0
    %3719 = vmatpush.bf16.msra.mxu0 0
    %3720 = vmatpush.bf16.msra.mxu0 0
    %3721 = vmatpush.bf16.msra.mxu0 %v3150
    %3722 = vmatmul.bf16.gmra.mxu0 %v3084
    %v3723 = vpop.f32.mrf.mxu0
    %v3724 = vadd.f32 %v3711, %v3723
    %v3725 = vpop.f32.mrf.mxu0
    %3726 = vdwg.mxu0
    %3727 = vmatpush.bf16.msra.mxu0 %v2875
    %3728 = vmatpush.bf16.msra.mxu0 %v2852
    %3729 = vmatpush.bf16.msra.mxu0 %v2829
    %3730 = vmatpush.bf16.msra.mxu0 %v2806
    %3731 = vmatpush.bf16.msra.mxu0 %v2783
    %3732 = vmatpush.bf16.msra.mxu0 %v2760
    %3733 = vmatpush.bf16.msra.mxu0 %v2737
    %3734 = vmatpush.bf16.msra.mxu0 %v2714
    %3735 = vmatmul.bf16.gmra.mxu0 %v22
    %v3736 = vpop.f32.mrf.mxu0
    %v3737 = vadd.f32 0.0, %v3736
    %v3738 = vpop.f32.mrf.mxu0
    %3739 = vdwg.mxu0
    %3740 = vmatpush.bf16.msra.mxu0 0
    %3741 = vmatpush.bf16.msra.mxu0 0
    %3742 = vmatpush.bf16.msra.mxu0 0
    %3743 = vmatpush.bf16.msra.mxu0 0
    %3744 = vmatpush.bf16.msra.mxu0 0
    %3745 = vmatpush.bf16.msra.mxu0 0
    %3746 = vmatpush.bf16.msra.mxu0 0
    %3747 = vmatpush.bf16.msra.mxu0 %v3153
    %3748 = vmatmul.bf16.gmra.mxu0 %v3084
    %v3749 = vpop.f32.mrf.mxu0
    %v3750 = vadd.f32 %v3737, %v3749
    %v3751 = vpop.f32.mrf.mxu0
    %3752 = vdwg.mxu0
    %vm3753 = vcmp.gt.f32.partialorder %v1317, 0.0
    %vm3754 = vcmp.gt.f32.partialorder %v1343, 0.0
    %vm3755 = vcmp.gt.f32.partialorder %v1369, 0.0
    %vm3756 = vcmp.gt.f32.partialorder %v1395, 0.0
    %vm3757 = vcmp.gt.f32.partialorder %v1421, 0.0
    %vm3758 = vcmp.gt.f32.partialorder %v1447, 0.0
    %vm3759 = vcmp.gt.f32.partialorder %v1473, 0.0
    %vm3760 = vcmp.gt.f32.partialorder %v1499, 0.0
    %vm3761 = vcmp.gt.f32.partialorder %v1525, 0.0
    %vm3762 = vcmp.gt.f32.partialorder %v1551, 0.0
    %vm3763 = vcmp.gt.f32.partialorder %v1577, 0.0
    %vm3764 = vcmp.gt.f32.partialorder %v1603, 0.0
    %vm3765 = vcmp.gt.f32.partialorder %v1629, 0.0
    %vm3766 = vcmp.gt.f32.partialorder %v1655, 0.0
    %vm3767 = vcmp.gt.f32.partialorder %v1681, 0.0
    %vm3768 = vcmp.gt.f32.partialorder %v1707, 0.0
    %vm3769 = vcmp.gt.f32.partialorder %v1733, 0.0
    %vm3770 = vcmp.gt.f32.partialorder %v1759, 0.0
    %vm3771 = vcmp.gt.f32.partialorder %v1785, 0.0
    %vm3772 = vcmp.gt.f32.partialorder %v1811, 0.0
    %vm3773 = vcmp.gt.f32.partialorder %v1837, 0.0
    %vm3774 = vcmp.gt.f32.partialorder %v1863, 0.0
    %vm3775 = vcmp.gt.f32.partialorder %v1889, 0.0
    %v3776 = vmul.f32 %v1317, 0.2
    %v3777 = vmul.f32 %v1343, 0.2
    %v3778 = vmul.f32 %v1369, 0.2
    %v3779 = vmul.f32 %v1395, 0.2
    %v3780 = vmul.f32 %v1421, 0.2
    %v3781 = vmul.f32 %v1447, 0.2
    %v3782 = vmul.f32 %v1473, 0.2
    %v3783 = vmul.f32 %v1499, 0.2
    %v3784 = vmul.f32 %v1525, 0.2
    %v3785 = vmul.f32 %v1551, 0.2
    %v3786 = vmul.f32 %v1577, 0.2
    %v3787 = vmul.f32 %v1603, 0.2
    %v3788 = vmul.f32 %v1629, 0.2
    %v3789 = vmul.f32 %v1655, 0.2
    %v3790 = vmul.f32 %v1681, 0.2
    %v3791 = vmul.f32 %v1707, 0.2
    %v3792 = vmul.f32 %v1733, 0.2
    %v3793 = vmul.f32 %v1759, 0.2
    %v3794 = vmul.f32 %v1785, 0.2
    %v3795 = vmul.f32 %v1811, 0.2
    %v3796 = vmul.f32 %v1837, 0.2
    %v3797 = vmul.f32 %v1863, 0.2
    %v3798 = vmul.f32 %v1889, 0.2
    %v3799 = vsel %vm3753, %v1317, %v3776
    %v3800 = vsel %vm3754, %v1343, %v3777
    %v3801 = vsel %vm3755, %v1369, %v3778
    %v3802 = vsel %vm3756, %v1395, %v3779
    %v3803 = vsel %vm3757, %v1421, %v3780
    %v3804 = vsel %vm3758, %v1447, %v3781
    %v3805 = vsel %vm3759, %v1473, %v3782
    %v3806 = vsel %vm3760, %v1499, %v3783
    %v3807 = vsel %vm3761, %v1525, %v3784
    %v3808 = vsel %vm3762, %v1551, %v3785
    %v3809 = vsel %vm3763, %v1577, %v3786
    %v3810 = vsel %vm3764, %v1603, %v3787
    %v3811 = vsel %vm3765, %v1629, %v3788
    %v3812 = vsel %vm3766, %v1655, %v3789
    %v3813 = vsel %vm3767, %v1681, %v3790
    %v3814 = vsel %vm3768, %v1707, %v3791
    %v3815 = vsel %vm3769, %v1733, %v3792
    %v3816 = vsel %vm3770, %v1759, %v3793
    %v3817 = vsel %vm3771, %v1785, %v3794
    %v3818 = vsel %vm3772, %v1811, %v3795
    %v3819 = vsel %vm3773, %v1837, %v3796
    %v3820 = vsel %vm3774, %v1863, %v3797
    %v3821 = vsel %vm3775, %v1889, %v3798
    %v3845 = vrot.slane %v3800, 6
    %v3846 = vrot.slane %v3801, 4
    %v3847 = vrot.slane %v3802, 2
    %v3848 = vrot.slane %v3804, 6
    %v3849 = vrot.slane %v3805, 4
    %v3850 = vrot.slane %v3806, 2
    %v3851 = vrot.slane %v3808, 6
    %v3852 = vrot.slane %v3809, 4
    %v3853 = vrot.slane %v3810, 2
    %v3854 = vrot.slane %v3812, 6
    %v3855 = vrot.slane %v3813, 4
    %v3856 = vrot.slane %v3814, 2
    %v3857 = vrot.slane %v3816, 6
    %v3858 = vrot.slane %v3817, 4
    %v3859 = vrot.slane %v3818, 2
    %v3860 = vrot.slane %v3820, 6
    %v3861 = vrot.slane %v3821, 4
    %vm3862 = vcmask 1041408
    %v3863 = vsel %vm3862, %v3799, %v3845
    %vm3864 = vcmask 1045508
    %v3865 = vsel %vm3864, %v3846, %v3847
    %vm3866 = vcmask 1043456
    %v3867 = vsel %vm3866, %v3863, %v3865
    %v3868 = vsel %vm3862, %v3803, %v3848
    %v3869 = vsel %vm3864, %v3849, %v3850
    %v3870 = vsel %vm3866, %v3868, %v3869
    %v3871 = vsel %vm3862, %v3807, %v3851
    %v3872 = vsel %vm3864, %v3852, %v3853
    %v3873 = vsel %vm3866, %v3871, %v3872
    %v3874 = vsel %vm3862, %v3811, %v3854
    %v3875 = vsel %vm3864, %v3855, %v3856
    %v3876 = vsel %vm3866, %v3874, %v3875
    %v3877 = vsel %vm3862, %v3815, %v3857
    %v3878 = vsel %vm3864, %v3858, %v3859
    %v3879 = vsel %vm3866, %v3877, %v3878
    %v3880 = vsel %vm3862, %v3819, %v3860
    %v3881 = vsel %vm3866, %v3880, %v3861
    %3888 = vst [vmem:[#allocation2] sm:$0xff] %v3867
    %3889 = vst [vmem:[#allocation2 + $0x8] sm:$0xff] %v3870
    %3890 = vst [vmem:[#allocation2 + $0x10] sm:$0xff] %v3873
    %3891 = vst [vmem:[#allocation2 + $0x18] sm:$0xff] %v3876
    %3892 = vst [vmem:[#allocation2 + $0x20] sm:$0xff] %v3879
    %3893 = vst [vmem:[#allocation2 + $0x28] sm:$0x3f] %v3881
    %vm3894 = vcmp.gt.f32.partialorder %v3178, 0.0
    %vm3895 = vcmp.gt.f32.partialorder %v3204, 0.0
    %vm3896 = vcmp.gt.f32.partialorder %v3230, 0.0
    %vm3897 = vcmp.gt.f32.partialorder %v3256, 0.0
    %vm3898 = vcmp.gt.f32.partialorder %v3282, 0.0
    %vm3899 = vcmp.gt.f32.partialorder %v3308, 0.0
    %vm3900 = vcmp.gt.f32.partialorder %v3334, 0.0
    %vm3901 = vcmp.gt.f32.partialorder %v3360, 0.0
    %vm3902 = vcmp.gt.f32.partialorder %v3386, 0.0
    %vm3903 = vcmp.gt.f32.partialorder %v3412, 0.0
    %vm3904 = vcmp.gt.f32.partialorder %v3438, 0.0
    %vm3905 = vcmp.gt.f32.partialorder %v3464, 0.0
    %vm3906 = vcmp.gt.f32.partialorder %v3490, 0.0
    %vm3907 = vcmp.gt.f32.partialorder %v3516, 0.0
    %vm3908 = vcmp.gt.f32.partialorder %v3542, 0.0
    %vm3909 = vcmp.gt.f32.partialorder %v3568, 0.0
    %vm3910 = vcmp.gt.f32.partialorder %v3594, 0.0
    %vm3911 = vcmp.gt.f32.partialorder %v3620, 0.0
    %vm3912 = vcmp.gt.f32.partialorder %v3646, 0.0
    %vm3913 = vcmp.gt.f32.partialorder %v3672, 0.0
    %vm3914 = vcmp.gt.f32.partialorder %v3698, 0.0
    %vm3915 = vcmp.gt.f32.partialorder %v3724, 0.0
    %vm3916 = vcmp.gt.f32.partialorder %v3750, 0.0
    %v3917 = vmul.f32 %v3178, 0.2
    %v3918 = vmul.f32 %v3204, 0.2
    %v3919 = vmul.f32 %v3230, 0.2
    %v3920 = vmul.f32 %v3256, 0.2
    %v3921 = vmul.f32 %v3282, 0.2
    %v3922 = vmul.f32 %v3308, 0.2
    %v3923 = vmul.f32 %v3334, 0.2
    %v3924 = vmul.f32 %v3360, 0.2
    %v3925 = vmul.f32 %v3386, 0.2
    %v3926 = vmul.f32 %v3412, 0.2
    %v3927 = vmul.f32 %v3438, 0.2
    %v3928 = vmul.f32 %v3464, 0.2
    %v3929 = vmul.f32 %v3490, 0.2
    %v3930 = vmul.f32 %v3516, 0.2
    %v3931 = vmul.f32 %v3542, 0.2
    %v3932 = vmul.f32 %v3568, 0.2
    %v3933 = vmul.f32 %v3594, 0.2
    %v3934 = vmul.f32 %v3620, 0.2
    %v3935 = vmul.f32 %v3646, 0.2
    %v3936 = vmul.f32 %v3672, 0.2
    %v3937 = vmul.f32 %v3698, 0.2
    %v3938 = vmul.f32 %v3724, 0.2
    %v3939 = vmul.f32 %v3750, 0.2
    %v3940 = vsel %vm3894, %v3178, %v3917
    %v3941 = vsel %vm3895, %v3204, %v3918
    %v3942 = vsel %vm3896, %v3230, %v3919
    %v3943 = vsel %vm3897, %v3256, %v3920
    %v3944 = vsel %vm3898, %v3282, %v3921
    %v3945 = vsel %vm3899, %v3308, %v3922
    %v3946 = vsel %vm3900, %v3334, %v3923
    %v3947 = vsel %vm3901, %v3360, %v3924
    %v3948 = vsel %vm3902, %v3386, %v3925
    %v3949 = vsel %vm3903, %v3412, %v3926
    %v3950 = vsel %vm3904, %v3438, %v3927
    %v3951 = vsel %vm3905, %v3464, %v3928
    %v3952 = vsel %vm3906, %v3490, %v3929
    %v3953 = vsel %vm3907, %v3516, %v3930
    %v3954 = vsel %vm3908, %v3542, %v3931
    %v3955 = vsel %vm3909, %v3568, %v3932
    %v3956 = vsel %vm3910, %v3594, %v3933
    %v3957 = vsel %vm3911, %v3620, %v3934
    %v3958 = vsel %vm3912, %v3646, %v3935
    %v3959 = vsel %vm3913, %v3672, %v3936
    %v3960 = vsel %vm3914, %v3698, %v3937
    %v3961 = vsel %vm3915, %v3724, %v3938
    %v3962 = vsel %vm3916, %v3750, %v3939
    %v3986 = vrot.slane %v3941, 6
    %v3987 = vrot.slane %v3942, 4
    %v3988 = vrot.slane %v3943, 2
    %v3989 = vrot.slane %v3945, 6
    %v3990 = vrot.slane %v3946, 4
    %v3991 = vrot.slane %v3947, 2
    %v3992 = vrot.slane %v3949, 6
    %v3993 = vrot.slane %v3950, 4
    %v3994 = vrot.slane %v3951, 2
    %v3995 = vrot.slane %v3953, 6
    %v3996 = vrot.slane %v3954, 4
    %v3997 = vrot.slane %v3955, 2
    %v3998 = vrot.slane %v3957, 6
    %v3999 = vrot.slane %v3958, 4
    %v4000 = vrot.slane %v3959, 2
    %v4001 = vrot.slane %v3961, 6
    %v4002 = vrot.slane %v3962, 4
    %v4003 = vsel %vm3862, %v3940, %v3986
    %v4004 = vsel %vm3864, %v3987, %v3988
    %v4005 = vsel %vm3866, %v4003, %v4004
    %v4006 = vsel %vm3862, %v3944, %v3989
    %v4007 = vsel %vm3864, %v3990, %v3991
    %v4008 = vsel %vm3866, %v4006, %v4007
    %v4009 = vsel %vm3862, %v3948, %v3992
    %v4010 = vsel %vm3864, %v3993, %v3994
    %v4011 = vsel %vm3866, %v4009, %v4010
    %v4012 = vsel %vm3862, %v3952, %v3995
    %v4013 = vsel %vm3864, %v3996, %v3997
    %v4014 = vsel %vm3866, %v4012, %v4013
    %v4015 = vsel %vm3862, %v3956, %v3998
    %v4016 = vsel %vm3864, %v3999, %v4000
    %v4017 = vsel %vm3866, %v4015, %v4016
    %v4018 = vsel %vm3862, %v3960, %v4001
    %v4019 = vsel %vm3866, %v4018, %v4002
    %s4026 = scalar_lea.vmem [#allocation2], 46
    %4027 = vst [vmem:[%s4026] sm:$0xff] %v4005
    %4028 = vst [vmem:[%s4026 + $0x8] sm:$0xff] %v4008
    %4029 = vst [vmem:[%s4026 + $0x10] sm:$0xff] %v4011
    %4030 = vst [vmem:[%s4026 + $0x18] sm:$0xff] %v4014
    %4031 = vst [vmem:[%s4026 + $0x20] sm:$0xff] %v4017
    %4032 = vst [vmem:[%s4026 + $0x28] sm:$0x3f] %v4019
    // Predicated region
    $region10: #{_run_packed.1} parent=1 // pred_check
      _
    $region11: #{_run_packed.1} parent=1 // pred_check_branch
      %4034 = sbr.rel (0) target = $region13
    $region12: #{_run_packed.1} parent=1 // pred_region
      %4036 = vsyncadd [#allocation3], 0
      %s4037 = sshll.u32 [#allocation2], 4
      %s4038 = int_to_ptr.vmem [resolvable:$true] %s4037
      %s4039 = sshll.u32 %s2, 4
      %s4040 = int_to_ptr.hbm [resolvable:$true] %s4039
      %4045 = dma.vmem_to_hbm [thread:$0]  %s4038, 1472, %s4040, [#allocation3], 736, 736, 46
    $region13: #{_run_packed.1} parent=1 // pred_fallthru
      _
    // Predicated region
    $region14: #{_run_packed.1} parent=1 // pred_check
      _
    $region15: #{_run_packed.1} parent=1 // pred_check_branch
      %4047 = sbr.rel (0) target = $region17
    $region16: #{_run_packed.1} parent=1 // pred_region
      %4049 = dma.done [#allocation3], 1472
    $region17: #{_run_packed.1} parent=1 // pred_fallthru
      _
    %4050 = vsyncpa [#allocation3], 1

</llo_original>
